<compile_context>
chip_gen: v7x
topology: tpu7x:2x2x1
jax: 0.10.0
libtpu: 0.0.40
codegen_flags: <defaults>
</compile_context>

<pallas_src>
import functools

import jax
import jax.numpy as jnp
import numpy as np
from jax.experimental import pallas as pl
from jax.experimental.pallas import tpu as pltpu


def _round_up(x, m):
    return (x + m - 1) // m * m


def _cdiv(a, b):
    return (a + b - 1) // b


def _tpu_budget():
    """(vmem_limit_bytes, target_block_rows), chosen per TPU generation."""
    try:
        cap = int(pltpu.get_tpu_info().vmem_capacity_bytes)
    except Exception:
        cap = 64 * 1024 * 1024            # conservative (v7x-sized) fallback
    if cap >= 100 * 1024 * 1024:          # v5e / v6e: 128 MiB physical VMEM
        return 96 * 1024 * 1024, 4096
    # v7x (64 MiB physical): keep the scoped budget well under physical.
    return min(48 * 1024 * 1024, max(32 * 1024 * 1024, (cap * 3) // 4)), 2048


# ---------------------------------------------------------------------------
# Pallas kernel: fused 3x3/stride-2 conv (2 matmuls) + channels-first LN + GELU
# ---------------------------------------------------------------------------
def _stage_kernel(a_ref, w01_ref, wS_ref, vec_ref, o_ref, *, c3, cout_real, eps):
    """a_ref  : (TM, 6*Cin) bf16  -- row-major (image row, W-pair) pixels; lanes are
                 [kh0,kh1,kh2 even-W channel groups | kh0,kh1,kh2 odd-W groups].
       w01_ref: (6*Cin, Cp) bf16  -- kw=0 taps on the even half, kw=1 on the odd half.
       wS_ref : (3*Cin, Cp) bf16  -- kw=2 taps (applied to the even half of the NEXT row).
       vec_ref: (8, Cp) f32       -- row 0 conv bias, row 1 LN gamma, row 2 LN beta
                                     (zero in padded output lanes).
       o_ref  : (TM, Cp)          -- bf16 (inter-stage) or f32 (final stage).
    """
    x = a_ref[...]
    # kw = 0 / 1 taps: one wide matmul, f32 accumulation, no zero-init.
    acc = jnp.dot(x, w01_ref[...], preferred_element_type=jnp.float32)

    # kw = 2 tap: compact K = 3*Cin dot on the even-W lanes, then shift the f32
    # partial up one row (out[q] += s2[q+1]).  The wrapped last row only lands in a
    # W-padding column that is sliced off outside the kernel (TM % Wp == 0 and
    # Wp > Wo by construction), so no zero row is materialised.
    s2 = jnp.dot(x[:, :c3], wS_ref[...], preferred_element_type=jnp.float32)
    acc = acc + jnp.concatenate([s2[1:, :], s2[:1, :]], axis=0)

    v = vec_ref[...]
    x32 = acc + v[0:1, :]                               # + conv bias

    # channels-first LayerNorm over the *real* Cout lanes; padded lanes of x32 are
    # exactly zero (zero weight columns + zero bias) so plain lane sums / cout_real
    # give the correct statistics.
    inv_c = jnp.float32(1.0 / cout_real)
    mean = jnp.sum(x32, axis=-1, keepdims=True) * inv_c
    m2 = jnp.sum(x32 * x32, axis=-1, keepdims=True) * inv_c
    var = jnp.maximum(m2 - mean * mean, 0.0)
    xn = (x32 - mean) * jax.lax.rsqrt(var + jnp.float32(eps))
    y = xn * v[1:2, :] + v[2:3, :]                      # padded lanes: gamma = beta = 0

    # exact (erf-based) GELU, matching torch.nn.GELU() default
    inv_sqrt2 = jnp.float32(0.7071067811865476)
    o_ref[...] = (0.5 * y * (1.0 + jax.lax.erf(y * inv_sqrt2))).astype(o_ref.dtype)


# ---------------------------------------------------------------------------
# Weight re-layout: PyTorch (Cout, Cin, 3, 3) -> fused tap matrices
# ---------------------------------------------------------------------------
def _pack_weights(w, *, cin_slab, cout_pad, dtype):
    cout, cin = w.shape[0], w.shape[1]
    wt = jnp.transpose(w.astype(jnp.float32), (2, 3, 1, 0))        # (kh, kw, ci, co)

    def tap(kw):                                                   # (3*cin_slab, Cp)
        blk = jnp.zeros((3, cin_slab, cout_pad), jnp.float32)
        blk = blk.at[:, :cin, :cout].set(wt[:, kw])
        return blk.reshape(3 * cin_slab, cout_pad)

    w01 = jnp.concatenate([tap(0), tap(1)], axis=0).astype(dtype)  # kw=0 | kw=1
    w_s = tap(2).astype(dtype)                                     # kw=2 (shifted tap)
    return w01, w_s


# ---------------------------------------------------------------------------
# One stem stage: Conv2d(3x3, s=2, p=1) + LayerNorm(channels_first) + GELU
# ---------------------------------------------------------------------------
def _fused_conv_ln_gelu_stage(x_nhwc, w, b, gamma, beta, *, eps=1e-6,
                              out_dtype=jnp.bfloat16,
                              compute_dtype=jnp.bfloat16,
                              target_block_rows=2048,
                              vmem_limit_bytes=48 * 1024 * 1024):
    """x_nhwc may carry zero-padded trailing channels (>= w.shape[1]).  The output
    is NHWC with round_up(Cout, 128) channels whose padded tail is exactly zero
    (so it can feed the next stage without any fixup)."""
    N, H, W, cin_slab = x_nhwc.shape
    cout_real, cin_real = w.shape[0], w.shape[1]
    assert cin_real <= cin_slab
    assert H % 2 == 0 and W % 2 == 0, "even spatial dims expected"
    # TODO(synk): odd H/W not supported by this layout; ConvNeXt stems use even sizes.
    Ho, Wo = H // 2, W // 2
    Cp = _round_up(cout_real, 128)
    c3 = 3 * cin_slab                       # even-W lane group (kw=0 / shifted kw=2 taps)
    lanes = 2 * c3                          # full fused-slab lane count

    # --- single fused layout pass: pad + W space-to-depth + kh lane-concat -------
    # (~1.5x input bytes, no 9x im2col, no per-slab materialisation)
    Wp = _round_up(Wo + 1, 16)              # sublane-aligned W positions per image row
    assert Wp >= Wo + 1
    xb = x_nhwc.astype(compute_dtype)
    xp = jnp.pad(xb, ((0, 0), (1, 1), (1, 2 * Wp - (W + 1)), (0, 0)))
    xp = xp.reshape(N, H + 2, Wp, 2, cin_slab)
    even, odd = xp[..., 0, :], xp[..., 1, :]            # padded-W = 2j / 2j+1 groups

    def htap(t, kh):                                    # rows 2*ho + kh, ho = 0..Ho-1
        return t[:, kh: kh + 2 * Ho: 2]

    slab = jnp.concatenate(
        [htap(even, 0), htap(even, 1), htap(even, 2),
         htap(odd, 0), htap(odd, 1), htap(odd, 2)], axis=-1)       # (N, Ho, Wp, 6*Cin)

    R = N * Ho
    TR = max(1, min(R, target_block_rows // Wp))        # image rows per grid step
    n_tiles = _cdiv(R, TR)
    if n_tiles > 1 and n_tiles % 2 == 1:                # keep both v7x TCs busy
        n_tiles += 1
        TR = _cdiv(R, n_tiles)
    Rp = n_tiles * TR
    TM = TR * Wp                                        # output pixels per grid step
    Mp = Rp * Wp
    assert TM % Wp == 0                                 # kw=2 shift correctness guard

    slab = slab.reshape(R, Wp, lanes)
    if Rp != R:
        slab = jnp.pad(slab, ((0, Rp - R), (0, 0), (0, 0)))
    slab = slab.reshape(Mp, lanes)

    w01, w_s = _pack_weights(w, cin_slab=cin_slab, cout_pad=Cp, dtype=compute_dtype)

    vec = jnp.zeros((8, Cp), jnp.float32)               # packed bias / gamma / beta
    vec = vec.at[0, :cout_real].set(b.astype(jnp.float32))
    vec = vec.at[1, :cout_real].set(gamma.astype(jnp.float32))
    vec = vec.at[2, :cout_real].set(beta.astype(jnp.float32))

    out2d = pl.pallas_call(
        functools.partial(_stage_kernel, c3=c3, cout_real=cout_real, eps=eps),
        out_shape=jax.ShapeDtypeStruct((Mp, Cp), out_dtype),
        grid=(n_tiles,),
        in_specs=[
            pl.BlockSpec((TM, lanes), lambda i: (i, 0)),   # fused pixel slab
            pl.BlockSpec((lanes, Cp), lambda i: (0, 0)),   # grid-invariant weights
            pl.BlockSpec((c3, Cp), lambda i: (0, 0)),
            pl.BlockSpec((8, Cp), lambda i: (0, 0)),       # packed bias/gamma/beta
        ],
        out_specs=pl.BlockSpec((TM, Cp), lambda i: (i, 0)),
        compiler_params=pltpu.CompilerParams(
            dimension_semantics=("parallel",),
            vmem_limit_bytes=vmem_limit_bytes,
        ),
    )(slab, w01, w_s, vec)

    # Drop row / W padding lazily (the slice fuses into the next consumer --
    # stage-2's slab build or the final NCHW transpose); keep zero channel padding.
    y = out2d.reshape(Rp, Wp, Cp)[:R, :Wo, :].reshape(N, Ho, Wo, Cp)
    return y


@jax.jit
def conv_block1_forward(x_nchw, params):
    """Full ConvBlock1 stem (two fused conv+LN+GELU stages).  NCHW in / out."""
    vmem_limit, target_rows = _tpu_budget()
    x = jnp.transpose(x_nchw, (0, 2, 3, 1)).astype(jnp.bfloat16)   # NHWC / bf16 once
    y1 = _fused_conv_ln_gelu_stage(
        x, params["w1"], params["b1"], params["g1"], params["be1"],
        out_dtype=jnp.bfloat16,                                    # bf16 inter-stage
        target_block_rows=target_rows, vmem_limit_bytes=vmem_limit)
    y2 = _fused_conv_ln_gelu_stage(
        y1, params["w2"], params["b2"], params["g2"], params["be2"],
        out_dtype=jnp.float32,                                     # final stage in f32
        target_block_rows=target_rows, vmem_limit_bytes=vmem_limit)
    cout2 = params["w2"].shape[0]
    return jnp.transpose(y2[..., :cout2], (0, 3, 1, 2))            # NCHW at the end


# ---------------------------------------------------------------------------
# Pure-JAX reference.  Mirrors the kernel's bf16 matmul inputs (f32 accumulation,
# f32 LN/GELU), so it differs from the Pallas path only by summation order.
# ---------------------------------------------------------------------------
def _reference_forward(x, params, eps=1e-6):
    def stage(x, w, b, g, be):
        y = jax.lax.conv_general_dilated(
            x.astype(jnp.bfloat16), w.astype(jnp.bfloat16),
            window_strides=(2, 2), padding=((1, 1), (1, 1)),
            dimension_numbers=("NCHW", "OIHW", "NCHW"),
            preferred_element_type=jnp.float32)
        y = y + b[None, :, None, None]
        u = jnp.mean(y, axis=1, keepdims=True)
        s = jnp.mean((y - u) ** 2, axis=1, keepdims=True)
        y = (y - u) * jax.lax.rsqrt(s + eps)
        y = g[None, :, None, None] * y + be[None, :, None, None]
        return 0.5 * y * (1.0 + jax.lax.erf(y * np.float32(0.7071067811865476)))

    y = stage(x, params["w1"], params["b1"], params["g1"], params["be1"])
    return stage(y, params["w2"], params["b2"], params["g2"], params["be2"])


# ---------------------------------------------------------------------------
if __name__ == "__main__":
    siz = 8                       # small "planes" for the synthetic test
    N, Cin, H, W = 2, 3, 16, 16   # input NCHW, as the PyTorch module expects

    key = jax.random.PRNGKey(0)
    k1, k2, k3, k4, k5, k6, k7, k8, kx = jax.random.split(key, 9)

    params = {
        # conv weights in PyTorch layout (Cout, Cin, kh, kw)
        "w1": 0.05 * jax.random.normal(k1, (siz, Cin, 3, 3), jnp.float32),
        "b1": 0.01 * jax.random.normal(k2, (siz,), jnp.float32),
        "g1": 1.0 + 0.1 * jax.random.normal(k5, (siz,), jnp.float32),
        "be1": 0.02 * jax.random.normal(k6, (siz,), jnp.float32),
        "w2": 0.05 * jax.random.normal(k3, (2 * siz, siz, 3, 3), jnp.float32),
        "b2": 0.01 * jax.random.normal(k4, (2 * siz,), jnp.float32),
        "g2": 1.0 + 0.1 * jax.random.normal(k7, (2 * siz,), jnp.float32),
        "be2": 0.02 * jax.random.normal(k8, (2 * siz,), jnp.float32),
    }

    x = jax.random.normal(kx, (N, Cin, H, W), jnp.float32)

    out = jax.block_until_ready(conv_block1_forward(x, params))
    assert out.shape == (N, 2 * siz, H // 4, W // 4), out.shape

    ref = jax.block_until_ready(_reference_forward(x, params))
    np.testing.assert_allclose(np.asarray(out), np.asarray(ref),
                               atol=1e-2, rtol=1e-2)

    print("KERNEL_OK")
</pallas_src>

<mosaic_0001>
module attributes {stable_mosaic.version = 11 : i64} {
  func.func @_stage_kernel(%arg0: i32, %arg1: memref<256x18xbf16, #tpu.memory_space<vmem>>, %arg2: memref<18x128xbf16, #tpu.memory_space<vmem>>, %arg3: memref<9x128xbf16, #tpu.memory_space<vmem>>, %arg4: memref<8x128xf32, #tpu.memory_space<vmem>>, %arg5: memref<256x128xbf16, #tpu.memory_space<vmem>>) attributes {dimension_semantics = [#tpu.dimension_semantics<parallel>], iteration_bounds = array<i64: 1>, scalar_prefetch = 0 : i64, scratch_operands = 0 : i64, tpu.core_type = #tpu.core_type<tc>, window_params = [{transform_indices = @transform_0, window_bounds = array<i64: 256, 18>}, {pipeline_mode = #tpu.pipeline_mode<synchronous>, transform_indices = @transform_1, window_bounds = array<i64: 18, 128>}, {pipeline_mode = #tpu.pipeline_mode<synchronous>, transform_indices = @transform_2, window_bounds = array<i64: 9, 128>}, {pipeline_mode = #tpu.pipeline_mode<synchronous>, transform_indices = @transform_3, window_bounds = array<i64: 8, 128>}, {transform_indices = @transform_4, window_bounds = array<i64: 256, 128>}]} {
    %c0 = arith.constant 0 : index
    %c0_0 = arith.constant 0 : index
    %0 = vector.load %arg1[%c0, %c0_0] : memref<256x18xbf16, #tpu.memory_space<vmem>>, vector<256x18xbf16>
    %c0_1 = arith.constant 0 : index
    %c0_2 = arith.constant 0 : index
    %1 = vector.load %arg2[%c0_1, %c0_2] : memref<18x128xbf16, #tpu.memory_space<vmem>>, vector<18x128xbf16>
    %cst = arith.constant dense<0.000000e+00> : vector<256x128xf32>
    %2 = tpu.matmul %0, %1, %cst {dimension_numbers = #tpu.dot_dimension_numbers<[1], [0], [0], [1], [0, 0, 1, 1], [], []>} : vector<256x18xbf16>, vector<18x128xbf16>, vector<256x128xf32> -> vector<256x128xf32>
    %3 = vector.extract_strided_slice %0 {offsets = [0, 0], sizes = [256, 9], strides = [1, 1]} : vector<256x18xbf16> to vector<256x9xbf16>
    %c0_3 = arith.constant 0 : index
    %c0_4 = arith.constant 0 : index
    %4 = vector.load %arg3[%c0_3, %c0_4] : memref<9x128xbf16, #tpu.memory_space<vmem>>, vector<9x128xbf16>
    %cst_5 = arith.constant dense<0.000000e+00> : vector<256x128xf32>
    %5 = tpu.matmul %3, %4, %cst_5 {dimension_numbers = #tpu.dot_dimension_numbers<[1], [0], [0], [1], [0, 0, 1, 1], [], []>} : vector<256x9xbf16>, vector<9x128xbf16>, vector<256x128xf32> -> vector<256x128xf32>
    %6 = vector.extract_strided_slice %5 {offsets = [1, 0], sizes = [255, 128], strides = [1, 1]} : vector<256x128xf32> to vector<255x128xf32>
    %7 = vector.extract_strided_slice %5 {offsets = [0, 0], sizes = [1, 128], strides = [1, 1]} : vector<256x128xf32> to vector<1x128xf32>
    %8 = tpu.concatenate %6, %7 in 0 : vector<255x128xf32>, vector<1x128xf32> -> vector<256x128xf32>
    %9 = arith.addf %2, %8 : vector<256x128xf32>
    %c0_6 = arith.constant 0 : index
    %c0_7 = arith.constant 0 : index
    %10 = vector.load %arg4[%c0_6, %c0_7] : memref<8x128xf32, #tpu.memory_space<vmem>>, vector<8x128xf32>
    %11 = vector.extract_strided_slice %10 {offsets = [0, 0], sizes = [1, 128], strides = [1, 1]} : vector<8x128xf32> to vector<1x128xf32>
    %12 = vector.broadcast %11 : vector<1x128xf32> to vector<256x128xf32>
    %13 = arith.addf %9, %12 : vector<256x128xf32>
    %cst_8 = arith.constant dense<0.000000e+00> : vector<256xf32>
    %14 = vector.multi_reduction <add>, %13, %cst_8 [1] : vector<256x128xf32> to vector<256xf32>
    %15 = vector.shape_cast %14 : vector<256xf32> to vector<256x1xf32>
    %cst_9 = arith.constant 1.250000e-01 : f32
    %16 = vector.broadcast %cst_9 : f32 to vector<256x1xf32>
    %17 = arith.mulf %15, %16 : vector<256x1xf32>
    %18 = arith.mulf %13, %13 : vector<256x128xf32>
    %cst_10 = arith.constant dense<0.000000e+00> : vector<256xf32>
    %19 = vector.multi_reduction <add>, %18, %cst_10 [1] : vector<256x128xf32> to vector<256xf32>
    %20 = vector.shape_cast %19 : vector<256xf32> to vector<256x1xf32>
    %cst_11 = arith.constant 1.250000e-01 : f32
    %21 = vector.broadcast %cst_11 : f32 to vector<256x1xf32>
    %22 = arith.mulf %20, %21 : vector<256x1xf32>
    %23 = arith.mulf %17, %17 : vector<256x1xf32>
    %24 = arith.subf %22, %23 : vector<256x1xf32>
    %cst_12 = arith.constant 0.000000e+00 : f32
    %25 = vector.broadcast %cst_12 : f32 to vector<256x1xf32>
    %26 = arith.maximumf %24, %25 : vector<256x1xf32>
    %27 = vector.broadcast %17 : vector<256x1xf32> to vector<256x128xf32>
    %28 = arith.subf %13, %27 : vector<256x128xf32>
    %cst_13 = arith.constant 9.99999997E-7 : f32
    %29 = vector.broadcast %cst_13 : f32 to vector<256x1xf32>
    %30 = arith.addf %26, %29 : vector<256x1xf32>
    %31 = math.rsqrt %30 : vector<256x1xf32>
    %32 = vector.broadcast %31 : vector<256x1xf32> to vector<256x128xf32>
    %33 = arith.mulf %28, %32 : vector<256x128xf32>
    %34 = vector.extract_strided_slice %10 {offsets = [1, 0], sizes = [1, 128], strides = [1, 1]} : vector<8x128xf32> to vector<1x128xf32>
    %35 = vector.broadcast %34 : vector<1x128xf32> to vector<256x128xf32>
    %36 = arith.mulf %33, %35 : vector<256x128xf32>
    %37 = vector.extract_strided_slice %10 {offsets = [2, 0], sizes = [1, 128], strides = [1, 1]} : vector<8x128xf32> to vector<1x128xf32>
    %38 = vector.broadcast %37 : vector<1x128xf32> to vector<256x128xf32>
    %39 = arith.addf %36, %38 : vector<256x128xf32>
    %cst_14 = arith.constant 5.000000e-01 : f32
    %40 = vector.broadcast %cst_14 : f32 to vector<256x128xf32>
    %41 = arith.mulf %40, %39 : vector<256x128xf32>
    %cst_15 = arith.constant 0.707106769 : f32
    %42 = vector.broadcast %cst_15 : f32 to vector<256x128xf32>
    %43 = arith.mulf %39, %42 : vector<256x128xf32>
    %44 = math.erf %43 : vector<256x128xf32>
    %cst_16 = arith.constant 1.000000e+00 : f32
    %45 = vector.broadcast %cst_16 : f32 to vector<256x128xf32>
    %46 = arith.addf %45, %44 : vector<256x128xf32>
    %47 = arith.mulf %41, %46 : vector<256x128xf32>
    %48 = arith.truncf %47 : vector<256x128xf32> to vector<256x128xbf16>
    %c0_17 = arith.constant 0 : index
    %c0_18 = arith.constant 0 : index
    %49 = vector.load %arg5[%c0_17, %c0_18] : memref<256x128xbf16, #tpu.memory_space<vmem>>, vector<256x128xbf16>
    tpu.vector_store %arg5[%c0_17, %c0_18], %48 {strides = array<i32>} : memref<256x128xbf16, #tpu.memory_space<vmem>>, vector<256x128xbf16>,
    return
  }
  func.func @transform_0(%arg0: i32) -> (i32, i32) {
    %c0_i32 = arith.constant 0 : i32
    %c0_i32_0 = arith.constant 0 : i32
    return %arg0, %c0_i32 : i32, i32
  }
  func.func @transform_1(%arg0: i32) -> (i32, i32) {
    %c0_i32 = arith.constant 0 : i32
    %c0_i32_0 = arith.constant 0 : i32
    %c0_i32_1 = arith.constant 0 : i32
    return %c0_i32, %c0_i32_0 : i32, i32
  }
  func.func @transform_2(%arg0: i32) -> (i32, i32) {
    %c0_i32 = arith.constant 0 : i32
    %c0_i32_0 = arith.constant 0 : i32
    %c0_i32_1 = arith.constant 0 : i32
    return %c0_i32, %c0_i32_0 : i32, i32
  }
  func.func @transform_3(%arg0: i32) -> (i32, i32) {
    %c0_i32 = arith.constant 0 : i32
    %c0_i32_0 = arith.constant 0 : i32
    %c0_i32_1 = arith.constant 0 : i32
    return %c0_i32, %c0_i32_0 : i32, i32
  }
  func.func @transform_4(%arg0: i32) -> (i32, i32) {
    %c0_i32 = arith.constant 0 : i32
    %c0_i32_0 = arith.constant 0 : i32
    return %arg0, %c0_i32 : i32, i32
  }
}

module attributes {stable_mosaic.version = 11 : i64} {
  func.func @_stage_kernel(%arg0: i32, %arg1: memref<128x768xbf16, #tpu.memory_space<vmem>>, %arg2: memref<768x128xbf16, #tpu.memory_space<vmem>>, %arg3: memref<384x128xbf16, #tpu.memory_space<vmem>>, %arg4: memref<8x128xf32, #tpu.memory_space<vmem>>, %arg5: memref<128x128xf32, #tpu.memory_space<vmem>>) attributes {dimension_semantics = [#tpu.dimension_semantics<parallel>], iteration_bounds = array<i64: 1>, scalar_prefetch = 0 : i64, scratch_operands = 0 : i64, tpu.core_type = #tpu.core_type<tc>, window_params = [{transform_indices = @transform_0, window_bounds = array<i64: 128, 768>}, {pipeline_mode = #tpu.pipeline_mode<synchronous>, transform_indices = @transform_1, window_bounds = array<i64: 768, 128>}, {pipeline_mode = #tpu.pipeline_mode<synchronous>, transform_indices = @transform_2, window_bounds = array<i64: 384, 128>}, {pipeline_mode = #tpu.pipeline_mode<synchronous>, transform_indices = @transform_3, window_bounds = array<i64: 8, 128>}, {transform_indices = @transform_4, window_bounds = array<i64: 128, 128>}]} {
    %c0 = arith.constant 0 : index
    %c0_0 = arith.constant 0 : index
    %0 = vector.load %arg1[%c0, %c0_0] : memref<128x768xbf16, #tpu.memory_space<vmem>>, vector<128x768xbf16>
    %c0_1 = arith.constant 0 : index
    %c0_2 = arith.constant 0 : index
    %1 = vector.load %arg2[%c0_1, %c0_2] : memref<768x128xbf16, #tpu.memory_space<vmem>>, vector<768x128xbf16>
    %cst = arith.constant dense<0.000000e+00> : vector<128x128xf32>
    %2 = tpu.matmul %0, %1, %cst {dimension_numbers = #tpu.dot_dimension_numbers<[1], [0], [0], [1], [0, 0, 1, 1], [], []>} : vector<128x768xbf16>, vector<768x128xbf16>, vector<128x128xf32> -> vector<128x128xf32>
    %3 = vector.extract_strided_slice %0 {offsets = [0, 0], sizes = [128, 384], strides = [1, 1]} : vector<128x768xbf16> to vector<128x384xbf16>
    %c0_3 = arith.constant 0 : index
    %c0_4 = arith.constant 0 : index
    %4 = vector.load %arg3[%c0_3, %c0_4] : memref<384x128xbf16, #tpu.memory_space<vmem>>, vector<384x128xbf16>
    %cst_5 = arith.constant dense<0.000000e+00> : vector<128x128xf32>
    %5 = tpu.matmul %3, %4, %cst_5 {dimension_numbers = #tpu.dot_dimension_numbers<[1], [0], [0], [1], [0, 0, 1, 1], [], []>} : vector<128x384xbf16>, vector<384x128xbf16>, vector<128x128xf32> -> vector<128x128xf32>
    %6 = vector.extract_strided_slice %5 {offsets = [1, 0], sizes = [127, 128], strides = [1, 1]} : vector<128x128xf32> to vector<127x128xf32>
    %7 = vector.extract_strided_slice %5 {offsets = [0, 0], sizes = [1, 128], strides = [1, 1]} : vector<128x128xf32> to vector<1x128xf32>
    %8 = tpu.concatenate %6, %7 in 0 : vector<127x128xf32>, vector<1x128xf32> -> vector<128x128xf32>
    %9 = arith.addf %2, %8 : vector<128x128xf32>
    %c0_6 = arith.constant 0 : index
    %c0_7 = arith.constant 0 : index
    %10 = vector.load %arg4[%c0_6, %c0_7] : memref<8x128xf32, #tpu.memory_space<vmem>>, vector<8x128xf32>
    %11 = vector.extract_strided_slice %10 {offsets = [0, 0], sizes = [1, 128], strides = [1, 1]} : vector<8x128xf32> to vector<1x128xf32>
    %12 = vector.broadcast %11 : vector<1x128xf32> to vector<128x128xf32>
    %13 = arith.addf %9, %12 : vector<128x128xf32>
    %cst_8 = arith.constant dense<0.000000e+00> : vector<128xf32>
    %14 = vector.multi_reduction <add>, %13, %cst_8 [1] : vector<128x128xf32> to vector<128xf32>
    %15 = vector.shape_cast %14 : vector<128xf32> to vector<128x1xf32>
    %cst_9 = arith.constant 6.250000e-02 : f32
    %16 = vector.broadcast %cst_9 : f32 to vector<128x1xf32>
    %17 = arith.mulf %15, %16 : vector<128x1xf32>
    %18 = arith.mulf %13, %13 : vector<128x128xf32>
    %cst_10 = arith.constant dense<0.000000e+00> : vector<128xf32>
    %19 = vector.multi_reduction <add>, %18, %cst_10 [1] : vector<128x128xf32> to vector<128xf32>
    %20 = vector.shape_cast %19 : vector<128xf32> to vector<128x1xf32>
    %cst_11 = arith.constant 6.250000e-02 : f32
    %21 = vector.broadcast %cst_11 : f32 to vector<128x1xf32>
    %22 = arith.mulf %20, %21 : vector<128x1xf32>
    %23 = arith.mulf %17, %17 : vector<128x1xf32>
    %24 = arith.subf %22, %23 : vector<128x1xf32>
    %cst_12 = arith.constant 0.000000e+00 : f32
    %25 = vector.broadcast %cst_12 : f32 to vector<128x1xf32>
    %26 = arith.maximumf %24, %25 : vector<128x1xf32>
    %27 = vector.broadcast %17 : vector<128x1xf32> to vector<128x128xf32>
    %28 = arith.subf %13, %27 : vector<128x128xf32>
    %cst_13 = arith.constant 9.99999997E-7 : f32
    %29 = vector.broadcast %cst_13 : f32 to vector<128x1xf32>
    %30 = arith.addf %26, %29 : vector<128x1xf32>
    %31 = math.rsqrt %30 : vector<128x1xf32>
    %32 = vector.broadcast %31 : vector<128x1xf32> to vector<128x128xf32>
    %33 = arith.mulf %28, %32 : vector<128x128xf32>
    %34 = vector.extract_strided_slice %10 {offsets = [1, 0], sizes = [1, 128], strides = [1, 1]} : vector<8x128xf32> to vector<1x128xf32>
    %35 = vector.broadcast %34 : vector<1x128xf32> to vector<128x128xf32>
    %36 = arith.mulf %33, %35 : vector<128x128xf32>
    %37 = vector.extract_strided_slice %10 {offsets = [2, 0], sizes = [1, 128], strides = [1, 1]} : vector<8x128xf32> to vector<1x128xf32>
    %38 = vector.broadcast %37 : vector<1x128xf32> to vector<128x128xf32>
    %39 = arith.addf %36, %38 : vector<128x128xf32>
    %cst_14 = arith.constant 5.000000e-01 : f32
    %40 = vector.broadcast %cst_14 : f32 to vector<128x128xf32>
    %41 = arith.mulf %40, %39 : vector<128x128xf32>
    %cst_15 = arith.constant 0.707106769 : f32
    %42 = vector.broadcast %cst_15 : f32 to vector<128x128xf32>
    %43 = arith.mulf %39, %42 : vector<128x128xf32>
    %44 = math.erf %43 : vector<128x128xf32>
    %cst_16 = arith.constant 1.000000e+00 : f32
    %45 = vector.broadcast %cst_16 : f32 to vector<128x128xf32>
    %46 = arith.addf %45, %44 : vector<128x128xf32>
    %47 = arith.mulf %41, %46 : vector<128x128xf32>
    %c0_17 = arith.constant 0 : index
    %c0_18 = arith.constant 0 : index
    %48 = vector.load %arg5[%c0_17, %c0_18] : memref<128x128xf32, #tpu.memory_space<vmem>>, vector<128x128xf32>
    tpu.vector_store %arg5[%c0_17, %c0_18], %47 {strides = array<i32>} : memref<128x128xf32, #tpu.memory_space<vmem>>, vector<128x128xf32>,
    return
  }
  func.func @transform_0(%arg0: i32) -> (i32, i32) {
    %c0_i32 = arith.constant 0 : i32
    %c0_i32_0 = arith.constant 0 : i32
    return %arg0, %c0_i32 : i32, i32
  }
  func.func @transform_1(%arg0: i32) -> (i32, i32) {
    %c0_i32 = arith.constant 0 : i32
    %c0_i32_0 = arith.constant 0 : i32
    %c0_i32_1 = arith.constant 0 : i32
    return %c0_i32, %c0_i32_0 : i32, i32
  }
  func.func @transform_2(%arg0: i32) -> (i32, i32) {
    %c0_i32 = arith.constant 0 : i32
    %c0_i32_0 = arith.constant 0 : i32
    %c0_i32_1 = arith.constant 0 : i32
    return %c0_i32, %c0_i32_0 : i32, i32
  }
  func.func @transform_3(%arg0: i32) -> (i32, i32) {
    %c0_i32 = arith.constant 0 : i32
    %c0_i32_0 = arith.constant 0 : i32
    %c0_i32_1 = arith.constant 0 : i32
    return %c0_i32, %c0_i32_0 : i32, i32
  }
  func.func @transform_4(%arg0: i32) -> (i32, i32) {
    %c0_i32 = arith.constant 0 : i32
    %c0_i32_0 = arith.constant 0 : i32
    return %arg0, %c0_i32 : i32, i32
  }
}

</mosaic_0001>

<llo_original>
// kernel: conv_block1_forward.2
$region0: #{conv_block1_forward.2}
  #allocation0 [shape = 'u32[]', space=smem, size = 0x4, offset = 0x4, fixed_abs, tag = 'smem constant byte address 0x4 - core index']
  #allocation1 [shape = 'u32[144,128]{1,0:T(1,128)}', space=vmem, size = 0x12000, scoped, tag = 'internal scratch']
  %s0 = inlined_call_operand.vmem [shape: bf16[256,18], index: 0, kind: input, shape index: {}]
  %s1 = inlined_call_operand.vmem [shape: bf16[18,128], index: 1, kind: input, shape index: {}]
  %s2 = inlined_call_operand.vmem [shape: bf16[9,128], index: 2, kind: input, shape index: {}]
  %s3 = inlined_call_operand.vmem [shape: f32[8,128], index: 3, kind: input, shape index: {}]
  %s4 = inlined_call_operand.vmem [shape: bf16[256,128], index: 4, kind: output, shape index: {}]
  %s5 = sld [smem:[#allocation0]]
  $region26: #{conv_block1_forward.2} parent=0
    _
  %s7 = ssub.s32 1, %s5
  %s8 = scalar_select 0, %s7, %s5
  // Predicated region
  $region2: #{conv_block1_forward.2} parent=0 // pred_check
    _
  $region3: #{conv_block1_forward.2} parent=0 // pred_check_branch
    %10 = sbr.rel (0) target = $region5
  $region4: #{conv_block1_forward.2} parent=0 // pred_region
    _
  $region5: #{conv_block1_forward.2} parent=0 // pred_fallthru
    _
  // Predicated region
  $region6: #{conv_block1_forward.2} parent=0 // pred_check
    _
  $region7: #{conv_block1_forward.2} parent=0 // pred_check_branch
    %12 = sbr.rel (0) target = $region9
  $region8: #{conv_block1_forward.2} parent=0 // pred_region
    _
  $region9: #{conv_block1_forward.2} parent=0 // pred_fallthru
    _
  // Predicated region
  $region10: #{conv_block1_forward.2} parent=0 // pred_check
    _
  $region11: #{conv_block1_forward.2} parent=0 // pred_check_branch
    %14 = sbr.rel (0) target = $region13
  $region12: #{conv_block1_forward.2} parent=0 // pred_region
    _
  $region13: #{conv_block1_forward.2} parent=0 // pred_fallthru
    _
  // Predicated region
  $region14: #{conv_block1_forward.2} parent=0 // pred_check
    _
  $region15: #{conv_block1_forward.2} parent=0 // pred_check_branch
    %16 = sbr.rel (0) target = $region17
  $region16: #{conv_block1_forward.2} parent=0 // pred_region
    _
  $region17: #{conv_block1_forward.2} parent=0 // pred_fallthru
    _
  %v18 = vld [vmem:[%s0] sm:$0xf]
  %v19 = vld [vmem:[%s0 + $0x4] sm:$0xf]
  %v20 = vld [vmem:[%s0 + $0x8] sm:$0xf]
  %v21 = vld [vmem:[%s0 + $0xc] sm:$0xf]
  %v22 = vld [vmem:[%s0 + $0x10] sm:$0xf]
  %v23 = vld [vmem:[%s0 + $0x14] sm:$0xf]
  %v24 = vld [vmem:[%s0 + $0x18] sm:$0xf]
  %v25 = vld [vmem:[%s0 + $0x1c] sm:$0xf]
  %v26 = vld [vmem:[%s0 + $0x20] sm:$0xf]
  %v27 = vld [vmem:[%s0 + $0x24] sm:$0xf]
  %v28 = vld [vmem:[%s0 + $0x28] sm:$0xf]
  %v29 = vld [vmem:[%s0 + $0x2c] sm:$0xf]
  %v30 = vld [vmem:[%s0 + $0x30] sm:$0xf]
  %v31 = vld [vmem:[%s0 + $0x34] sm:$0xf]
  %v32 = vld [vmem:[%s0 + $0x38] sm:$0xf]
  %v33 = vld [vmem:[%s0 + $0x3c] sm:$0xf]
  %v34 = vld [vmem:[%s0 + $0x40] sm:$0xf]
  %v35 = vld [vmem:[%s0 + $0x44] sm:$0xf]
  %v36 = vld [vmem:[%s0 + $0x48] sm:$0xf]
  %v37 = vld [vmem:[%s0 + $0x4c] sm:$0xf]
  %v38 = vld [vmem:[%s0 + $0x50] sm:$0xf]
  %v39 = vld [vmem:[%s0 + $0x54] sm:$0xf]
  %v40 = vld [vmem:[%s0 + $0x58] sm:$0xf]
  %v41 = vld [vmem:[%s0 + $0x5c] sm:$0xf]
  %v42 = vld [vmem:[%s0 + $0x60] sm:$0xf]
  %v43 = vld [vmem:[%s0 + $0x64] sm:$0xf]
  %v44 = vld [vmem:[%s0 + $0x68] sm:$0xf]
  %v45 = vld [vmem:[%s0 + $0x6c] sm:$0xf]
  %v46 = vld [vmem:[%s0 + $0x70] sm:$0xf]
  %v47 = vld [vmem:[%s0 + $0x74] sm:$0xf]
  %v48 = vld [vmem:[%s0 + $0x78] sm:$0xf]
  %v49 = vld [vmem:[%s0 + $0x7c] sm:$0xf]
  %v50 = vld [vmem:[%s1] sm:$0xf]
  %v51 = vld [vmem:[%s1 + $0x4] sm:$0xf]
  %v52 = vld [vmem:[%s1 + $0x8] sm:$0x1]
  %v53 = vld [vmem:[%s2] sm:$0xf]
  %v54 = vld [vmem:[%s2 + $0x4] sm:$0x1]
  %v87 = vunpack.c.l.b16 %v18
  %v88 = vunpack.c.l.b16 %v19
  %v89 = vunpack.c.l.b16 %v20
  %v90 = vunpack.c.l.b16 %v21
  %v91 = vunpack.c.l.b16 %v22
  %v92 = vunpack.c.l.b16 %v23
  %v93 = vunpack.c.l.b16 %v24
  %v94 = vunpack.c.l.b16 %v25
  %v95 = vunpack.c.l.b16 %v26
  %v96 = vunpack.c.l.b16 %v27
  %v97 = vunpack.c.l.b16 %v28
  %v98 = vunpack.c.l.b16 %v29
  %v99 = vunpack.c.l.b16 %v30
  %v100 = vunpack.c.l.b16 %v31
  %v101 = vunpack.c.l.b16 %v32
  %v102 = vunpack.c.l.b16 %v33
  %v103 = vunpack.c.l.b16 %v34
  %v104 = vunpack.c.l.b16 %v35
  %v105 = vunpack.c.l.b16 %v36
  %v106 = vunpack.c.l.b16 %v37
  %v107 = vunpack.c.l.b16 %v38
  %v108 = vunpack.c.l.b16 %v39
  %v109 = vunpack.c.l.b16 %v40
  %v110 = vunpack.c.l.b16 %v41
  %v111 = vunpack.c.l.b16 %v42
  %v112 = vunpack.c.l.b16 %v43
  %v113 = vunpack.c.l.b16 %v44
  %v114 = vunpack.c.l.b16 %v45
  %v115 = vunpack.c.l.b16 %v46
  %v116 = vunpack.c.l.b16 %v47
  %v117 = vunpack.c.l.b16 %v48
  %v118 = vunpack.c.l.b16 %v49
  %v119 = vpack.c.b16 %v88, %v87
  %v120 = vpack.c.b16 %v90, %v89
  %v121 = vpack.c.b16 %v92, %v91
  %v122 = vpack.c.b16 %v94, %v93
  %v123 = vpack.c.b16 %v96, %v95
  %v124 = vpack.c.b16 %v98, %v97
  %v125 = vpack.c.b16 %v100, %v99
  %v126 = vpack.c.b16 %v102, %v101
  %v127 = vpack.c.b16 %v104, %v103
  %v128 = vpack.c.b16 %v106, %v105
  %v129 = vpack.c.b16 %v108, %v107
  %v130 = vpack.c.b16 %v110, %v109
  %v131 = vpack.c.b16 %v112, %v111
  %v132 = vpack.c.b16 %v114, %v113
  %v133 = vpack.c.b16 %v116, %v115
  %v134 = vpack.c.b16 %v118, %v117
  %v137 = vunpack.c.l.b16 %v53
  %v138 = vunpack.c.l.b16 %v54
  %v139 = vpack.c.b16 %v138, %v137
  %vm140 = vcmask 72704
  %v142 = vsel %vm140, %v119, 0
  %v145 = vsel %vm140, %v120, 0
  %v148 = vsel %vm140, %v121, 0
  %v151 = vsel %vm140, %v122, 0
  %v154 = vsel %vm140, %v123, 0
  %v157 = vsel %vm140, %v124, 0
  %v160 = vsel %vm140, %v125, 0
  %v163 = vsel %vm140, %v126, 0
  %v166 = vsel %vm140, %v127, 0
  %v169 = vsel %vm140, %v128, 0
  %v172 = vsel %vm140, %v129, 0
  %v175 = vsel %vm140, %v130, 0
  %v178 = vsel %vm140, %v131, 0
  %v181 = vsel %vm140, %v132, 0
  %v184 = vsel %vm140, %v133, 0
  %v187 = vsel %vm140, %v134, 0
  %vm189 = vcmask 1043456
  %vm190 = vcmask 1044480
  %v191 = vsel %vm189, 4294967295, 65535
  %v192 = vsel %vm190, %v191, 0
  %v194 = vand.u32 %v139, %v192
  %196 = vmatprep.subr.bf16.mxu0 0
  %197 = vmatpush1.bf16.msra.mxu0 %v194
  %198 = vmatprep.subr.bf16.mxu0 0
  %199 = vmatpush1.bf16.msra.mxu0 0
  %200 = vmatprep.subr.bf16.mxu0 0
  %201 = vmatpush1.bf16.msra.mxu0 0
  %202 = vmatprep.subr.bf16.mxu0 0
  %203 = vmatpush1.bf16.msra.mxu0 0
  %204 = vmatprep.subr.bf16.mxu0 0
  %205 = vmatpush1.bf16.msra.mxu0 0
  %206 = vmatprep.subr.bf16.mxu0 0
  %207 = vmatpush1.bf16.msra.mxu0 0
  %208 = vmatprep.subr.bf16.mxu0 0
  %209 = vmatpush1.bf16.msra.mxu0 0
  %210 = vmatprep.subr.bf16.mxu0 0
  %211 = vmatpush1.bf16.msra.mxu0 0
  %212 = vmatprep.subr.bf16.mxu0 0
  %213 = vmatpush1.bf16.msra.mxu0 0
  %214 = vmatprep.subr.bf16.mxu0 0
  %215 = vmatpush1.bf16.msra.mxu0 0
  %216 = vmatprep.subr.bf16.mxu0 0
  %217 = vmatpush1.bf16.msra.mxu0 0
  %218 = vmatprep.subr.bf16.mxu0 0
  %219 = vmatpush1.bf16.msra.mxu0 0
  %220 = vmatprep.subr.bf16.mxu0 0
  %221 = vmatpush1.bf16.msra.mxu0 0
  %222 = vmatprep.subr.bf16.mxu0 0
  %223 = vmatpush1.bf16.msra.mxu0 0
  %224 = vmatprep.subr.bf16.mxu0 0
  %225 = vmatpush1.bf16.msra.mxu0 0
  %226 = vmatprep.subr.bf16.mxu0 0
  %227 = vmatpush1.bf16.msra.mxu0 0
  %228 = vmatprep.mubr.bf16.mxu0 0
  %229 = vmatmul.mubr.bf16.gmra.mrb[0].mxu0 %v142
  %v230 = vpop.f32.mrb[0].mxu0
  %v231 = vadd.f32 0.0, %v230
  %v232 = vpop.f32.mrb[0].mxu0
  %v233 = vpop.f32.mrb[0].mxu0
  %v234 = vadd.f32 0.0, %v233
  %v235 = vpop.f32.mrb[0].mxu0
  %236 = vmatprep.mubr.bf16.mxu0 0
  %237 = vmatmul.mubr.bf16.gmra.mrb[0].mxu0 %v145
  %v238 = vpop.f32.mrb[0].mxu0
  %v239 = vadd.f32 0.0, %v238
  %v240 = vpop.f32.mrb[0].mxu0
  %v241 = vpop.f32.mrb[0].mxu0
  %v242 = vadd.f32 0.0, %v241
  %v243 = vpop.f32.mrb[0].mxu0
  %244 = vmatprep.mubr.bf16.mxu0 0
  %245 = vmatmul.mubr.bf16.gmra.mrb[0].mxu0 %v148
  %v246 = vpop.f32.mrb[0].mxu0
  %v247 = vadd.f32 0.0, %v246
  %v248 = vpop.f32.mrb[0].mxu0
  %v249 = vpop.f32.mrb[0].mxu0
  %v250 = vadd.f32 0.0, %v249
  %v251 = vpop.f32.mrb[0].mxu0
  %252 = vmatprep.mubr.bf16.mxu0 0
  %253 = vmatmul.mubr.bf16.gmra.mrb[0].mxu0 %v151
  %v254 = vpop.f32.mrb[0].mxu0
  %v255 = vadd.f32 0.0, %v254
  %v256 = vpop.f32.mrb[0].mxu0
  %v257 = vpop.f32.mrb[0].mxu0
  %v258 = vadd.f32 0.0, %v257
  %v259 = vpop.f32.mrb[0].mxu0
  %260 = vmatprep.mubr.bf16.mxu0 0
  %261 = vmatmul.mubr.bf16.gmra.mrb[0].mxu0 %v154
  %v262 = vpop.f32.mrb[0].mxu0
  %v263 = vadd.f32 0.0, %v262
  %v264 = vpop.f32.mrb[0].mxu0
  %v265 = vpop.f32.mrb[0].mxu0
  %v266 = vadd.f32 0.0, %v265
  %v267 = vpop.f32.mrb[0].mxu0
  %268 = vmatprep.mubr.bf16.mxu0 0
  %269 = vmatmul.mubr.bf16.gmra.mrb[0].mxu0 %v157
  %v270 = vpop.f32.mrb[0].mxu0
  %v271 = vadd.f32 0.0, %v270
  %v272 = vpop.f32.mrb[0].mxu0
  %v273 = vpop.f32.mrb[0].mxu0
  %v274 = vadd.f32 0.0, %v273
  %v275 = vpop.f32.mrb[0].mxu0
  %276 = vmatprep.mubr.bf16.mxu0 0
  %277 = vmatmul.mubr.bf16.gmra.mrb[0].mxu0 %v160
  %v278 = vpop.f32.mrb[0].mxu0
  %v279 = vadd.f32 0.0, %v278
  %v280 = vpop.f32.mrb[0].mxu0
  %v281 = vpop.f32.mrb[0].mxu0
  %v282 = vadd.f32 0.0, %v281
  %v283 = vpop.f32.mrb[0].mxu0
  %284 = vmatprep.mubr.bf16.mxu0 0
  %285 = vmatmul.mubr.bf16.gmra.mrb[0].mxu0 %v163
  %v286 = vpop.f32.mrb[0].mxu0
  %v287 = vadd.f32 0.0, %v286
  %v288 = vpop.f32.mrb[0].mxu0
  %v289 = vpop.f32.mrb[0].mxu0
  %v290 = vadd.f32 0.0, %v289
  %v291 = vpop.f32.mrb[0].mxu0
  %292 = vmatprep.mubr.bf16.mxu0 0
  %293 = vmatmul.mubr.bf16.gmra.mrb[0].mxu0 %v166
  %v294 = vpop.f32.mrb[0].mxu0
  %v295 = vadd.f32 0.0, %v294
  %v296 = vpop.f32.mrb[0].mxu0
  %v297 = vpop.f32.mrb[0].mxu0
  %v298 = vadd.f32 0.0, %v297
  %v299 = vpop.f32.mrb[0].mxu0
  %300 = vmatprep.mubr.bf16.mxu0 0
  %301 = vmatmul.mubr.bf16.gmra.mrb[0].mxu0 %v169
  %v302 = vpop.f32.mrb[0].mxu0
  %v303 = vadd.f32 0.0, %v302
  %v304 = vpop.f32.mrb[0].mxu0
  %v305 = vpop.f32.mrb[0].mxu0
  %v306 = vadd.f32 0.0, %v305
  %v307 = vpop.f32.mrb[0].mxu0
  %308 = vmatprep.mubr.bf16.mxu0 0
  %309 = vmatmul.mubr.bf16.gmra.mrb[0].mxu0 %v172
  %v310 = vpop.f32.mrb[0].mxu0
  %v311 = vadd.f32 0.0, %v310
  %v312 = vpop.f32.mrb[0].mxu0
  %v313 = vpop.f32.mrb[0].mxu0
  %v314 = vadd.f32 0.0, %v313
  %v315 = vpop.f32.mrb[0].mxu0
  %316 = vmatprep.mubr.bf16.mxu0 0
  %317 = vmatmul.mubr.bf16.gmra.mrb[0].mxu0 %v175
  %v318 = vpop.f32.mrb[0].mxu0
  %v319 = vadd.f32 0.0, %v318
  %v320 = vpop.f32.mrb[0].mxu0
  %v321 = vpop.f32.mrb[0].mxu0
  %v322 = vadd.f32 0.0, %v321
  %v323 = vpop.f32.mrb[0].mxu0
  %324 = vmatprep.mubr.bf16.mxu0 0
  %325 = vmatmul.mubr.bf16.gmra.mrb[0].mxu0 %v178
  %v326 = vpop.f32.mrb[0].mxu0
  %v327 = vadd.f32 0.0, %v326
  %v328 = vpop.f32.mrb[0].mxu0
  %v329 = vpop.f32.mrb[0].mxu0
  %v330 = vadd.f32 0.0, %v329
  %v331 = vpop.f32.mrb[0].mxu0
  %332 = vmatprep.mubr.bf16.mxu0 0
  %333 = vmatmul.mubr.bf16.gmra.mrb[0].mxu0 %v181
  %v334 = vpop.f32.mrb[0].mxu0
  %v335 = vadd.f32 0.0, %v334
  %v336 = vpop.f32.mrb[0].mxu0
  %v337 = vpop.f32.mrb[0].mxu0
  %v338 = vadd.f32 0.0, %v337
  %v339 = vpop.f32.mrb[0].mxu0
  %340 = vmatprep.mubr.bf16.mxu0 0
  %341 = vmatmul.mubr.bf16.gmra.mrb[0].mxu0 %v184
  %v342 = vpop.f32.mrb[0].mxu0
  %v343 = vadd.f32 0.0, %v342
  %v344 = vpop.f32.mrb[0].mxu0
  %v345 = vpop.f32.mrb[0].mxu0
  %v346 = vadd.f32 0.0, %v345
  %v347 = vpop.f32.mrb[0].mxu0
  %348 = vmatprep.mubr.bf16.mxu0 0
  %349 = vmatmul.mubr.bf16.gmra.mrb[0].mxu0 %v187
  %v350 = vpop.f32.mrb[0].mxu0
  %v351 = vadd.f32 0.0, %v350
  %v352 = vpop.f32.mrb[0].mxu0
  %v353 = vpop.f32.mrb[0].mxu0
  %v354 = vadd.f32 0.0, %v353
  %v355 = vpop.f32.mrb[0].mxu0
  %356 = vdwg.mxu0
  %vm389 = vcmask 1046528
  %v390 = vrot.slane %v231, 1
  %v391 = vrot.slane %v234, 1
  %v392 = vsel %vm389, %v390, %v391
  %v393 = vrot.slane %v239, 1
  %v394 = vsel %vm389, %v391, %v393
  %v395 = vrot.slane %v242, 1
  %v396 = vsel %vm389, %v393, %v395
  %v397 = vrot.slane %v247, 1
  %v398 = vsel %vm389, %v395, %v397
  %v399 = vrot.slane %v250, 1
  %v400 = vsel %vm389, %v397, %v399
  %v401 = vrot.slane %v255, 1
  %v402 = vsel %vm389, %v399, %v401
  %v403 = vrot.slane %v258, 1
  %v404 = vsel %vm389, %v401, %v403
  %v405 = vrot.slane %v263, 1
  %v406 = vsel %vm389, %v403, %v405
  %v407 = vrot.slane %v266, 1
  %v408 = vsel %vm389, %v405, %v407
  %v409 = vrot.slane %v271, 1
  %v410 = vsel %vm389, %v407, %v409
  %v411 = vrot.slane %v274, 1
  %v412 = vsel %vm389, %v409, %v411
  %v413 = vrot.slane %v279, 1
  %v414 = vsel %vm389, %v411, %v413
  %v415 = vrot.slane %v282, 1
  %v416 = vsel %vm389, %v413, %v415
  %v417 = vrot.slane %v287, 1
  %v418 = vsel %vm389, %v415, %v417
  %v419 = vrot.slane %v290, 1
  %v420 = vsel %vm389, %v417, %v419
  %v421 = vrot.slane %v295, 1
  %v422 = vsel %vm389, %v419, %v421
  %v423 = vrot.slane %v298, 1
  %v424 = vsel %vm389, %v421, %v423
  %v425 = vrot.slane %v303, 1
  %v426 = vsel %vm389, %v423, %v425
  %v427 = vrot.slane %v306, 1
  %v428 = vsel %vm389, %v425, %v427
  %v429 = vrot.slane %v311, 1
  %v430 = vsel %vm389, %v427, %v429
  %v431 = vrot.slane %v314, 1
  %v432 = vsel %vm389, %v429, %v431
  %v433 = vrot.slane %v319, 1
  %v434 = vsel %vm389, %v431, %v433
  %v435 = vrot.slane %v322, 1
  %v436 = vsel %vm389, %v433, %v435
  %v437 = vrot.slane %v327, 1
  %v438 = vsel %vm389, %v435, %v437
  %v439 = vrot.slane %v330, 1
  %v440 = vsel %vm389, %v437, %v439
  %v441 = vrot.slane %v335, 1
  %v442 = vsel %vm389, %v439, %v441
  %v443 = vrot.slane %v338, 1
  %v444 = vsel %vm389, %v441, %v443
  %v445 = vrot.slane %v343, 1
  %v446 = vsel %vm389, %v443, %v445
  %v447 = vrot.slane %v346, 1
  %v448 = vsel %vm389, %v445, %v447
  %v449 = vrot.slane %v351, 1
  %v450 = vsel %vm389, %v447, %v449
  %v451 = vrot.slane %v354, 1
  %v452 = vsel %vm389, %v449, %v451
  %v486 = vsel %vm389, %v451, %v390
  %v490 = vunpack.c.l.b16 %v50
  %v491 = vunpack.c.l.b16 %v51
  %v492 = vunpack.c.l.b16 %v52
  %v493 = vpack.c.b16 %v491, %v490
  %v494 = vpack.c.b16 %v492, %v492
  %vm496 = vcmask 146432
  %v497 = vsel %vm496, %v119, 0
  %v499 = vsel %vm496, %v120, 0
  %v501 = vsel %vm496, %v121, 0
  %v503 = vsel %vm496, %v122, 0
  %v505 = vsel %vm496, %v123, 0
  %v507 = vsel %vm496, %v124, 0
  %v509 = vsel %vm496, %v125, 0
  %v511 = vsel %vm496, %v126, 0
  %v513 = vsel %vm496, %v127, 0
  %v515 = vsel %vm496, %v128, 0
  %v517 = vsel %vm496, %v129, 0
  %v519 = vsel %vm496, %v130, 0
  %v521 = vsel %vm496, %v131, 0
  %v523 = vsel %vm496, %v132, 0
  %v525 = vsel %vm496, %v133, 0
  %v527 = vsel %vm496, %v134, 0
  %vm529 = vcmask 1040384
  %v531 = vsel %vm529, %v494, 0
  %533 = vmatprep.subr.bf16.mxu0 0
  %534 = vmatpush1.bf16.msra.mxu0 %v493
  %535 = vmatprep.subr.bf16.mxu0 0
  %536 = vmatpush1.bf16.msra.mxu0 %v531
  %537 = vmatprep.subr.bf16.mxu0 0
  %538 = vmatpush1.bf16.msra.mxu0 0
  %539 = vmatprep.subr.bf16.mxu0 0
  %540 = vmatpush1.bf16.msra.mxu0 0
  %541 = vmatprep.subr.bf16.mxu0 0
  %542 = vmatpush1.bf16.msra.mxu0 0
  %543 = vmatprep.subr.bf16.mxu0 0
  %544 = vmatpush1.bf16.msra.mxu0 0
  %545 = vmatprep.subr.bf16.mxu0 0
  %546 = vmatpush1.bf16.msra.mxu0 0
  %547 = vmatprep.subr.bf16.mxu0 0
  %548 = vmatpush1.bf16.msra.mxu0 0
  %549 = vmatprep.subr.bf16.mxu0 0
  %550 = vmatpush1.bf16.msra.mxu0 0
  %551 = vmatprep.subr.bf16.mxu0 0
  %552 = vmatpush1.bf16.msra.mxu0 0
  %553 = vmatprep.subr.bf16.mxu0 0
  %554 = vmatpush1.bf16.msra.mxu0 0
  %555 = vmatprep.subr.bf16.mxu0 0
  %556 = vmatpush1.bf16.msra.mxu0 0
  %557 = vmatprep.subr.bf16.mxu0 0
  %558 = vmatpush1.bf16.msra.mxu0 0
  %559 = vmatprep.subr.bf16.mxu0 0
  %560 = vmatpush1.bf16.msra.mxu0 0
  %561 = vmatprep.subr.bf16.mxu0 0
  %562 = vmatpush1.bf16.msra.mxu0 0
  %563 = vmatprep.subr.bf16.mxu0 0
  %564 = vmatpush1.bf16.msra.mxu0 0
  %565 = vmatprep.mubr.bf16.mxu0 0
  %566 = vmatmul.mubr.bf16.gmra.mrb[0].mxu0 %v497
  %v567 = vpop.f32.mrb[0].mxu0
  %v568 = vadd.f32 %v392, %v567
  %v569 = vpop.f32.mrb[0].mxu0
  %v570 = vpop.f32.mrb[0].mxu0
  %v571 = vadd.f32 %v394, %v570
  %v572 = vpop.f32.mrb[0].mxu0
  %573 = vmatprep.mubr.bf16.mxu0 0
  %574 = vmatmul.mubr.bf16.gmra.mrb[0].mxu0 %v499
  %v575 = vpop.f32.mrb[0].mxu0
  %v576 = vadd.f32 %v396, %v575
  %v577 = vpop.f32.mrb[0].mxu0
  %v578 = vpop.f32.mrb[0].mxu0
  %v579 = vadd.f32 %v398, %v578
  %v580 = vpop.f32.mrb[0].mxu0
  %581 = vmatprep.mubr.bf16.mxu0 0
  %582 = vmatmul.mubr.bf16.gmra.mrb[0].mxu0 %v501
  %v583 = vpop.f32.mrb[0].mxu0
  %v584 = vadd.f32 %v400, %v583
  %v585 = vpop.f32.mrb[0].mxu0
  %v586 = vpop.f32.mrb[0].mxu0
  %v587 = vadd.f32 %v402, %v586
  %v588 = vpop.f32.mrb[0].mxu0
  %589 = vmatprep.mubr.bf16.mxu0 0
  %590 = vmatmul.mubr.bf16.gmra.mrb[0].mxu0 %v503
  %v591 = vpop.f32.mrb[0].mxu0
  %v592 = vadd.f32 %v404, %v591
  %v593 = vpop.f32.mrb[0].mxu0
  %v594 = vpop.f32.mrb[0].mxu0
  %v595 = vadd.f32 %v406, %v594
  %v596 = vpop.f32.mrb[0].mxu0
  %597 = vmatprep.mubr.bf16.mxu0 0
  %598 = vmatmul.mubr.bf16.gmra.mrb[0].mxu0 %v505
  %v599 = vpop.f32.mrb[0].mxu0
  %v600 = vadd.f32 %v408, %v599
  %v601 = vpop.f32.mrb[0].mxu0
  %v602 = vpop.f32.mrb[0].mxu0
  %v603 = vadd.f32 %v410, %v602
  %v604 = vpop.f32.mrb[0].mxu0
  %605 = vmatprep.mubr.bf16.mxu0 0
  %606 = vmatmul.mubr.bf16.gmra.mrb[0].mxu0 %v507
  %v607 = vpop.f32.mrb[0].mxu0
  %v608 = vadd.f32 %v412, %v607
  %v609 = vpop.f32.mrb[0].mxu0
  %v610 = vpop.f32.mrb[0].mxu0
  %v611 = vadd.f32 %v414, %v610
  %v612 = vpop.f32.mrb[0].mxu0
  %613 = vmatprep.mubr.bf16.mxu0 0
  %614 = vmatmul.mubr.bf16.gmra.mrb[0].mxu0 %v509
  %v615 = vpop.f32.mrb[0].mxu0
  %v616 = vadd.f32 %v416, %v615
  %v617 = vpop.f32.mrb[0].mxu0
  %v618 = vpop.f32.mrb[0].mxu0
  %v619 = vadd.f32 %v418, %v618
  %v620 = vpop.f32.mrb[0].mxu0
  %621 = vmatprep.mubr.bf16.mxu0 0
  %622 = vmatmul.mubr.bf16.gmra.mrb[0].mxu0 %v511
  %v623 = vpop.f32.mrb[0].mxu0
  %v624 = vadd.f32 %v420, %v623
  %v625 = vpop.f32.mrb[0].mxu0
  %v626 = vpop.f32.mrb[0].mxu0
  %v627 = vadd.f32 %v422, %v626
  %v628 = vpop.f32.mrb[0].mxu0
  %629 = vmatprep.mubr.bf16.mxu0 0
  %630 = vmatmul.mubr.bf16.gmra.mrb[0].mxu0 %v513
  %v631 = vpop.f32.mrb[0].mxu0
  %v632 = vadd.f32 %v424, %v631
  %v633 = vpop.f32.mrb[0].mxu0
  %v634 = vpop.f32.mrb[0].mxu0
  %v635 = vadd.f32 %v426, %v634
  %v636 = vpop.f32.mrb[0].mxu0
  %637 = vmatprep.mubr.bf16.mxu0 0
  %638 = vmatmul.mubr.bf16.gmra.mrb[0].mxu0 %v515
  %v639 = vpop.f32.mrb[0].mxu0
  %v640 = vadd.f32 %v428, %v639
  %v641 = vpop.f32.mrb[0].mxu0
  %v642 = vpop.f32.mrb[0].mxu0
  %v643 = vadd.f32 %v430, %v642
  %v644 = vpop.f32.mrb[0].mxu0
  %645 = vmatprep.mubr.bf16.mxu0 0
  %646 = vmatmul.mubr.bf16.gmra.mrb[0].mxu0 %v517
  %v647 = vpop.f32.mrb[0].mxu0
  %v648 = vadd.f32 %v432, %v647
  %v649 = vpop.f32.mrb[0].mxu0
  %v650 = vpop.f32.mrb[0].mxu0
  %v651 = vadd.f32 %v434, %v650
  %v652 = vpop.f32.mrb[0].mxu0
  %653 = vmatprep.mubr.bf16.mxu0 0
  %654 = vmatmul.mubr.bf16.gmra.mrb[0].mxu0 %v519
  %v655 = vpop.f32.mrb[0].mxu0
  %v656 = vadd.f32 %v436, %v655
  %v657 = vpop.f32.mrb[0].mxu0
  %v658 = vpop.f32.mrb[0].mxu0
  %v659 = vadd.f32 %v438, %v658
  %v660 = vpop.f32.mrb[0].mxu0
  %661 = vmatprep.mubr.bf16.mxu0 0
  %662 = vmatmul.mubr.bf16.gmra.mrb[0].mxu0 %v521
  %v663 = vpop.f32.mrb[0].mxu0
  %v664 = vadd.f32 %v440, %v663
  %v665 = vpop.f32.mrb[0].mxu0
  %v666 = vpop.f32.mrb[0].mxu0
  %v667 = vadd.f32 %v442, %v666
  %v668 = vpop.f32.mrb[0].mxu0
  %669 = vmatprep.mubr.bf16.mxu0 0
  %670 = vmatmul.mubr.bf16.gmra.mrb[0].mxu0 %v523
  %v671 = vpop.f32.mrb[0].mxu0
  %v672 = vadd.f32 %v444, %v671
  %v673 = vpop.f32.mrb[0].mxu0
  %v674 = vpop.f32.mrb[0].mxu0
  %v675 = vadd.f32 %v446, %v674
  %v676 = vpop.f32.mrb[0].mxu0
  %677 = vmatprep.mubr.bf16.mxu0 0
  %678 = vmatmul.mubr.bf16.gmra.mrb[0].mxu0 %v525
  %v679 = vpop.f32.mrb[0].mxu0
  %v680 = vadd.f32 %v448, %v679
  %v681 = vpop.f32.mrb[0].mxu0
  %v682 = vpop.f32.mrb[0].mxu0
  %v683 = vadd.f32 %v450, %v682
  %v684 = vpop.f32.mrb[0].mxu0
  %685 = vmatprep.mubr.bf16.mxu0 0
  %686 = vmatmul.mubr.bf16.gmra.mrb[0].mxu0 %v527
  %v687 = vpop.f32.mrb[0].mxu0
  %v688 = vadd.f32 %v452, %v687
  %v689 = vpop.f32.mrb[0].mxu0
  %v690 = vpop.f32.mrb[0].mxu0
  %v691 = vadd.f32 %v486, %v690
  %v692 = vpop.f32.mrb[0].mxu0
  %693 = vdwg.mxu0
  %v694 = vld [vmem:[%s3] sm:$0xff]
  %v695 = vlaneseq
  %v696 = vshrl.u32 %v695, 7
  %v697 = vsub.s32 0, %v696
  %v698 = vrot.slane %v694, %v697
  %v699 = vadd.f32 %v568, %v698
  %v700 = vadd.f32 %v571, %v698
  %v701 = vadd.f32 %v576, %v698
  %v702 = vadd.f32 %v579, %v698
  %v703 = vadd.f32 %v584, %v698
  %v704 = vadd.f32 %v587, %v698
  %v705 = vadd.f32 %v592, %v698
  %v706 = vadd.f32 %v595, %v698
  %v707 = vadd.f32 %v600, %v698
  %v708 = vadd.f32 %v603, %v698
  %v709 = vadd.f32 %v608, %v698
  %v710 = vadd.f32 %v611, %v698
  %v711 = vadd.f32 %v616, %v698
  %v712 = vadd.f32 %v619, %v698
  %v713 = vadd.f32 %v624, %v698
  %v714 = vadd.f32 %v627, %v698
  %v715 = vadd.f32 %v632, %v698
  %v716 = vadd.f32 %v635, %v698
  %v717 = vadd.f32 %v640, %v698
  %v718 = vadd.f32 %v643, %v698
  %v719 = vadd.f32 %v648, %v698
  %v720 = vadd.f32 %v651, %v698
  %v721 = vadd.f32 %v656, %v698
  %v722 = vadd.f32 %v659, %v698
  %v723 = vadd.f32 %v664, %v698
  %v724 = vadd.f32 %v667, %v698
  %v725 = vadd.f32 %v672, %v698
  %v726 = vadd.f32 %v675, %v698
  %v727 = vadd.f32 %v680, %v698
  %v728 = vadd.f32 %v683, %v698
  %v729 = vadd.f32 %v688, %v698
  %v730 = vadd.f32 %v691, %v698
  %731 = vadd.xlane.f32.xlu0 %v699
  %v732 = vpop.xlane.xlu0 %731
  %733 = vadd.xlane.f32.xlu0 %v700
  %v734 = vpop.xlane.xlu0 %733
  %735 = vadd.xlane.f32.xlu0 %v701
  %v736 = vpop.xlane.xlu0 %735
  %737 = vadd.xlane.f32.xlu0 %v702
  %v738 = vpop.xlane.xlu0 %737
  %739 = vadd.xlane.f32.xlu0 %v703
  %v740 = vpop.xlane.xlu0 %739
  %741 = vadd.xlane.f32.xlu0 %v704
  %v742 = vpop.xlane.xlu0 %741
  %743 = vadd.xlane.f32.xlu0 %v705
  %v744 = vpop.xlane.xlu0 %743
  %745 = vadd.xlane.f32.xlu0 %v706
  %v746 = vpop.xlane.xlu0 %745
  %747 = vadd.xlane.f32.xlu0 %v707
  %v748 = vpop.xlane.xlu0 %747
  %749 = vadd.xlane.f32.xlu0 %v708
  %v750 = vpop.xlane.xlu0 %749
  %751 = vadd.xlane.f32.xlu0 %v709
  %v752 = vpop.xlane.xlu0 %751
  %753 = vadd.xlane.f32.xlu0 %v710
  %v754 = vpop.xlane.xlu0 %753
  %755 = vadd.xlane.f32.xlu0 %v711
  %v756 = vpop.xlane.xlu0 %755
  %757 = vadd.xlane.f32.xlu0 %v712
  %v758 = vpop.xlane.xlu0 %757
  %759 = vadd.xlane.f32.xlu0 %v713
  %v760 = vpop.xlane.xlu0 %759
  %761 = vadd.xlane.f32.xlu0 %v714
  %v762 = vpop.xlane.xlu0 %761
  %763 = vadd.xlane.f32.xlu0 %v715
  %v764 = vpop.xlane.xlu0 %763
  %765 = vadd.xlane.f32.xlu0 %v716
  %v766 = vpop.xlane.xlu0 %765
  %767 = vadd.xlane.f32.xlu0 %v717
  %v768 = vpop.xlane.xlu0 %767
  %769 = vadd.xlane.f32.xlu0 %v718
  %v770 = vpop.xlane.xlu0 %769
  %771 = vadd.xlane.f32.xlu0 %v719
  %v772 = vpop.xlane.xlu0 %771
  %773 = vadd.xlane.f32.xlu0 %v720
  %v774 = vpop.xlane.xlu0 %773
  %775 = vadd.xlane.f32.xlu0 %v721
  %v776 = vpop.xlane.xlu0 %775
  %777 = vadd.xlane.f32.xlu0 %v722
  %v778 = vpop.xlane.xlu0 %777
  %779 = vadd.xlane.f32.xlu0 %v723
  %v780 = vpop.xlane.xlu0 %779
  %781 = vadd.xlane.f32.xlu0 %v724
  %v782 = vpop.xlane.xlu0 %781
  %783 = vadd.xlane.f32.xlu0 %v725
  %v784 = vpop.xlane.xlu0 %783
  %785 = vadd.xlane.f32.xlu0 %v726
  %v786 = vpop.xlane.xlu0 %785
  %787 = vadd.xlane.f32.xlu0 %v727
  %v788 = vpop.xlane.xlu0 %787
  %789 = vadd.xlane.f32.xlu0 %v728
  %v790 = vpop.xlane.xlu0 %789
  %791 = vadd.xlane.f32.xlu0 %v729
  %v792 = vpop.xlane.xlu0 %791
  %793 = vadd.xlane.f32.xlu0 %v730
  %v794 = vpop.xlane.xlu0 %793
  %v795 = vmul.f32 %v732, 0.125
  %v796 = vmul.f32 %v734, 0.125
  %v797 = vmul.f32 %v736, 0.125
  %v798 = vmul.f32 %v738, 0.125
  %v799 = vmul.f32 %v740, 0.125
  %v800 = vmul.f32 %v742, 0.125
  %v801 = vmul.f32 %v744, 0.125
  %v802 = vmul.f32 %v746, 0.125
  %v803 = vmul.f32 %v748, 0.125
  %v804 = vmul.f32 %v750, 0.125
  %v805 = vmul.f32 %v752, 0.125
  %v806 = vmul.f32 %v754, 0.125
  %v807 = vmul.f32 %v756, 0.125
  %v808 = vmul.f32 %v758, 0.125
  %v809 = vmul.f32 %v760, 0.125
  %v810 = vmul.f32 %v762, 0.125
  %v811 = vmul.f32 %v764, 0.125
  %v812 = vmul.f32 %v766, 0.125
  %v813 = vmul.f32 %v768, 0.125
  %v814 = vmul.f32 %v770, 0.125
  %v815 = vmul.f32 %v772, 0.125
  %v816 = vmul.f32 %v774, 0.125
  %v817 = vmul.f32 %v776, 0.125
  %v818 = vmul.f32 %v778, 0.125
  %v819 = vmul.f32 %v780, 0.125
  %v820 = vmul.f32 %v782, 0.125
  %v821 = vmul.f32 %v784, 0.125
  %v822 = vmul.f32 %v786, 0.125
  %v823 = vmul.f32 %v788, 0.125
  %v824 = vmul.f32 %v790, 0.125
  %v825 = vmul.f32 %v792, 0.125
  %v826 = vmul.f32 %v794, 0.125
  %v827 = vmul.f32 %v699, %v699
  %v828 = vmul.f32 %v700, %v700
  %v829 = vmul.f32 %v701, %v701
  %v830 = vmul.f32 %v702, %v702
  %v831 = vmul.f32 %v703, %v703
  %v832 = vmul.f32 %v704, %v704
  %v833 = vmul.f32 %v705, %v705
  %v834 = vmul.f32 %v706, %v706
  %v835 = vmul.f32 %v707, %v707
  %v836 = vmul.f32 %v708, %v708
  %v837 = vmul.f32 %v709, %v709
  %v838 = vmul.f32 %v710, %v710
  %v839 = vmul.f32 %v711, %v711
  %v840 = vmul.f32 %v712, %v712
  %v841 = vmul.f32 %v713, %v713
  %v842 = vmul.f32 %v714, %v714
  %v843 = vmul.f32 %v715, %v715
  %v844 = vmul.f32 %v716, %v716
  %v845 = vmul.f32 %v717, %v717
  %v846 = vmul.f32 %v718, %v718
  %v847 = vmul.f32 %v719, %v719
  %v848 = vmul.f32 %v720, %v720
  %v849 = vmul.f32 %v721, %v721
  %v850 = vmul.f32 %v722, %v722
  %v851 = vmul.f32 %v723, %v723
  %v852 = vmul.f32 %v724, %v724
  %v853 = vmul.f32 %v725, %v725
  %v854 = vmul.f32 %v726, %v726
  %v855 = vmul.f32 %v727, %v727
  %v856 = vmul.f32 %v728, %v728
  %v857 = vmul.f32 %v729, %v729
  %v858 = vmul.f32 %v730, %v730
  %859 = vadd.xlane.f32.xlu0 %v827
  %v860 = vpop.xlane.xlu0 %859
  %861 = vadd.xlane.f32.xlu0 %v828
  %v862 = vpop.xlane.xlu0 %861
  %863 = vadd.xlane.f32.xlu0 %v829
  %v864 = vpop.xlane.xlu0 %863
  %865 = vadd.xlane.f32.xlu0 %v830
  %v866 = vpop.xlane.xlu0 %865
  %867 = vadd.xlane.f32.xlu0 %v831
  %v868 = vpop.xlane.xlu0 %867
  %869 = vadd.xlane.f32.xlu0 %v832
  %v870 = vpop.xlane.xlu0 %869
  %871 = vadd.xlane.f32.xlu0 %v833
  %v872 = vpop.xlane.xlu0 %871
  %873 = vadd.xlane.f32.xlu0 %v834
  %v874 = vpop.xlane.xlu0 %873
  %875 = vadd.xlane.f32.xlu0 %v835
  %v876 = vpop.xlane.xlu0 %875
  %877 = vadd.xlane.f32.xlu0 %v836
  %v878 = vpop.xlane.xlu0 %877
  %879 = vadd.xlane.f32.xlu0 %v837
  %v880 = vpop.xlane.xlu0 %879
  %881 = vadd.xlane.f32.xlu0 %v838
  %v882 = vpop.xlane.xlu0 %881
  %883 = vadd.xlane.f32.xlu0 %v839
  %v884 = vpop.xlane.xlu0 %883
  %885 = vadd.xlane.f32.xlu0 %v840
  %v886 = vpop.xlane.xlu0 %885
  %887 = vadd.xlane.f32.xlu0 %v841
  %v888 = vpop.xlane.xlu0 %887
  %889 = vadd.xlane.f32.xlu0 %v842
  %v890 = vpop.xlane.xlu0 %889
  %891 = vadd.xlane.f32.xlu0 %v843
  %v892 = vpop.xlane.xlu0 %891
  %893 = vadd.xlane.f32.xlu0 %v844
  %v894 = vpop.xlane.xlu0 %893
  %895 = vadd.xlane.f32.xlu0 %v845
  %v896 = vpop.xlane.xlu0 %895
  %897 = vadd.xlane.f32.xlu0 %v846
  %v898 = vpop.xlane.xlu0 %897
  %899 = vadd.xlane.f32.xlu0 %v847
  %v900 = vpop.xlane.xlu0 %899
  %901 = vadd.xlane.f32.xlu0 %v848
  %v902 = vpop.xlane.xlu0 %901
  %903 = vadd.xlane.f32.xlu0 %v849
  %v904 = vpop.xlane.xlu0 %903
  %905 = vadd.xlane.f32.xlu0 %v850
  %v906 = vpop.xlane.xlu0 %905
  %907 = vadd.xlane.f32.xlu0 %v851
  %v908 = vpop.xlane.xlu0 %907
  %909 = vadd.xlane.f32.xlu0 %v852
  %v910 = vpop.xlane.xlu0 %909
  %911 = vadd.xlane.f32.xlu0 %v853
  %v912 = vpop.xlane.xlu0 %911
  %913 = vadd.xlane.f32.xlu0 %v854
  %v914 = vpop.xlane.xlu0 %913
  %915 = vadd.xlane.f32.xlu0 %v855
  %v916 = vpop.xlane.xlu0 %915
  %917 = vadd.xlane.f32.xlu0 %v856
  %v918 = vpop.xlane.xlu0 %917
  %919 = vadd.xlane.f32.xlu0 %v857
  %v920 = vpop.xlane.xlu0 %919
  %921 = vadd.xlane.f32.xlu0 %v858
  %v922 = vpop.xlane.xlu0 %921
  %v923 = vmul.f32 %v860, 0.125
  %v924 = vmul.f32 %v862, 0.125
  %v925 = vmul.f32 %v864, 0.125
  %v926 = vmul.f32 %v866, 0.125
  %v927 = vmul.f32 %v868, 0.125
  %v928 = vmul.f32 %v870, 0.125
  %v929 = vmul.f32 %v872, 0.125
  %v930 = vmul.f32 %v874, 0.125
  %v931 = vmul.f32 %v876, 0.125
  %v932 = vmul.f32 %v878, 0.125
  %v933 = vmul.f32 %v880, 0.125
  %v934 = vmul.f32 %v882, 0.125
  %v935 = vmul.f32 %v884, 0.125
  %v936 = vmul.f32 %v886, 0.125
  %v937 = vmul.f32 %v888, 0.125
  %v938 = vmul.f32 %v890, 0.125
  %v939 = vmul.f32 %v892, 0.125
  %v940 = vmul.f32 %v894, 0.125
  %v941 = vmul.f32 %v896, 0.125
  %v942 = vmul.f32 %v898, 0.125
  %v943 = vmul.f32 %v900, 0.125
  %v944 = vmul.f32 %v902, 0.125
  %v945 = vmul.f32 %v904, 0.125
  %v946 = vmul.f32 %v906, 0.125
  %v947 = vmul.f32 %v908, 0.125
  %v948 = vmul.f32 %v910, 0.125
  %v949 = vmul.f32 %v912, 0.125
  %v950 = vmul.f32 %v914, 0.125
  %v951 = vmul.f32 %v916, 0.125
  %v952 = vmul.f32 %v918, 0.125
  %v953 = vmul.f32 %v920, 0.125
  %v954 = vmul.f32 %v922, 0.125
  %v955 = vmul.f32 %v795, %v795
  %v956 = vmul.f32 %v796, %v796
  %v957 = vmul.f32 %v797, %v797
  %v958 = vmul.f32 %v798, %v798
  %v959 = vmul.f32 %v799, %v799
  %v960 = vmul.f32 %v800, %v800
  %v961 = vmul.f32 %v801, %v801
  %v962 = vmul.f32 %v802, %v802
  %v963 = vmul.f32 %v803, %v803
  %v964 = vmul.f32 %v804, %v804
  %v965 = vmul.f32 %v805, %v805
  %v966 = vmul.f32 %v806, %v806
  %v967 = vmul.f32 %v807, %v807
  %v968 = vmul.f32 %v808, %v808
  %v969 = vmul.f32 %v809, %v809
  %v970 = vmul.f32 %v810, %v810
  %v971 = vmul.f32 %v811, %v811
  %v972 = vmul.f32 %v812, %v812
  %v973 = vmul.f32 %v813, %v813
  %v974 = vmul.f32 %v814, %v814
  %v975 = vmul.f32 %v815, %v815
  %v976 = vmul.f32 %v816, %v816
  %v977 = vmul.f32 %v817, %v817
  %v978 = vmul.f32 %v818, %v818
  %v979 = vmul.f32 %v819, %v819
  %v980 = vmul.f32 %v820, %v820
  %v981 = vmul.f32 %v821, %v821
  %v982 = vmul.f32 %v822, %v822
  %v983 = vmul.f32 %v823, %v823
  %v984 = vmul.f32 %v824, %v824
  %v985 = vmul.f32 %v825, %v825
  %v986 = vmul.f32 %v826, %v826
  %v987 = vsub.f32 %v923, %v955
  %v988 = vsub.f32 %v924, %v956
  %v989 = vsub.f32 %v925, %v957
  %v990 = vsub.f32 %v926, %v958
  %v991 = vsub.f32 %v927, %v959
  %v992 = vsub.f32 %v928, %v960
  %v993 = vsub.f32 %v929, %v961
  %v994 = vsub.f32 %v930, %v962
  %v995 = vsub.f32 %v931, %v963
  %v996 = vsub.f32 %v932, %v964
  %v997 = vsub.f32 %v933, %v965
  %v998 = vsub.f32 %v934, %v966
  %v999 = vsub.f32 %v935, %v967
  %v1000 = vsub.f32 %v936, %v968
  %v1001 = vsub.f32 %v937, %v969
  %v1002 = vsub.f32 %v938, %v970
  %v1003 = vsub.f32 %v939, %v971
  %v1004 = vsub.f32 %v940, %v972
  %v1005 = vsub.f32 %v941, %v973
  %v1006 = vsub.f32 %v942, %v974
  %v1007 = vsub.f32 %v943, %v975
  %v1008 = vsub.f32 %v944, %v976
  %v1009 = vsub.f32 %v945, %v977
  %v1010 = vsub.f32 %v946, %v978
  %v1011 = vsub.f32 %v947, %v979
  %v1012 = vsub.f32 %v948, %v980
  %v1013 = vsub.f32 %v949, %v981
  %v1014 = vsub.f32 %v950, %v982
  %v1015 = vsub.f32 %v951, %v983
  %v1016 = vsub.f32 %v952, %v984
  %v1017 = vsub.f32 %v953, %v985
  %v1018 = vsub.f32 %v954, %v986
  %v1019 = vmax.f32 %v987, 0.0
  %v1020 = vmax.f32 %v988, 0.0
  %v1021 = vmax.f32 %v989, 0.0
  %v1022 = vmax.f32 %v990, 0.0
  %v1023 = vmax.f32 %v991, 0.0
  %v1024 = vmax.f32 %v992, 0.0
  %v1025 = vmax.f32 %v993, 0.0
  %v1026 = vmax.f32 %v994, 0.0
  %v1027 = vmax.f32 %v995, 0.0
  %v1028 = vmax.f32 %v996, 0.0
  %v1029 = vmax.f32 %v997, 0.0
  %v1030 = vmax.f32 %v998, 0.0
  %v1031 = vmax.f32 %v999, 0.0
  %v1032 = vmax.f32 %v1000, 0.0
  %v1033 = vmax.f32 %v1001, 0.0
  %v1034 = vmax.f32 %v1002, 0.0
  %v1035 = vmax.f32 %v1003, 0.0
  %v1036 = vmax.f32 %v1004, 0.0
  %v1037 = vmax.f32 %v1005, 0.0
  %v1038 = vmax.f32 %v1006, 0.0
  %v1039 = vmax.f32 %v1007, 0.0
  %v1040 = vmax.f32 %v1008, 0.0
  %v1041 = vmax.f32 %v1009, 0.0
  %v1042 = vmax.f32 %v1010, 0.0
  %v1043 = vmax.f32 %v1011, 0.0
  %v1044 = vmax.f32 %v1012, 0.0
  %v1045 = vmax.f32 %v1013, 0.0
  %v1046 = vmax.f32 %v1014, 0.0
  %v1047 = vmax.f32 %v1015, 0.0
  %v1048 = vmax.f32 %v1016, 0.0
  %v1049 = vmax.f32 %v1017, 0.0
  %v1050 = vmax.f32 %v1018, 0.0
  %v1051 = vsub.f32 %v699, %v795
  %v1052 = vsub.f32 %v700, %v796
  %v1053 = vsub.f32 %v701, %v797
  %v1054 = vsub.f32 %v702, %v798
  %v1055 = vsub.f32 %v703, %v799
  %v1056 = vsub.f32 %v704, %v800
  %v1057 = vsub.f32 %v705, %v801
  %v1058 = vsub.f32 %v706, %v802
  %v1059 = vsub.f32 %v707, %v803
  %v1060 = vsub.f32 %v708, %v804
  %v1061 = vsub.f32 %v709, %v805
  %v1062 = vsub.f32 %v710, %v806
  %v1063 = vsub.f32 %v711, %v807
  %v1064 = vsub.f32 %v712, %v808
  %v1065 = vsub.f32 %v713, %v809
  %v1066 = vsub.f32 %v714, %v810
  %v1067 = vsub.f32 %v715, %v811
  %v1068 = vsub.f32 %v716, %v812
  %v1069 = vsub.f32 %v717, %v813
  %v1070 = vsub.f32 %v718, %v814
  %v1071 = vsub.f32 %v719, %v815
  %v1072 = vsub.f32 %v720, %v816
  %v1073 = vsub.f32 %v721, %v817
  %v1074 = vsub.f32 %v722, %v818
  %v1075 = vsub.f32 %v723, %v819
  %v1076 = vsub.f32 %v724, %v820
  %v1077 = vsub.f32 %v725, %v821
  %v1078 = vsub.f32 %v726, %v822
  %v1079 = vsub.f32 %v727, %v823
  %v1080 = vsub.f32 %v728, %v824
  %v1081 = vsub.f32 %v729, %v825
  %v1082 = vsub.f32 %v730, %v826
  %v1083 = vadd.f32 %v1019, 1e-06
  %v1084 = vadd.f32 %v1020, 1e-06
  %v1085 = vadd.f32 %v1021, 1e-06
  %v1086 = vadd.f32 %v1022, 1e-06
  %v1087 = vadd.f32 %v1023, 1e-06
  %v1088 = vadd.f32 %v1024, 1e-06
  %v1089 = vadd.f32 %v1025, 1e-06
  %v1090 = vadd.f32 %v1026, 1e-06
  %v1091 = vadd.f32 %v1027, 1e-06
  %v1092 = vadd.f32 %v1028, 1e-06
  %v1093 = vadd.f32 %v1029, 1e-06
  %v1094 = vadd.f32 %v1030, 1e-06
  %v1095 = vadd.f32 %v1031, 1e-06
  %v1096 = vadd.f32 %v1032, 1e-06
  %v1097 = vadd.f32 %v1033, 1e-06
  %v1098 = vadd.f32 %v1034, 1e-06
  %v1099 = vadd.f32 %v1035, 1e-06
  %v1100 = vadd.f32 %v1036, 1e-06
  %v1101 = vadd.f32 %v1037, 1e-06
  %v1102 = vadd.f32 %v1038, 1e-06
  %v1103 = vadd.f32 %v1039, 1e-06
  %v1104 = vadd.f32 %v1040, 1e-06
  %v1105 = vadd.f32 %v1041, 1e-06
  %v1106 = vadd.f32 %v1042, 1e-06
  %v1107 = vadd.f32 %v1043, 1e-06
  %v1108 = vadd.f32 %v1044, 1e-06
  %v1109 = vadd.f32 %v1045, 1e-06
  %v1110 = vadd.f32 %v1046, 1e-06
  %v1111 = vadd.f32 %v1047, 1e-06
  %v1112 = vadd.f32 %v1048, 1e-06
  %v1113 = vadd.f32 %v1049, 1e-06
  %v1114 = vadd.f32 %v1050, 1e-06
  %v1115 = vrsqrt.pop %v1083
  %v1116 = vrsqrt.pop %v1084
  %v1117 = vrsqrt.pop %v1085
  %v1118 = vrsqrt.pop %v1086
  %v1119 = vrsqrt.pop %v1087
  %v1120 = vrsqrt.pop %v1088
  %v1121 = vrsqrt.pop %v1089
  %v1122 = vrsqrt.pop %v1090
  %v1123 = vrsqrt.pop %v1091
  %v1124 = vrsqrt.pop %v1092
  %v1125 = vrsqrt.pop %v1093
  %v1126 = vrsqrt.pop %v1094
  %v1127 = vrsqrt.pop %v1095
  %v1128 = vrsqrt.pop %v1096
  %v1129 = vrsqrt.pop %v1097
  %v1130 = vrsqrt.pop %v1098
  %v1131 = vrsqrt.pop %v1099
  %v1132 = vrsqrt.pop %v1100
  %v1133 = vrsqrt.pop %v1101
  %v1134 = vrsqrt.pop %v1102
  %v1135 = vrsqrt.pop %v1103
  %v1136 = vrsqrt.pop %v1104
  %v1137 = vrsqrt.pop %v1105
  %v1138 = vrsqrt.pop %v1106
  %v1139 = vrsqrt.pop %v1107
  %v1140 = vrsqrt.pop %v1108
  %v1141 = vrsqrt.pop %v1109
  %v1142 = vrsqrt.pop %v1110
  %v1143 = vrsqrt.pop %v1111
  %v1144 = vrsqrt.pop %v1112
  %v1145 = vrsqrt.pop %v1113
  %v1146 = vrsqrt.pop %v1114
  %v1147 = vmul.f32 %v1051, %v1115
  %v1148 = vmul.f32 %v1052, %v1116
  %v1149 = vmul.f32 %v1053, %v1117
  %v1150 = vmul.f32 %v1054, %v1118
  %v1151 = vmul.f32 %v1055, %v1119
  %v1152 = vmul.f32 %v1056, %v1120
  %v1153 = vmul.f32 %v1057, %v1121
  %v1154 = vmul.f32 %v1058, %v1122
  %v1155 = vmul.f32 %v1059, %v1123
  %v1156 = vmul.f32 %v1060, %v1124
  %v1157 = vmul.f32 %v1061, %v1125
  %v1158 = vmul.f32 %v1062, %v1126
  %v1159 = vmul.f32 %v1063, %v1127
  %v1160 = vmul.f32 %v1064, %v1128
  %v1161 = vmul.f32 %v1065, %v1129
  %v1162 = vmul.f32 %v1066, %v1130
  %v1163 = vmul.f32 %v1067, %v1131
  %v1164 = vmul.f32 %v1068, %v1132
  %v1165 = vmul.f32 %v1069, %v1133
  %v1166 = vmul.f32 %v1070, %v1134
  %v1167 = vmul.f32 %v1071, %v1135
  %v1168 = vmul.f32 %v1072, %v1136
  %v1169 = vmul.f32 %v1073, %v1137
  %v1170 = vmul.f32 %v1074, %v1138
  %v1171 = vmul.f32 %v1075, %v1139
  %v1172 = vmul.f32 %v1076, %v1140
  %v1173 = vmul.f32 %v1077, %v1141
  %v1174 = vmul.f32 %v1078, %v1142
  %v1175 = vmul.f32 %v1079, %v1143
  %v1176 = vmul.f32 %v1080, %v1144
  %v1177 = vmul.f32 %v1081, %v1145
  %v1178 = vmul.f32 %v1082, %v1146
  %v1179 = vlaneseq
  %v1180 = vshrl.u32 %v1179, 7
  %v1181 = vsub.s32 1, %v1180
  %v1182 = vrot.slane %v694, %v1181
  %v1183 = vmul.f32 %v1147, %v1182
  %v1184 = vmul.f32 %v1148, %v1182
  %v1185 = vmul.f32 %v1149, %v1182
  %v1186 = vmul.f32 %v1150, %v1182
  %v1187 = vmul.f32 %v1151, %v1182
  %v1188 = vmul.f32 %v1152, %v1182
  %v1189 = vmul.f32 %v1153, %v1182
  %v1190 = vmul.f32 %v1154, %v1182
  %v1191 = vmul.f32 %v1155, %v1182
  %v1192 = vmul.f32 %v1156, %v1182
  %v1193 = vmul.f32 %v1157, %v1182
  %v1194 = vmul.f32 %v1158, %v1182
  %v1195 = vmul.f32 %v1159, %v1182
  %v1196 = vmul.f32 %v1160, %v1182
  %v1197 = vmul.f32 %v1161, %v1182
  %v1198 = vmul.f32 %v1162, %v1182
  %v1199 = vmul.f32 %v1163, %v1182
  %v1200 = vmul.f32 %v1164, %v1182
  %v1201 = vmul.f32 %v1165, %v1182
  %v1202 = vmul.f32 %v1166, %v1182
  %v1203 = vmul.f32 %v1167, %v1182
  %v1204 = vmul.f32 %v1168, %v1182
  %v1205 = vmul.f32 %v1169, %v1182
  %v1206 = vmul.f32 %v1170, %v1182
  %v1207 = vmul.f32 %v1171, %v1182
  %v1208 = vmul.f32 %v1172, %v1182
  %v1209 = vmul.f32 %v1173, %v1182
  %v1210 = vmul.f32 %v1174, %v1182
  %v1211 = vmul.f32 %v1175, %v1182
  %v1212 = vmul.f32 %v1176, %v1182
  %v1213 = vmul.f32 %v1177, %v1182
  %v1214 = vmul.f32 %v1178, %v1182
  %v1215 = vlaneseq
  %v1216 = vshrl.u32 %v1215, 7
  %v1217 = vsub.s32 2, %v1216
  %v1218 = vrot.slane %v694, %v1217
  %v1219 = vadd.f32 %v1183, %v1218
  %v1220 = vadd.f32 %v1184, %v1218
  %v1221 = vadd.f32 %v1185, %v1218
  %v1222 = vadd.f32 %v1186, %v1218
  %v1223 = vadd.f32 %v1187, %v1218
  %v1224 = vadd.f32 %v1188, %v1218
  %v1225 = vadd.f32 %v1189, %v1218
  %v1226 = vadd.f32 %v1190, %v1218
  %v1227 = vadd.f32 %v1191, %v1218
  %v1228 = vadd.f32 %v1192, %v1218
  %v1229 = vadd.f32 %v1193, %v1218
  %v1230 = vadd.f32 %v1194, %v1218
  %v1231 = vadd.f32 %v1195, %v1218
  %v1232 = vadd.f32 %v1196, %v1218
  %v1233 = vadd.f32 %v1197, %v1218
  %v1234 = vadd.f32 %v1198, %v1218
  %v1235 = vadd.f32 %v1199, %v1218
  %v1236 = vadd.f32 %v1200, %v1218
  %v1237 = vadd.f32 %v1201, %v1218
  %v1238 = vadd.f32 %v1202, %v1218
  %v1239 = vadd.f32 %v1203, %v1218
  %v1240 = vadd.f32 %v1204, %v1218
  %v1241 = vadd.f32 %v1205, %v1218
  %v1242 = vadd.f32 %v1206, %v1218
  %v1243 = vadd.f32 %v1207, %v1218
  %v1244 = vadd.f32 %v1208, %v1218
  %v1245 = vadd.f32 %v1209, %v1218
  %v1246 = vadd.f32 %v1210, %v1218
  %v1247 = vadd.f32 %v1211, %v1218
  %v1248 = vadd.f32 %v1212, %v1218
  %v1249 = vadd.f32 %v1213, %v1218
  %v1250 = vadd.f32 %v1214, %v1218
  %v1251 = vmul.f32 %v1219, 0.5
  %v1252 = vmul.f32 %v1220, 0.5
  %v1253 = vmul.f32 %v1221, 0.5
  %v1254 = vmul.f32 %v1222, 0.5
  %v1255 = vmul.f32 %v1223, 0.5
  %v1256 = vmul.f32 %v1224, 0.5
  %v1257 = vmul.f32 %v1225, 0.5
  %v1258 = vmul.f32 %v1226, 0.5
  %v1259 = vmul.f32 %v1227, 0.5
  %v1260 = vmul.f32 %v1228, 0.5
  %v1261 = vmul.f32 %v1229, 0.5
  %v1262 = vmul.f32 %v1230, 0.5
  %v1263 = vmul.f32 %v1231, 0.5
  %v1264 = vmul.f32 %v1232, 0.5
  %v1265 = vmul.f32 %v1233, 0.5
  %v1266 = vmul.f32 %v1234, 0.5
  %v1267 = vmul.f32 %v1235, 0.5
  %v1268 = vmul.f32 %v1236, 0.5
  %v1269 = vmul.f32 %v1237, 0.5
  %v1270 = vmul.f32 %v1238, 0.5
  %v1271 = vmul.f32 %v1239, 0.5
  %v1272 = vmul.f32 %v1240, 0.5
  %v1273 = vmul.f32 %v1241, 0.5
  %v1274 = vmul.f32 %v1242, 0.5
  %v1275 = vmul.f32 %v1243, 0.5
  %v1276 = vmul.f32 %v1244, 0.5
  %v1277 = vmul.f32 %v1245, 0.5
  %v1278 = vmul.f32 %v1246, 0.5
  %v1279 = vmul.f32 %v1247, 0.5
  %v1280 = vmul.f32 %v1248, 0.5
  %v1281 = vmul.f32 %v1249, 0.5
  %v1282 = vmul.f32 %v1250, 0.5
  %v1283 = vmul.f32 %v1219, 0.70710677
  %v1284 = vmul.f32 %v1220, 0.70710677
  %v1285 = vmul.f32 %v1221, 0.70710677
  %v1286 = vmul.f32 %v1222, 0.70710677
  %v1287 = vmul.f32 %v1223, 0.70710677
  %v1288 = vmul.f32 %v1224, 0.70710677
  %v1289 = vmul.f32 %v1225, 0.70710677
  %v1290 = vmul.f32 %v1226, 0.70710677
  %v1291 = vmul.f32 %v1227, 0.70710677
  %v1292 = vmul.f32 %v1228, 0.70710677
  %v1293 = vmul.f32 %v1229, 0.70710677
  %v1294 = vmul.f32 %v1230, 0.70710677
  %v1295 = vmul.f32 %v1231, 0.70710677
  %v1296 = vmul.f32 %v1232, 0.70710677
  %v1297 = vmul.f32 %v1233, 0.70710677
  %v1298 = vmul.f32 %v1234, 0.70710677
  %v1299 = vmul.f32 %v1235, 0.70710677
  %v1300 = vmul.f32 %v1236, 0.70710677
  %v1301 = vmul.f32 %v1237, 0.70710677
  %v1302 = vmul.f32 %v1238, 0.70710677
  %v1303 = vmul.f32 %v1239, 0.70710677
  %v1304 = vmul.f32 %v1240, 0.70710677
  %v1305 = vmul.f32 %v1241, 0.70710677
  %v1306 = vmul.f32 %v1242, 0.70710677
  %v1307 = vmul.f32 %v1243, 0.70710677
  %v1308 = vmul.f32 %v1244, 0.70710677
  %v1309 = vmul.f32 %v1245, 0.70710677
  %v1310 = vmul.f32 %v1246, 0.70710677
  %v1311 = vmul.f32 %v1247, 0.70710677
  %v1312 = vmul.f32 %v1248, 0.70710677
  %v1313 = vmul.f32 %v1249, 0.70710677
  %v1314 = vmul.f32 %v1250, 0.70710677
  %v1315 = verf.f32.pop %v1283
  %v1316 = verf.f32.pop %v1284
  %v1317 = verf.f32.pop %v1285
  %v1318 = verf.f32.pop %v1286
  %v1319 = verf.f32.pop %v1287
  %v1320 = verf.f32.pop %v1288
  %v1321 = verf.f32.pop %v1289
  %v1322 = verf.f32.pop %v1290
  %v1323 = verf.f32.pop %v1291
  %v1324 = verf.f32.pop %v1292
  %v1325 = verf.f32.pop %v1293
  %v1326 = verf.f32.pop %v1294
  %v1327 = verf.f32.pop %v1295
  %v1328 = verf.f32.pop %v1296
  %v1329 = verf.f32.pop %v1297
  %v1330 = verf.f32.pop %v1298
  %v1331 = verf.f32.pop %v1299
  %v1332 = verf.f32.pop %v1300
  %v1333 = verf.f32.pop %v1301
  %v1334 = verf.f32.pop %v1302
  %v1335 = verf.f32.pop %v1303
  %v1336 = verf.f32.pop %v1304
  %v1337 = verf.f32.pop %v1305
  %v1338 = verf.f32.pop %v1306
  %v1339 = verf.f32.pop %v1307
  %v1340 = verf.f32.pop %v1308
  %v1341 = verf.f32.pop %v1309
  %v1342 = verf.f32.pop %v1310
  %v1343 = verf.f32.pop %v1311
  %v1344 = verf.f32.pop %v1312
  %v1345 = verf.f32.pop %v1313
  %v1346 = verf.f32.pop %v1314
  %v1347 = vadd.f32 %v1315, 1.0
  %v1348 = vadd.f32 %v1316, 1.0
  %v1349 = vadd.f32 %v1317, 1.0
  %v1350 = vadd.f32 %v1318, 1.0
  %v1351 = vadd.f32 %v1319, 1.0
  %v1352 = vadd.f32 %v1320, 1.0
  %v1353 = vadd.f32 %v1321, 1.0
  %v1354 = vadd.f32 %v1322, 1.0
  %v1355 = vadd.f32 %v1323, 1.0
  %v1356 = vadd.f32 %v1324, 1.0
  %v1357 = vadd.f32 %v1325, 1.0
  %v1358 = vadd.f32 %v1326, 1.0
  %v1359 = vadd.f32 %v1327, 1.0
  %v1360 = vadd.f32 %v1328, 1.0
  %v1361 = vadd.f32 %v1329, 1.0
  %v1362 = vadd.f32 %v1330, 1.0
  %v1363 = vadd.f32 %v1331, 1.0
  %v1364 = vadd.f32 %v1332, 1.0
  %v1365 = vadd.f32 %v1333, 1.0
  %v1366 = vadd.f32 %v1334, 1.0
  %v1367 = vadd.f32 %v1335, 1.0
  %v1368 = vadd.f32 %v1336, 1.0
  %v1369 = vadd.f32 %v1337, 1.0
  %v1370 = vadd.f32 %v1338, 1.0
  %v1371 = vadd.f32 %v1339, 1.0
  %v1372 = vadd.f32 %v1340, 1.0
  %v1373 = vadd.f32 %v1341, 1.0
  %v1374 = vadd.f32 %v1342, 1.0
  %v1375 = vadd.f32 %v1343, 1.0
  %v1376 = vadd.f32 %v1344, 1.0
  %v1377 = vadd.f32 %v1345, 1.0
  %v1378 = vadd.f32 %v1346, 1.0
  %v1379 = vmul.f32 %v1251, %v1347
  %v1380 = vmul.f32 %v1252, %v1348
  %v1381 = vmul.f32 %v1253, %v1349
  %v1382 = vmul.f32 %v1254, %v1350
  %v1383 = vmul.f32 %v1255, %v1351
  %v1384 = vmul.f32 %v1256, %v1352
  %v1385 = vmul.f32 %v1257, %v1353
  %v1386 = vmul.f32 %v1258, %v1354
  %v1387 = vmul.f32 %v1259, %v1355
  %v1388 = vmul.f32 %v1260, %v1356
  %v1389 = vmul.f32 %v1261, %v1357
  %v1390 = vmul.f32 %v1262, %v1358
  %v1391 = vmul.f32 %v1263, %v1359
  %v1392 = vmul.f32 %v1264, %v1360
  %v1393 = vmul.f32 %v1265, %v1361
  %v1394 = vmul.f32 %v1266, %v1362
  %v1395 = vmul.f32 %v1267, %v1363
  %v1396 = vmul.f32 %v1268, %v1364
  %v1397 = vmul.f32 %v1269, %v1365
  %v1398 = vmul.f32 %v1270, %v1366
  %v1399 = vmul.f32 %v1271, %v1367
  %v1400 = vmul.f32 %v1272, %v1368
  %v1401 = vmul.f32 %v1273, %v1369
  %v1402 = vmul.f32 %v1274, %v1370
  %v1403 = vmul.f32 %v1275, %v1371
  %v1404 = vmul.f32 %v1276, %v1372
  %v1405 = vmul.f32 %v1277, %v1373
  %v1406 = vmul.f32 %v1278, %v1374
  %v1407 = vmul.f32 %v1279, %v1375
  %v1408 = vmul.f32 %v1280, %v1376
  %v1409 = vmul.f32 %v1281, %v1377
  %v1410 = vmul.f32 %v1282, %v1378
  %v1411 = vpack.c.bf16 %v1380, %v1379
  %v1412 = vpack.c.bf16 %v1382, %v1381
  %v1413 = vpack.c.bf16 %v1384, %v1383
  %v1414 = vpack.c.bf16 %v1386, %v1385
  %v1415 = vpack.c.bf16 %v1388, %v1387
  %v1416 = vpack.c.bf16 %v1390, %v1389
  %v1417 = vpack.c.bf16 %v1392, %v1391
  %v1418 = vpack.c.bf16 %v1394, %v1393
  %v1419 = vpack.c.bf16 %v1396, %v1395
  %v1420 = vpack.c.bf16 %v1398, %v1397
  %v1421 = vpack.c.bf16 %v1400, %v1399
  %v1422 = vpack.c.bf16 %v1402, %v1401
  %v1423 = vpack.c.bf16 %v1404, %v1403
  %v1424 = vpack.c.bf16 %v1406, %v1405
  %v1425 = vpack.c.bf16 %v1408, %v1407
  %v1426 = vpack.c.bf16 %v1410, %v1409
  %v1443 = vunpack.c.l.b16 %v1411
  %v1444 = vunpack.c.h.b16 %v1411
  %v1445 = vunpack.c.l.b16 %v1412
  %v1446 = vunpack.c.h.b16 %v1412
  %v1447 = vunpack.c.l.b16 %v1413
  %v1448 = vunpack.c.h.b16 %v1413
  %v1449 = vunpack.c.l.b16 %v1414
  %v1450 = vunpack.c.h.b16 %v1414
  %v1451 = vunpack.c.l.b16 %v1415
  %v1452 = vunpack.c.h.b16 %v1415
  %v1453 = vunpack.c.l.b16 %v1416
  %v1454 = vunpack.c.h.b16 %v1416
  %v1455 = vunpack.c.l.b16 %v1417
  %v1456 = vunpack.c.h.b16 %v1417
  %v1457 = vunpack.c.l.b16 %v1418
  %v1458 = vunpack.c.h.b16 %v1418
  %v1459 = vunpack.c.l.b16 %v1419
  %v1460 = vunpack.c.h.b16 %v1419
  %v1461 = vunpack.c.l.b16 %v1420
  %v1462 = vunpack.c.h.b16 %v1420
  %v1463 = vunpack.c.l.b16 %v1421
  %v1464 = vunpack.c.h.b16 %v1421
  %v1465 = vunpack.c.l.b16 %v1422
  %v1466 = vunpack.c.h.b16 %v1422
  %v1467 = vunpack.c.l.b16 %v1423
  %v1468 = vunpack.c.h.b16 %v1423
  %v1469 = vunpack.c.l.b16 %v1424
  %v1470 = vunpack.c.h.b16 %v1424
  %v1471 = vunpack.c.l.b16 %v1425
  %v1472 = vunpack.c.h.b16 %v1425
  %v1473 = vunpack.c.l.b16 %v1426
  %v1474 = vunpack.c.h.b16 %v1426
  %v1475 = vpack.c.b16 %v1443, %v1443
  %v1476 = vpack.c.b16 %v1444, %v1444
  %v1477 = vpack.c.b16 %v1445, %v1445
  %v1478 = vpack.c.b16 %v1446, %v1446
  %v1479 = vpack.c.b16 %v1447, %v1447
  %v1480 = vpack.c.b16 %v1448, %v1448
  %v1481 = vpack.c.b16 %v1449, %v1449
  %v1482 = vpack.c.b16 %v1450, %v1450
  %v1483 = vpack.c.b16 %v1451, %v1451
  %v1484 = vpack.c.b16 %v1452, %v1452
  %v1485 = vpack.c.b16 %v1453, %v1453
  %v1486 = vpack.c.b16 %v1454, %v1454
  %v1487 = vpack.c.b16 %v1455, %v1455
  %v1488 = vpack.c.b16 %v1456, %v1456
  %v1489 = vpack.c.b16 %v1457, %v1457
  %v1490 = vpack.c.b16 %v1458, %v1458
  %v1491 = vpack.c.b16 %v1459, %v1459
  %v1492 = vpack.c.b16 %v1460, %v1460
  %v1493 = vpack.c.b16 %v1461, %v1461
  %v1494 = vpack.c.b16 %v1462, %v1462
  %v1495 = vpack.c.b16 %v1463, %v1463
  %v1496 = vpack.c.b16 %v1464, %v1464
  %v1497 = vpack.c.b16 %v1465, %v1465
  %v1498 = vpack.c.b16 %v1466, %v1466
  %v1499 = vpack.c.b16 %v1467, %v1467
  %v1500 = vpack.c.b16 %v1468, %v1468
  %v1501 = vpack.c.b16 %v1469, %v1469
  %v1502 = vpack.c.b16 %v1470, %v1470
  %v1503 = vpack.c.b16 %v1471, %v1471
  %v1504 = vpack.c.b16 %v1472, %v1472
  %v1505 = vpack.c.b16 %v1473, %v1473
  %v1506 = vpack.c.b16 %v1474, %v1474
  %1539 = vst [vmem:[%s4] sm:$0xf] %v1475
  %1540 = vst [vmem:[%s4 + $0x4] sm:$0xf] %v1476
  %1541 = vst [vmem:[%s4 + $0x8] sm:$0xf] %v1477
  %1542 = vst [vmem:[%s4 + $0xc] sm:$0xf] %v1478
  %1543 = vst [vmem:[%s4 + $0x10] sm:$0xf] %v1479
  %1544 = vst [vmem:[%s4 + $0x14] sm:$0xf] %v1480
  %1545 = vst [vmem:[%s4 + $0x18] sm:$0xf] %v1481
  %1546 = vst [vmem:[%s4 + $0x1c] sm:$0xf] %v1482
  %1547 = vst [vmem:[%s4 + $0x20] sm:$0xf] %v1483
  %1548 = vst [vmem:[%s4 + $0x24] sm:$0xf] %v1484
  %1549 = vst [vmem:[%s4 + $0x28] sm:$0xf] %v1485
  %1550 = vst [vmem:[%s4 + $0x2c] sm:$0xf] %v1486
  %1551 = vst [vmem:[%s4 + $0x30] sm:$0xf] %v1487
  %1552 = vst [vmem:[%s4 + $0x34] sm:$0xf] %v1488
  %1553 = vst [vmem:[%s4 + $0x38] sm:$0xf] %v1489
  %1554 = vst [vmem:[%s4 + $0x3c] sm:$0xf] %v1490
  %1555 = vst [vmem:[%s4 + $0x40] sm:$0xf] %v1491
  %1556 = vst [vmem:[%s4 + $0x44] sm:$0xf] %v1492
  %1557 = vst [vmem:[%s4 + $0x48] sm:$0xf] %v1493
  %1558 = vst [vmem:[%s4 + $0x4c] sm:$0xf] %v1494
  %1559 = vst [vmem:[%s4 + $0x50] sm:$0xf] %v1495
  %1560 = vst [vmem:[%s4 + $0x54] sm:$0xf] %v1496
  %1561 = vst [vmem:[%s4 + $0x58] sm:$0xf] %v1497
  %1562 = vst [vmem:[%s4 + $0x5c] sm:$0xf] %v1498
  %1563 = vst [vmem:[%s4 + $0x60] sm:$0xf] %v1499
  %1564 = vst [vmem:[%s4 + $0x64] sm:$0xf] %v1500
  %1565 = vst [vmem:[%s4 + $0x68] sm:$0xf] %v1501
  %1566 = vst [vmem:[%s4 + $0x6c] sm:$0xf] %v1502
  %1567 = vst [vmem:[%s4 + $0x70] sm:$0xf] %v1503
  %1568 = vst [vmem:[%s4 + $0x74] sm:$0xf] %v1504
  %1569 = vst [vmem:[%s4 + $0x78] sm:$0xf] %v1505
  %1570 = vst [vmem:[%s4 + $0x7c] sm:$0xf] %v1506
  // Predicated region
  $region18: #{conv_block1_forward.2} parent=0 // pred_check
    _
  $region19: #{conv_block1_forward.2} parent=0 // pred_check_branch
    %1572 = sbr.rel (0) target = $region21
  $region20: #{conv_block1_forward.2} parent=0 // pred_region
    _
  $region21: #{conv_block1_forward.2} parent=0 // pred_fallthru
    _
  // Predicated region
  $region22: #{conv_block1_forward.2} parent=0 // pred_check
    _
  $region23: #{conv_block1_forward.2} parent=0 // pred_check_branch
    %1574 = sbr.rel (0) target = $region25
  $region24: #{conv_block1_forward.2} parent=0 // pred_region
    _
  $region25: #{conv_block1_forward.2} parent=0 // pred_fallthru
    _

// kernel: conv_block1_forward.3
$region0: #{conv_block1_forward.3}
  #allocation0 [shape = 'u32[]', space=smem, size = 0x4, offset = 0x4, fixed_abs, tag = 'smem constant byte address 0x4 - core index']
  #allocation1 [shape = 'u32[144,128]{1,0:T(1,128)}', space=vmem, size = 0x12000, scoped, tag = 'internal scratch']
  %s0 = inlined_call_operand.vmem [shape: bf16[128,768], index: 0, kind: input, shape index: {}]
  %s1 = inlined_call_operand.vmem [shape: bf16[768,128], index: 1, kind: input, shape index: {}]
  %s2 = inlined_call_operand.vmem [shape: bf16[384,128], index: 2, kind: input, shape index: {}]
  %s3 = inlined_call_operand.vmem [shape: f32[8,128], index: 3, kind: input, shape index: {}]
  %s4 = inlined_call_operand.vmem [shape: f32[128,128], index: 4, kind: output, shape index: {}]
  %s5 = sld [smem:[#allocation0]]
  $region26: #{conv_block1_forward.3} parent=0
    _
  %s7 = ssub.s32 1, %s5
  %s8 = scalar_select 0, %s7, %s5
  // Predicated region
  $region2: #{conv_block1_forward.3} parent=0 // pred_check
    _
  $region3: #{conv_block1_forward.3} parent=0 // pred_check_branch
    %10 = sbr.rel (0) target = $region5
  $region4: #{conv_block1_forward.3} parent=0 // pred_region
    _
  $region5: #{conv_block1_forward.3} parent=0 // pred_fallthru
    _
  // Predicated region
  $region6: #{conv_block1_forward.3} parent=0 // pred_check
    _
  $region7: #{conv_block1_forward.3} parent=0 // pred_check_branch
    %12 = sbr.rel (0) target = $region9
  $region8: #{conv_block1_forward.3} parent=0 // pred_region
    _
  $region9: #{conv_block1_forward.3} parent=0 // pred_fallthru
    _
  // Predicated region
  $region10: #{conv_block1_forward.3} parent=0 // pred_check
    _
  $region11: #{conv_block1_forward.3} parent=0 // pred_check_branch
    %14 = sbr.rel (0) target = $region13
  $region12: #{conv_block1_forward.3} parent=0 // pred_region
    _
  $region13: #{conv_block1_forward.3} parent=0 // pred_fallthru
    _
  // Predicated region
  $region14: #{conv_block1_forward.3} parent=0 // pred_check
    _
  $region15: #{conv_block1_forward.3} parent=0 // pred_check_branch
    %16 = sbr.rel (0) target = $region17
  $region16: #{conv_block1_forward.3} parent=0 // pred_region
    _
  $region17: #{conv_block1_forward.3} parent=0 // pred_fallthru
    _
  %v18 = vld [vmem:[%s0] sm:$0xff]
  %v19 = vld [vmem:[%s0 + $0x8] sm:$0xff]
  %v20 = vld [vmem:[%s0 + $0x10] sm:$0xff]
  %v21 = vld [vmem:[%s0 + $0x18] sm:$0xff]
  %v22 = vld [vmem:[%s0 + $0x20] sm:$0xff]
  %v23 = vld [vmem:[%s0 + $0x28] sm:$0xff]
  %v24 = vld [vmem:[%s0 + $0x30] sm:$0xff]
  %v25 = vld [vmem:[%s0 + $0x38] sm:$0xff]
  %v26 = vld [vmem:[%s0 + $0x40] sm:$0xff]
  %v27 = vld [vmem:[%s0 + $0x48] sm:$0xff]
  %v28 = vld [vmem:[%s0 + $0x50] sm:$0xff]
  %v29 = vld [vmem:[%s0 + $0x58] sm:$0xff]
  %v30 = vld [vmem:[%s0 + $0x60] sm:$0xff]
  %v31 = vld [vmem:[%s0 + $0x68] sm:$0xff]
  %v32 = vld [vmem:[%s0 + $0x70] sm:$0xff]
  %v33 = vld [vmem:[%s0 + $0x78] sm:$0xff]
  %v34 = vld [vmem:[%s0 + $0x80] sm:$0xff]
  %v35 = vld [vmem:[%s0 + $0x88] sm:$0xff]
  %v36 = vld [vmem:[%s0 + $0x90] sm:$0xff]
  %v37 = vld [vmem:[%s0 + $0x98] sm:$0xff]
  %v38 = vld [vmem:[%s0 + $0xa0] sm:$0xff]
  %v39 = vld [vmem:[%s0 + $0xa8] sm:$0xff]
  %v40 = vld [vmem:[%s0 + $0xb0] sm:$0xff]
  %v41 = vld [vmem:[%s0 + $0xb8] sm:$0xff]
  %v42 = vld [vmem:[%s0 + $0xc0] sm:$0xff]
  %v43 = vld [vmem:[%s0 + $0xc8] sm:$0xff]
  %v44 = vld [vmem:[%s0 + $0xd0] sm:$0xff]
  %v45 = vld [vmem:[%s0 + $0xd8] sm:$0xff]
  %v46 = vld [vmem:[%s0 + $0xe0] sm:$0xff]
  %v47 = vld [vmem:[%s0 + $0xe8] sm:$0xff]
  %v48 = vld [vmem:[%s0 + $0xf0] sm:$0xff]
  %v49 = vld [vmem:[%s0 + $0xf8] sm:$0xff]
  %v50 = vld [vmem:[%s0 + $0x100] sm:$0xff]
  %v51 = vld [vmem:[%s0 + $0x108] sm:$0xff]
  %v52 = vld [vmem:[%s0 + $0x110] sm:$0xff]
  %v53 = vld [vmem:[%s0 + $0x118] sm:$0xff]
  %v54 = vld [vmem:[%s0 + $0x120] sm:$0xff]
  %v55 = vld [vmem:[%s0 + $0x128] sm:$0xff]
  %v56 = vld [vmem:[%s0 + $0x130] sm:$0xff]
  %v57 = vld [vmem:[%s0 + $0x138] sm:$0xff]
  %v58 = vld [vmem:[%s0 + $0x140] sm:$0xff]
  %v59 = vld [vmem:[%s0 + $0x148] sm:$0xff]
  %v60 = vld [vmem:[%s0 + $0x150] sm:$0xff]
  %v61 = vld [vmem:[%s0 + $0x158] sm:$0xff]
  %v62 = vld [vmem:[%s0 + $0x160] sm:$0xff]
  %v63 = vld [vmem:[%s0 + $0x168] sm:$0xff]
  %v64 = vld [vmem:[%s0 + $0x170] sm:$0xff]
  %v65 = vld [vmem:[%s0 + $0x178] sm:$0xff]
  %v66 = vld [vmem:[%s1] sm:$0xf]
  %v67 = vld [vmem:[%s1 + $0x4] sm:$0xf]
  %v68 = vld [vmem:[%s1 + $0x8] sm:$0xf]
  %v69 = vld [vmem:[%s1 + $0xc] sm:$0xf]
  %v70 = vld [vmem:[%s1 + $0x10] sm:$0xf]
  %v71 = vld [vmem:[%s1 + $0x14] sm:$0xf]
  %v72 = vld [vmem:[%s1 + $0x18] sm:$0xf]
  %v73 = vld [vmem:[%s1 + $0x1c] sm:$0xf]
  %v74 = vld [vmem:[%s1 + $0x20] sm:$0xf]
  %v75 = vld [vmem:[%s1 + $0x24] sm:$0xf]
  %v76 = vld [vmem:[%s1 + $0x28] sm:$0xf]
  %v77 = vld [vmem:[%s1 + $0x2c] sm:$0xf]
  %v78 = vld [vmem:[%s1 + $0x30] sm:$0xf]
  %v79 = vld [vmem:[%s1 + $0x34] sm:$0xf]
  %v80 = vld [vmem:[%s1 + $0x38] sm:$0xf]
  %v81 = vld [vmem:[%s1 + $0x3c] sm:$0xf]
  %v82 = vld [vmem:[%s1 + $0x40] sm:$0xf]
  %v83 = vld [vmem:[%s1 + $0x44] sm:$0xf]
  %v84 = vld [vmem:[%s1 + $0x48] sm:$0xf]
  %v85 = vld [vmem:[%s1 + $0x4c] sm:$0xf]
  %v86 = vld [vmem:[%s1 + $0x50] sm:$0xf]
  %v87 = vld [vmem:[%s1 + $0x54] sm:$0xf]
  %v88 = vld [vmem:[%s1 + $0x58] sm:$0xf]
  %v89 = vld [vmem:[%s1 + $0x5c] sm:$0xf]
  %v90 = vld [vmem:[%s1 + $0x60] sm:$0xf]
  %v91 = vld [vmem:[%s1 + $0x64] sm:$0xf]
  %v92 = vld [vmem:[%s1 + $0x68] sm:$0xf]
  %v93 = vld [vmem:[%s1 + $0x6c] sm:$0xf]
  %v94 = vld [vmem:[%s1 + $0x70] sm:$0xf]
  %v95 = vld [vmem:[%s1 + $0x74] sm:$0xf]
  %v96 = vld [vmem:[%s1 + $0x78] sm:$0xf]
  %v97 = vld [vmem:[%s1 + $0x7c] sm:$0xf]
  %v98 = vld [vmem:[%s1 + $0x80] sm:$0xf]
  %v99 = vld [vmem:[%s1 + $0x84] sm:$0xf]
  %v100 = vld [vmem:[%s1 + $0x88] sm:$0xf]
  %v101 = vld [vmem:[%s1 + $0x8c] sm:$0xf]
  %v102 = vld [vmem:[%s1 + $0x90] sm:$0xf]
  %v103 = vld [vmem:[%s1 + $0x94] sm:$0xf]
  %v104 = vld [vmem:[%s1 + $0x98] sm:$0xf]
  %v105 = vld [vmem:[%s1 + $0x9c] sm:$0xf]
  %v106 = vld [vmem:[%s1 + $0xa0] sm:$0xf]
  %v107 = vld [vmem:[%s1 + $0xa4] sm:$0xf]
  %v108 = vld [vmem:[%s1 + $0xa8] sm:$0xf]
  %v109 = vld [vmem:[%s1 + $0xac] sm:$0xf]
  %v110 = vld [vmem:[%s1 + $0xb0] sm:$0xf]
  %v111 = vld [vmem:[%s1 + $0xb4] sm:$0xf]
  %v112 = vld [vmem:[%s1 + $0xb8] sm:$0xf]
  %v113 = vld [vmem:[%s1 + $0xbc] sm:$0xf]
  %v114 = vld [vmem:[%s1 + $0xc0] sm:$0xf]
  %v115 = vld [vmem:[%s1 + $0xc4] sm:$0xf]
  %v116 = vld [vmem:[%s1 + $0xc8] sm:$0xf]
  %v117 = vld [vmem:[%s1 + $0xcc] sm:$0xf]
  %v118 = vld [vmem:[%s1 + $0xd0] sm:$0xf]
  %v119 = vld [vmem:[%s1 + $0xd4] sm:$0xf]
  %v120 = vld [vmem:[%s1 + $0xd8] sm:$0xf]
  %v121 = vld [vmem:[%s1 + $0xdc] sm:$0xf]
  %v122 = vld [vmem:[%s1 + $0xe0] sm:$0xf]
  %v123 = vld [vmem:[%s1 + $0xe4] sm:$0xf]
  %v124 = vld [vmem:[%s1 + $0xe8] sm:$0xf]
  %v125 = vld [vmem:[%s1 + $0xec] sm:$0xf]
  %v126 = vld [vmem:[%s1 + $0xf0] sm:$0xf]
  %v127 = vld [vmem:[%s1 + $0xf4] sm:$0xf]
  %v128 = vld [vmem:[%s1 + $0xf8] sm:$0xf]
  %v129 = vld [vmem:[%s1 + $0xfc] sm:$0xf]
  %v130 = vld [vmem:[%s1 + $0x100] sm:$0xf]
  %v131 = vld [vmem:[%s1 + $0x104] sm:$0xf]
  %v132 = vld [vmem:[%s1 + $0x108] sm:$0xf]
  %v133 = vld [vmem:[%s1 + $0x10c] sm:$0xf]
  %v134 = vld [vmem:[%s1 + $0x110] sm:$0xf]
  %v135 = vld [vmem:[%s1 + $0x114] sm:$0xf]
  %v136 = vld [vmem:[%s1 + $0x118] sm:$0xf]
  %v137 = vld [vmem:[%s1 + $0x11c] sm:$0xf]
  %v138 = vld [vmem:[%s1 + $0x120] sm:$0xf]
  %v139 = vld [vmem:[%s1 + $0x124] sm:$0xf]
  %v140 = vld [vmem:[%s1 + $0x128] sm:$0xf]
  %v141 = vld [vmem:[%s1 + $0x12c] sm:$0xf]
  %v142 = vld [vmem:[%s1 + $0x130] sm:$0xf]
  %v143 = vld [vmem:[%s1 + $0x134] sm:$0xf]
  %v144 = vld [vmem:[%s1 + $0x138] sm:$0xf]
  %v145 = vld [vmem:[%s1 + $0x13c] sm:$0xf]
  %v146 = vld [vmem:[%s1 + $0x140] sm:$0xf]
  %v147 = vld [vmem:[%s1 + $0x144] sm:$0xf]
  %v148 = vld [vmem:[%s1 + $0x148] sm:$0xf]
  %v149 = vld [vmem:[%s1 + $0x14c] sm:$0xf]
  %v150 = vld [vmem:[%s1 + $0x150] sm:$0xf]
  %v151 = vld [vmem:[%s1 + $0x154] sm:$0xf]
  %v152 = vld [vmem:[%s1 + $0x158] sm:$0xf]
  %v153 = vld [vmem:[%s1 + $0x15c] sm:$0xf]
  %v154 = vld [vmem:[%s1 + $0x160] sm:$0xf]
  %v155 = vld [vmem:[%s1 + $0x164] sm:$0xf]
  %v156 = vld [vmem:[%s1 + $0x168] sm:$0xf]
  %v157 = vld [vmem:[%s1 + $0x16c] sm:$0xf]
  %v158 = vld [vmem:[%s1 + $0x170] sm:$0xf]
  %v159 = vld [vmem:[%s1 + $0x174] sm:$0xf]
  %v160 = vld [vmem:[%s1 + $0x178] sm:$0xf]
  %v161 = vld [vmem:[%s1 + $0x17c] sm:$0xf]
  %v162 = vld [vmem:[%s2] sm:$0xf]
  %v163 = vld [vmem:[%s2 + $0x4] sm:$0xf]
  %v164 = vld [vmem:[%s2 + $0x8] sm:$0xf]
  %v165 = vld [vmem:[%s2 + $0xc] sm:$0xf]
  %v166 = vld [vmem:[%s2 + $0x10] sm:$0xf]
  %v167 = vld [vmem:[%s2 + $0x14] sm:$0xf]
  %v168 = vld [vmem:[%s2 + $0x18] sm:$0xf]
  %v169 = vld [vmem:[%s2 + $0x1c] sm:$0xf]
  %v170 = vld [vmem:[%s2 + $0x20] sm:$0xf]
  %v171 = vld [vmem:[%s2 + $0x24] sm:$0xf]
  %v172 = vld [vmem:[%s2 + $0x28] sm:$0xf]
  %v173 = vld [vmem:[%s2 + $0x2c] sm:$0xf]
  %v174 = vld [vmem:[%s2 + $0x30] sm:$0xf]
  %v175 = vld [vmem:[%s2 + $0x34] sm:$0xf]
  %v176 = vld [vmem:[%s2 + $0x38] sm:$0xf]
  %v177 = vld [vmem:[%s2 + $0x3c] sm:$0xf]
  %v178 = vld [vmem:[%s2 + $0x40] sm:$0xf]
  %v179 = vld [vmem:[%s2 + $0x44] sm:$0xf]
  %v180 = vld [vmem:[%s2 + $0x48] sm:$0xf]
  %v181 = vld [vmem:[%s2 + $0x4c] sm:$0xf]
  %v182 = vld [vmem:[%s2 + $0x50] sm:$0xf]
  %v183 = vld [vmem:[%s2 + $0x54] sm:$0xf]
  %v184 = vld [vmem:[%s2 + $0x58] sm:$0xf]
  %v185 = vld [vmem:[%s2 + $0x5c] sm:$0xf]
  %v186 = vld [vmem:[%s2 + $0x60] sm:$0xf]
  %v187 = vld [vmem:[%s2 + $0x64] sm:$0xf]
  %v188 = vld [vmem:[%s2 + $0x68] sm:$0xf]
  %v189 = vld [vmem:[%s2 + $0x6c] sm:$0xf]
  %v190 = vld [vmem:[%s2 + $0x70] sm:$0xf]
  %v191 = vld [vmem:[%s2 + $0x74] sm:$0xf]
  %v192 = vld [vmem:[%s2 + $0x78] sm:$0xf]
  %v193 = vld [vmem:[%s2 + $0x7c] sm:$0xf]
  %v194 = vld [vmem:[%s2 + $0x80] sm:$0xf]
  %v195 = vld [vmem:[%s2 + $0x84] sm:$0xf]
  %v196 = vld [vmem:[%s2 + $0x88] sm:$0xf]
  %v197 = vld [vmem:[%s2 + $0x8c] sm:$0xf]
  %v198 = vld [vmem:[%s2 + $0x90] sm:$0xf]
  %v199 = vld [vmem:[%s2 + $0x94] sm:$0xf]
  %v200 = vld [vmem:[%s2 + $0x98] sm:$0xf]
  %v201 = vld [vmem:[%s2 + $0x9c] sm:$0xf]
  %v202 = vld [vmem:[%s2 + $0xa0] sm:$0xf]
  %v203 = vld [vmem:[%s2 + $0xa4] sm:$0xf]
  %v204 = vld [vmem:[%s2 + $0xa8] sm:$0xf]
  %v205 = vld [vmem:[%s2 + $0xac] sm:$0xf]
  %v206 = vld [vmem:[%s2 + $0xb0] sm:$0xf]
  %v207 = vld [vmem:[%s2 + $0xb4] sm:$0xf]
  %v208 = vld [vmem:[%s2 + $0xb8] sm:$0xf]
  %v209 = vld [vmem:[%s2 + $0xbc] sm:$0xf]
  %v242 = vunpack.c.l.b16 %v18
  %v243 = vunpack.c.h.b16 %v18
  %v244 = vunpack.c.l.b16 %v19
  %v245 = vunpack.c.l.b16 %v21
  %v246 = vunpack.c.h.b16 %v21
  %v247 = vunpack.c.l.b16 %v22
  %v248 = vunpack.c.l.b16 %v24
  %v249 = vunpack.c.h.b16 %v24
  %v250 = vunpack.c.l.b16 %v25
  %v251 = vunpack.c.l.b16 %v27
  %v252 = vunpack.c.h.b16 %v27
  %v253 = vunpack.c.l.b16 %v28
  %v254 = vunpack.c.l.b16 %v30
  %v255 = vunpack.c.h.b16 %v30
  %v256 = vunpack.c.l.b16 %v31
  %v257 = vunpack.c.l.b16 %v33
  %v258 = vunpack.c.h.b16 %v33
  %v259 = vunpack.c.l.b16 %v34
  %v260 = vunpack.c.l.b16 %v36
  %v261 = vunpack.c.h.b16 %v36
  %v262 = vunpack.c.l.b16 %v37
  %v263 = vunpack.c.l.b16 %v39
  %v264 = vunpack.c.h.b16 %v39
  %v265 = vunpack.c.l.b16 %v40
  %v266 = vunpack.c.l.b16 %v42
  %v267 = vunpack.c.h.b16 %v42
  %v268 = vunpack.c.l.b16 %v43
  %v269 = vunpack.c.l.b16 %v45
  %v270 = vunpack.c.h.b16 %v45
  %v271 = vunpack.c.l.b16 %v46
  %v272 = vunpack.c.l.b16 %v48
  %v273 = vunpack.c.h.b16 %v48
  %v274 = vunpack.c.l.b16 %v49
  %v275 = vunpack.c.l.b16 %v51
  %v276 = vunpack.c.h.b16 %v51
  %v277 = vunpack.c.l.b16 %v52
  %v278 = vunpack.c.l.b16 %v54
  %v279 = vunpack.c.h.b16 %v54
  %v280 = vunpack.c.l.b16 %v55
  %v281 = vunpack.c.l.b16 %v57
  %v282 = vunpack.c.h.b16 %v57
  %v283 = vunpack.c.l.b16 %v58
  %v284 = vunpack.c.l.b16 %v60
  %v285 = vunpack.c.h.b16 %v60
  %v286 = vunpack.c.l.b16 %v61
  %v287 = vunpack.c.l.b16 %v63
  %v288 = vunpack.c.h.b16 %v63
  %v289 = vunpack.c.l.b16 %v64
  %v290 = vpack.c.b16 %v245, %v242
  %v291 = vpack.c.b16 %v246, %v243
  %v292 = vpack.c.b16 %v247, %v244
  %v293 = vpack.c.b16 %v251, %v248
  %v294 = vpack.c.b16 %v252, %v249
  %v295 = vpack.c.b16 %v253, %v250
  %v296 = vpack.c.b16 %v257, %v254
  %v297 = vpack.c.b16 %v258, %v255
  %v298 = vpack.c.b16 %v259, %v256
  %v299 = vpack.c.b16 %v263, %v260
  %v300 = vpack.c.b16 %v264, %v261
  %v301 = vpack.c.b16 %v265, %v262
  %v302 = vpack.c.b16 %v269, %v266
  %v303 = vpack.c.b16 %v270, %v267
  %v304 = vpack.c.b16 %v271, %v268
  %v305 = vpack.c.b16 %v275, %v272
  %v306 = vpack.c.b16 %v276, %v273
  %v307 = vpack.c.b16 %v277, %v274
  %v308 = vpack.c.b16 %v281, %v278
  %v309 = vpack.c.b16 %v282, %v279
  %v310 = vpack.c.b16 %v283, %v280
  %v311 = vpack.c.b16 %v287, %v284
  %v312 = vpack.c.b16 %v288, %v285
  %v313 = vpack.c.b16 %v289, %v286
  %v386 = vunpack.c.l.b16 %v162
  %v387 = vunpack.c.l.b16 %v163
  %v388 = vunpack.c.l.b16 %v164
  %v389 = vunpack.c.l.b16 %v165
  %v390 = vunpack.c.l.b16 %v166
  %v391 = vunpack.c.l.b16 %v167
  %v392 = vunpack.c.l.b16 %v168
  %v393 = vunpack.c.l.b16 %v169
  %v394 = vunpack.c.l.b16 %v170
  %v395 = vunpack.c.l.b16 %v171
  %v396 = vunpack.c.l.b16 %v172
  %v397 = vunpack.c.l.b16 %v173
  %v398 = vunpack.c.l.b16 %v174
  %v399 = vunpack.c.l.b16 %v175
  %v400 = vunpack.c.l.b16 %v176
  %v401 = vunpack.c.l.b16 %v177
  %v402 = vunpack.c.l.b16 %v178
  %v403 = vunpack.c.l.b16 %v179
  %v404 = vunpack.c.l.b16 %v180
  %v405 = vunpack.c.l.b16 %v181
  %v406 = vunpack.c.l.b16 %v182
  %v407 = vunpack.c.l.b16 %v183
  %v408 = vunpack.c.l.b16 %v184
  %v409 = vunpack.c.l.b16 %v185
  %v410 = vunpack.c.l.b16 %v186
  %v411 = vunpack.c.l.b16 %v187
  %v412 = vunpack.c.l.b16 %v188
  %v413 = vunpack.c.l.b16 %v189
  %v414 = vunpack.c.l.b16 %v190
  %v415 = vunpack.c.l.b16 %v191
  %v416 = vunpack.c.l.b16 %v192
  %v417 = vunpack.c.l.b16 %v193
  %v418 = vunpack.c.l.b16 %v194
  %v419 = vunpack.c.l.b16 %v195
  %v420 = vunpack.c.l.b16 %v196
  %v421 = vunpack.c.l.b16 %v197
  %v422 = vunpack.c.l.b16 %v198
  %v423 = vunpack.c.l.b16 %v199
  %v424 = vunpack.c.l.b16 %v200
  %v425 = vunpack.c.l.b16 %v201
  %v426 = vunpack.c.l.b16 %v202
  %v427 = vunpack.c.l.b16 %v203
  %v428 = vunpack.c.l.b16 %v204
  %v429 = vunpack.c.l.b16 %v205
  %v430 = vunpack.c.l.b16 %v206
  %v431 = vunpack.c.l.b16 %v207
  %v432 = vunpack.c.l.b16 %v208
  %v433 = vunpack.c.l.b16 %v209
  %v434 = vpack.c.b16 %v387, %v386
  %v435 = vpack.c.b16 %v389, %v388
  %v436 = vpack.c.b16 %v391, %v390
  %v437 = vpack.c.b16 %v393, %v392
  %v438 = vpack.c.b16 %v395, %v394
  %v439 = vpack.c.b16 %v397, %v396
  %v440 = vpack.c.b16 %v399, %v398
  %v441 = vpack.c.b16 %v401, %v400
  %v442 = vpack.c.b16 %v403, %v402
  %v443 = vpack.c.b16 %v405, %v404
  %v444 = vpack.c.b16 %v407, %v406
  %v445 = vpack.c.b16 %v409, %v408
  %v446 = vpack.c.b16 %v411, %v410
  %v447 = vpack.c.b16 %v413, %v412
  %v448 = vpack.c.b16 %v415, %v414
  %v449 = vpack.c.b16 %v417, %v416
  %v450 = vpack.c.b16 %v419, %v418
  %v451 = vpack.c.b16 %v421, %v420
  %v452 = vpack.c.b16 %v423, %v422
  %v453 = vpack.c.b16 %v425, %v424
  %v454 = vpack.c.b16 %v427, %v426
  %v455 = vpack.c.b16 %v429, %v428
  %v456 = vpack.c.b16 %v431, %v430
  %v457 = vpack.c.b16 %v433, %v432
  %482 = vmatprep.subr.bf16.mxu0 0
  %483 = vmatpush1.bf16.msra.mxu0 %v434
  %484 = vmatprep.subr.bf16.mxu0 0
  %485 = vmatpush1.bf16.msra.mxu0 %v435
  %486 = vmatprep.subr.bf16.mxu0 0
  %487 = vmatpush1.bf16.msra.mxu0 %v436
  %488 = vmatprep.subr.bf16.mxu0 0
  %489 = vmatpush1.bf16.msra.mxu0 %v437
  %490 = vmatprep.subr.bf16.mxu0 0
  %491 = vmatpush1.bf16.msra.mxu0 %v438
  %492 = vmatprep.subr.bf16.mxu0 0
  %493 = vmatpush1.bf16.msra.mxu0 %v439
  %494 = vmatprep.subr.bf16.mxu0 0
  %495 = vmatpush1.bf16.msra.mxu0 %v440
  %496 = vmatprep.subr.bf16.mxu0 0
  %497 = vmatpush1.bf16.msra.mxu0 %v441
  %498 = vmatprep.subr.bf16.mxu0 0
  %499 = vmatpush1.bf16.msra.mxu0 %v442
  %500 = vmatprep.subr.bf16.mxu0 0
  %501 = vmatpush1.bf16.msra.mxu0 %v443
  %502 = vmatprep.subr.bf16.mxu0 0
  %503 = vmatpush1.bf16.msra.mxu0 %v444
  %504 = vmatprep.subr.bf16.mxu0 0
  %505 = vmatpush1.bf16.msra.mxu0 %v445
  %506 = vmatprep.subr.bf16.mxu0 0
  %507 = vmatpush1.bf16.msra.mxu0 %v446
  %508 = vmatprep.subr.bf16.mxu0 0
  %509 = vmatpush1.bf16.msra.mxu0 %v447
  %510 = vmatprep.subr.bf16.mxu0 0
  %511 = vmatpush1.bf16.msra.mxu0 %v448
  %512 = vmatprep.subr.bf16.mxu0 0
  %513 = vmatpush1.bf16.msra.mxu0 %v449
  %514 = vmatprep.mubr.bf16.mxu0 %v291
  %515 = vmatmul.mubr.bf16.gmra.mrb[0].mxu0 %v290
  %v516 = vpop.f32.mrb[0].mxu0
  %v517 = vadd.f32 0.0, %v516
  %v518 = vpop.f32.mrb[0].mxu0
  %v519 = vpop.f32.mrb[0].mxu0
  %v520 = vadd.f32 0.0, %v519
  %v521 = vpop.f32.mrb[0].mxu0
  %522 = vmatprep.mubr.bf16.mxu0 %v294
  %523 = vmatmul.mubr.bf16.gmra.mrb[0].mxu0 %v293
  %v524 = vpop.f32.mrb[0].mxu0
  %v525 = vadd.f32 0.0, %v524
  %v526 = vpop.f32.mrb[0].mxu0
  %v527 = vpop.f32.mrb[0].mxu0
  %v528 = vadd.f32 0.0, %v527
  %v529 = vpop.f32.mrb[0].mxu0
  %530 = vmatprep.mubr.bf16.mxu0 %v297
  %531 = vmatmul.mubr.bf16.gmra.mrb[0].mxu0 %v296
  %v532 = vpop.f32.mrb[0].mxu0
  %v533 = vadd.f32 0.0, %v532
  %v534 = vpop.f32.mrb[0].mxu0
  %v535 = vpop.f32.mrb[0].mxu0
  %v536 = vadd.f32 0.0, %v535
  %v537 = vpop.f32.mrb[0].mxu0
  %538 = vmatprep.mubr.bf16.mxu0 %v300
  %539 = vmatmul.mubr.bf16.gmra.mrb[0].mxu0 %v299
  %v540 = vpop.f32.mrb[0].mxu0
  %v541 = vadd.f32 0.0, %v540
  %v542 = vpop.f32.mrb[0].mxu0
  %v543 = vpop.f32.mrb[0].mxu0
  %v544 = vadd.f32 0.0, %v543
  %v545 = vpop.f32.mrb[0].mxu0
  %546 = vmatprep.mubr.bf16.mxu0 %v303
  %547 = vmatmul.mubr.bf16.gmra.mrb[0].mxu0 %v302
  %v548 = vpop.f32.mrb[0].mxu0
  %v549 = vadd.f32 0.0, %v548
  %v550 = vpop.f32.mrb[0].mxu0
  %v551 = vpop.f32.mrb[0].mxu0
  %v552 = vadd.f32 0.0, %v551
  %v553 = vpop.f32.mrb[0].mxu0
  %554 = vmatprep.mubr.bf16.mxu0 %v306
  %555 = vmatmul.mubr.bf16.gmra.mrb[0].mxu0 %v305
  %v556 = vpop.f32.mrb[0].mxu0
  %v557 = vadd.f32 0.0, %v556
  %v558 = vpop.f32.mrb[0].mxu0
  %v559 = vpop.f32.mrb[0].mxu0
  %v560 = vadd.f32 0.0, %v559
  %v561 = vpop.f32.mrb[0].mxu0
  %562 = vmatprep.mubr.bf16.mxu0 %v309
  %563 = vmatmul.mubr.bf16.gmra.mrb[0].mxu0 %v308
  %v564 = vpop.f32.mrb[0].mxu0
  %v565 = vadd.f32 0.0, %v564
  %v566 = vpop.f32.mrb[0].mxu0
  %v567 = vpop.f32.mrb[0].mxu0
  %v568 = vadd.f32 0.0, %v567
  %v569 = vpop.f32.mrb[0].mxu0
  %570 = vmatprep.mubr.bf16.mxu0 %v312
  %571 = vmatmul.mubr.bf16.gmra.mrb[0].mxu0 %v311
  %v572 = vpop.f32.mrb[0].mxu0
  %v573 = vadd.f32 0.0, %v572
  %v574 = vpop.f32.mrb[0].mxu0
  %v575 = vpop.f32.mrb[0].mxu0
  %v576 = vadd.f32 0.0, %v575
  %v577 = vpop.f32.mrb[0].mxu0
  %578 = vdwg.mxu0
  %579 = vmatprep.subr.bf16.mxu0 0
  %580 = vmatpush1.bf16.msra.mxu0 %v450
  %581 = vmatprep.subr.bf16.mxu0 0
  %582 = vmatpush1.bf16.msra.mxu0 %v451
  %583 = vmatprep.subr.bf16.mxu0 0
  %584 = vmatpush1.bf16.msra.mxu0 %v452
  %585 = vmatprep.subr.bf16.mxu0 0
  %586 = vmatpush1.bf16.msra.mxu0 %v453
  %587 = vmatprep.subr.bf16.mxu0 0
  %588 = vmatpush1.bf16.msra.mxu0 %v454
  %589 = vmatprep.subr.bf16.mxu0 0
  %590 = vmatpush1.bf16.msra.mxu0 %v455
  %591 = vmatprep.subr.bf16.mxu0 0
  %592 = vmatpush1.bf16.msra.mxu0 %v456
  %593 = vmatprep.subr.bf16.mxu0 0
  %594 = vmatpush1.bf16.msra.mxu0 %v457
  %595 = vmatprep.subr.bf16.mxu0 0
  %596 = vmatpush1.bf16.msra.mxu0 0
  %597 = vmatprep.subr.bf16.mxu0 0
  %598 = vmatpush1.bf16.msra.mxu0 0
  %599 = vmatprep.subr.bf16.mxu0 0
  %600 = vmatpush1.bf16.msra.mxu0 0
  %601 = vmatprep.subr.bf16.mxu0 0
  %602 = vmatpush1.bf16.msra.mxu0 0
  %603 = vmatprep.subr.bf16.mxu0 0
  %604 = vmatpush1.bf16.msra.mxu0 0
  %605 = vmatprep.subr.bf16.mxu0 0
  %606 = vmatpush1.bf16.msra.mxu0 0
  %607 = vmatprep.subr.bf16.mxu0 0
  %608 = vmatpush1.bf16.msra.mxu0 0
  %609 = vmatprep.subr.bf16.mxu0 0
  %610 = vmatpush1.bf16.msra.mxu0 0
  %611 = vmatprep.mubr.bf16.mxu0 0
  %612 = vmatmul.mubr.bf16.gmra.mrb[0].mxu0 %v292
  %v613 = vpop.f32.mrb[0].mxu0
  %v614 = vadd.f32 %v517, %v613
  %v615 = vpop.f32.mrb[0].mxu0
  %v616 = vpop.f32.mrb[0].mxu0
  %v617 = vadd.f32 %v520, %v616
  %v618 = vpop.f32.mrb[0].mxu0
  %619 = vmatprep.mubr.bf16.mxu0 0
  %620 = vmatmul.mubr.bf16.gmra.mrb[0].mxu0 %v295
  %v621 = vpop.f32.mrb[0].mxu0
  %v622 = vadd.f32 %v525, %v621
  %v623 = vpop.f32.mrb[0].mxu0
  %v624 = vpop.f32.mrb[0].mxu0
  %v625 = vadd.f32 %v528, %v624
  %v626 = vpop.f32.mrb[0].mxu0
  %627 = vmatprep.mubr.bf16.mxu0 0
  %628 = vmatmul.mubr.bf16.gmra.mrb[0].mxu0 %v298
  %v629 = vpop.f32.mrb[0].mxu0
  %v630 = vadd.f32 %v533, %v629
  %v631 = vpop.f32.mrb[0].mxu0
  %v632 = vpop.f32.mrb[0].mxu0
  %v633 = vadd.f32 %v536, %v632
  %v634 = vpop.f32.mrb[0].mxu0
  %635 = vmatprep.mubr.bf16.mxu0 0
  %636 = vmatmul.mubr.bf16.gmra.mrb[0].mxu0 %v301
  %v637 = vpop.f32.mrb[0].mxu0
  %v638 = vadd.f32 %v541, %v637
  %v639 = vpop.f32.mrb[0].mxu0
  %v640 = vpop.f32.mrb[0].mxu0
  %v641 = vadd.f32 %v544, %v640
  %v642 = vpop.f32.mrb[0].mxu0
  %643 = vmatprep.mubr.bf16.mxu0 0
  %644 = vmatmul.mubr.bf16.gmra.mrb[0].mxu0 %v304
  %v645 = vpop.f32.mrb[0].mxu0
  %v646 = vadd.f32 %v549, %v645
  %v647 = vpop.f32.mrb[0].mxu0
  %v648 = vpop.f32.mrb[0].mxu0
  %v649 = vadd.f32 %v552, %v648
  %v650 = vpop.f32.mrb[0].mxu0
  %651 = vmatprep.mubr.bf16.mxu0 0
  %652 = vmatmul.mubr.bf16.gmra.mrb[0].mxu0 %v307
  %v653 = vpop.f32.mrb[0].mxu0
  %v654 = vadd.f32 %v557, %v653
  %v655 = vpop.f32.mrb[0].mxu0
  %v656 = vpop.f32.mrb[0].mxu0
  %v657 = vadd.f32 %v560, %v656
  %v658 = vpop.f32.mrb[0].mxu0
  %659 = vmatprep.mubr.bf16.mxu0 0
  %660 = vmatmul.mubr.bf16.gmra.mrb[0].mxu0 %v310
  %v661 = vpop.f32.mrb[0].mxu0
  %v662 = vadd.f32 %v565, %v661
  %v663 = vpop.f32.mrb[0].mxu0
  %v664 = vpop.f32.mrb[0].mxu0
  %v665 = vadd.f32 %v568, %v664
  %v666 = vpop.f32.mrb[0].mxu0
  %667 = vmatprep.mubr.bf16.mxu0 0
  %668 = vmatmul.mubr.bf16.gmra.mrb[0].mxu0 %v313
  %v669 = vpop.f32.mrb[0].mxu0
  %v670 = vadd.f32 %v573, %v669
  %v671 = vpop.f32.mrb[0].mxu0
  %v672 = vpop.f32.mrb[0].mxu0
  %v673 = vadd.f32 %v576, %v672
  %v674 = vpop.f32.mrb[0].mxu0
  %675 = vdwg.mxu0
  %vm692 = vcmask 1046528
  %v693 = vrot.slane %v614, 1
  %v694 = vrot.slane %v617, 1
  %v695 = vsel %vm692, %v693, %v694
  %v696 = vrot.slane %v622, 1
  %v697 = vsel %vm692, %v694, %v696
  %v698 = vrot.slane %v625, 1
  %v699 = vsel %vm692, %v696, %v698
  %v700 = vrot.slane %v630, 1
  %v701 = vsel %vm692, %v698, %v700
  %v702 = vrot.slane %v633, 1
  %v703 = vsel %vm692, %v700, %v702
  %v704 = vrot.slane %v638, 1
  %v705 = vsel %vm692, %v702, %v704
  %v706 = vrot.slane %v641, 1
  %v707 = vsel %vm692, %v704, %v706
  %v708 = vrot.slane %v646, 1
  %v709 = vsel %vm692, %v706, %v708
  %v710 = vrot.slane %v649, 1
  %v711 = vsel %vm692, %v708, %v710
  %v712 = vrot.slane %v654, 1
  %v713 = vsel %vm692, %v710, %v712
  %v714 = vrot.slane %v657, 1
  %v715 = vsel %vm692, %v712, %v714
  %v716 = vrot.slane %v662, 1
  %v717 = vsel %vm692, %v714, %v716
  %v718 = vrot.slane %v665, 1
  %v719 = vsel %vm692, %v716, %v718
  %v720 = vrot.slane %v670, 1
  %v721 = vsel %vm692, %v718, %v720
  %v722 = vrot.slane %v673, 1
  %v723 = vsel %vm692, %v720, %v722
  %v741 = vsel %vm692, %v722, %v693
  %v758 = vunpack.c.h.b16 %v19
  %v759 = vunpack.c.l.b16 %v20
  %v760 = vunpack.c.h.b16 %v20
  %v761 = vunpack.c.h.b16 %v22
  %v762 = vunpack.c.l.b16 %v23
  %v763 = vunpack.c.h.b16 %v23
  %v764 = vunpack.c.h.b16 %v25
  %v765 = vunpack.c.l.b16 %v26
  %v766 = vunpack.c.h.b16 %v26
  %v767 = vunpack.c.h.b16 %v28
  %v768 = vunpack.c.l.b16 %v29
  %v769 = vunpack.c.h.b16 %v29
  %v770 = vunpack.c.h.b16 %v31
  %v771 = vunpack.c.l.b16 %v32
  %v772 = vunpack.c.h.b16 %v32
  %v773 = vunpack.c.h.b16 %v34
  %v774 = vunpack.c.l.b16 %v35
  %v775 = vunpack.c.h.b16 %v35
  %v776 = vunpack.c.h.b16 %v37
  %v777 = vunpack.c.l.b16 %v38
  %v778 = vunpack.c.h.b16 %v38
  %v779 = vunpack.c.h.b16 %v40
  %v780 = vunpack.c.l.b16 %v41
  %v781 = vunpack.c.h.b16 %v41
  %v782 = vunpack.c.h.b16 %v43
  %v783 = vunpack.c.l.b16 %v44
  %v784 = vunpack.c.h.b16 %v44
  %v785 = vunpack.c.h.b16 %v46
  %v786 = vunpack.c.l.b16 %v47
  %v787 = vunpack.c.h.b16 %v47
  %v788 = vunpack.c.h.b16 %v49
  %v789 = vunpack.c.l.b16 %v50
  %v790 = vunpack.c.h.b16 %v50
  %v791 = vunpack.c.h.b16 %v52
  %v792 = vunpack.c.l.b16 %v53
  %v793 = vunpack.c.h.b16 %v53
  %v794 = vunpack.c.h.b16 %v55
  %v795 = vunpack.c.l.b16 %v56
  %v796 = vunpack.c.h.b16 %v56
  %v797 = vunpack.c.h.b16 %v58
  %v798 = vunpack.c.l.b16 %v59
  %v799 = vunpack.c.h.b16 %v59
  %v800 = vunpack.c.h.b16 %v61
  %v801 = vunpack.c.l.b16 %v62
  %v802 = vunpack.c.h.b16 %v62
  %v803 = vunpack.c.h.b16 %v64
  %v804 = vunpack.c.l.b16 %v65
  %v805 = vunpack.c.h.b16 %v65
  %v806 = vpack.c.b16 %v761, %v758
  %v807 = vpack.c.b16 %v762, %v759
  %v808 = vpack.c.b16 %v763, %v760
  %v809 = vpack.c.b16 %v767, %v764
  %v810 = vpack.c.b16 %v768, %v765
  %v811 = vpack.c.b16 %v769, %v766
  %v812 = vpack.c.b16 %v773, %v770
  %v813 = vpack.c.b16 %v774, %v771
  %v814 = vpack.c.b16 %v775, %v772
  %v815 = vpack.c.b16 %v779, %v776
  %v816 = vpack.c.b16 %v780, %v777
  %v817 = vpack.c.b16 %v781, %v778
  %v818 = vpack.c.b16 %v785, %v782
  %v819 = vpack.c.b16 %v786, %v783
  %v820 = vpack.c.b16 %v787, %v784
  %v821 = vpack.c.b16 %v791, %v788
  %v822 = vpack.c.b16 %v792, %v789
  %v823 = vpack.c.b16 %v793, %v790
  %v824 = vpack.c.b16 %v797, %v794
  %v825 = vpack.c.b16 %v798, %v795
  %v826 = vpack.c.b16 %v799, %v796
  %v827 = vpack.c.b16 %v803, %v800
  %v828 = vpack.c.b16 %v804, %v801
  %v829 = vpack.c.b16 %v805, %v802
  %v950 = vunpack.c.l.b16 %v66
  %v951 = vunpack.c.l.b16 %v67
  %v952 = vunpack.c.l.b16 %v68
  %v953 = vunpack.c.l.b16 %v69
  %v954 = vunpack.c.l.b16 %v70
  %v955 = vunpack.c.l.b16 %v71
  %v956 = vunpack.c.l.b16 %v72
  %v957 = vunpack.c.l.b16 %v73
  %v958 = vunpack.c.l.b16 %v74
  %v959 = vunpack.c.l.b16 %v75
  %v960 = vunpack.c.l.b16 %v76
  %v961 = vunpack.c.l.b16 %v77
  %v962 = vunpack.c.l.b16 %v78
  %v963 = vunpack.c.l.b16 %v79
  %v964 = vunpack.c.l.b16 %v80
  %v965 = vunpack.c.l.b16 %v81
  %v966 = vunpack.c.l.b16 %v82
  %v967 = vunpack.c.l.b16 %v83
  %v968 = vunpack.c.l.b16 %v84
  %v969 = vunpack.c.l.b16 %v85
  %v970 = vunpack.c.l.b16 %v86
  %v971 = vunpack.c.l.b16 %v87
  %v972 = vunpack.c.l.b16 %v88
  %v973 = vunpack.c.l.b16 %v89
  %v974 = vunpack.c.l.b16 %v90
  %v975 = vunpack.c.l.b16 %v91
  %v976 = vunpack.c.l.b16 %v92
  %v977 = vunpack.c.l.b16 %v93
  %v978 = vunpack.c.l.b16 %v94
  %v979 = vunpack.c.l.b16 %v95
  %v980 = vunpack.c.l.b16 %v96
  %v981 = vunpack.c.l.b16 %v97
  %v982 = vunpack.c.l.b16 %v98
  %v983 = vunpack.c.l.b16 %v99
  %v984 = vunpack.c.l.b16 %v100
  %v985 = vunpack.c.l.b16 %v101
  %v986 = vunpack.c.l.b16 %v102
  %v987 = vunpack.c.l.b16 %v103
  %v988 = vunpack.c.l.b16 %v104
  %v989 = vunpack.c.l.b16 %v105
  %v990 = vunpack.c.l.b16 %v106
  %v991 = vunpack.c.l.b16 %v107
  %v992 = vunpack.c.l.b16 %v108
  %v993 = vunpack.c.l.b16 %v109
  %v994 = vunpack.c.l.b16 %v110
  %v995 = vunpack.c.l.b16 %v111
  %v996 = vunpack.c.l.b16 %v112
  %v997 = vunpack.c.l.b16 %v113
  %v998 = vunpack.c.l.b16 %v114
  %v999 = vunpack.c.l.b16 %v115
  %v1000 = vunpack.c.l.b16 %v116
  %v1001 = vunpack.c.l.b16 %v117
  %v1002 = vunpack.c.l.b16 %v118
  %v1003 = vunpack.c.l.b16 %v119
  %v1004 = vunpack.c.l.b16 %v120
  %v1005 = vunpack.c.l.b16 %v121
  %v1006 = vunpack.c.l.b16 %v122
  %v1007 = vunpack.c.l.b16 %v123
  %v1008 = vunpack.c.l.b16 %v124
  %v1009 = vunpack.c.l.b16 %v125
  %v1010 = vunpack.c.l.b16 %v126
  %v1011 = vunpack.c.l.b16 %v127
  %v1012 = vunpack.c.l.b16 %v128
  %v1013 = vunpack.c.l.b16 %v129
  %v1014 = vunpack.c.l.b16 %v130
  %v1015 = vunpack.c.l.b16 %v131
  %v1016 = vunpack.c.l.b16 %v132
  %v1017 = vunpack.c.l.b16 %v133
  %v1018 = vunpack.c.l.b16 %v134
  %v1019 = vunpack.c.l.b16 %v135
  %v1020 = vunpack.c.l.b16 %v136
  %v1021 = vunpack.c.l.b16 %v137
  %v1022 = vunpack.c.l.b16 %v138
  %v1023 = vunpack.c.l.b16 %v139
  %v1024 = vunpack.c.l.b16 %v140
  %v1025 = vunpack.c.l.b16 %v141
  %v1026 = vunpack.c.l.b16 %v142
  %v1027 = vunpack.c.l.b16 %v143
  %v1028 = vunpack.c.l.b16 %v144
  %v1029 = vunpack.c.l.b16 %v145
  %v1030 = vunpack.c.l.b16 %v146
  %v1031 = vunpack.c.l.b16 %v147
  %v1032 = vunpack.c.l.b16 %v148
  %v1033 = vunpack.c.l.b16 %v149
  %v1034 = vunpack.c.l.b16 %v150
  %v1035 = vunpack.c.l.b16 %v151
  %v1036 = vunpack.c.l.b16 %v152
  %v1037 = vunpack.c.l.b16 %v153
  %v1038 = vunpack.c.l.b16 %v154
  %v1039 = vunpack.c.l.b16 %v155
  %v1040 = vunpack.c.l.b16 %v156
  %v1041 = vunpack.c.l.b16 %v157
  %v1042 = vunpack.c.l.b16 %v158
  %v1043 = vunpack.c.l.b16 %v159
  %v1044 = vunpack.c.l.b16 %v160
  %v1045 = vunpack.c.l.b16 %v161
  %v1046 = vpack.c.b16 %v951, %v950
  %v1047 = vpack.c.b16 %v953, %v952
  %v1048 = vpack.c.b16 %v955, %v954
  %v1049 = vpack.c.b16 %v957, %v956
  %v1050 = vpack.c.b16 %v959, %v958
  %v1051 = vpack.c.b16 %v961, %v960
  %v1052 = vpack.c.b16 %v963, %v962
  %v1053 = vpack.c.b16 %v965, %v964
  %v1054 = vpack.c.b16 %v967, %v966
  %v1055 = vpack.c.b16 %v969, %v968
  %v1056 = vpack.c.b16 %v971, %v970
  %v1057 = vpack.c.b16 %v973, %v972
  %v1058 = vpack.c.b16 %v975, %v974
  %v1059 = vpack.c.b16 %v977, %v976
  %v1060 = vpack.c.b16 %v979, %v978
  %v1061 = vpack.c.b16 %v981, %v980
  %v1062 = vpack.c.b16 %v983, %v982
  %v1063 = vpack.c.b16 %v985, %v984
  %v1064 = vpack.c.b16 %v987, %v986
  %v1065 = vpack.c.b16 %v989, %v988
  %v1066 = vpack.c.b16 %v991, %v990
  %v1067 = vpack.c.b16 %v993, %v992
  %v1068 = vpack.c.b16 %v995, %v994
  %v1069 = vpack.c.b16 %v997, %v996
  %v1070 = vpack.c.b16 %v999, %v998
  %v1071 = vpack.c.b16 %v1001, %v1000
  %v1072 = vpack.c.b16 %v1003, %v1002
  %v1073 = vpack.c.b16 %v1005, %v1004
  %v1074 = vpack.c.b16 %v1007, %v1006
  %v1075 = vpack.c.b16 %v1009, %v1008
  %v1076 = vpack.c.b16 %v1011, %v1010
  %v1077 = vpack.c.b16 %v1013, %v1012
  %v1078 = vpack.c.b16 %v1015, %v1014
  %v1079 = vpack.c.b16 %v1017, %v1016
  %v1080 = vpack.c.b16 %v1019, %v1018
  %v1081 = vpack.c.b16 %v1021, %v1020
  %v1082 = vpack.c.b16 %v1023, %v1022
  %v1083 = vpack.c.b16 %v1025, %v1024
  %v1084 = vpack.c.b16 %v1027, %v1026
  %v1085 = vpack.c.b16 %v1029, %v1028
  %v1086 = vpack.c.b16 %v1031, %v1030
  %v1087 = vpack.c.b16 %v1033, %v1032
  %v1088 = vpack.c.b16 %v1035, %v1034
  %v1089 = vpack.c.b16 %v1037, %v1036
  %v1090 = vpack.c.b16 %v1039, %v1038
  %v1091 = vpack.c.b16 %v1041, %v1040
  %v1092 = vpack.c.b16 %v1043, %v1042
  %v1093 = vpack.c.b16 %v1045, %v1044
  %1142 = vmatprep.subr.bf16.mxu0 0
  %1143 = vmatpush1.bf16.msra.mxu0 %v1046
  %1144 = vmatprep.subr.bf16.mxu0 0
  %1145 = vmatpush1.bf16.msra.mxu0 %v1047
  %1146 = vmatprep.subr.bf16.mxu0 0
  %1147 = vmatpush1.bf16.msra.mxu0 %v1048
  %1148 = vmatprep.subr.bf16.mxu0 0
  %1149 = vmatpush1.bf16.msra.mxu0 %v1049
  %1150 = vmatprep.subr.bf16.mxu0 0
  %1151 = vmatpush1.bf16.msra.mxu0 %v1050
  %1152 = vmatprep.subr.bf16.mxu0 0
  %1153 = vmatpush1.bf16.msra.mxu0 %v1051
  %1154 = vmatprep.subr.bf16.mxu0 0
  %1155 = vmatpush1.bf16.msra.mxu0 %v1052
  %1156 = vmatprep.subr.bf16.mxu0 0
  %1157 = vmatpush1.bf16.msra.mxu0 %v1053
  %1158 = vmatprep.subr.bf16.mxu0 0
  %1159 = vmatpush1.bf16.msra.mxu0 %v1054
  %1160 = vmatprep.subr.bf16.mxu0 0
  %1161 = vmatpush1.bf16.msra.mxu0 %v1055
  %1162 = vmatprep.subr.bf16.mxu0 0
  %1163 = vmatpush1.bf16.msra.mxu0 %v1056
  %1164 = vmatprep.subr.bf16.mxu0 0
  %1165 = vmatpush1.bf16.msra.mxu0 %v1057
  %1166 = vmatprep.subr.bf16.mxu0 0
  %1167 = vmatpush1.bf16.msra.mxu0 %v1058
  %1168 = vmatprep.subr.bf16.mxu0 0
  %1169 = vmatpush1.bf16.msra.mxu0 %v1059
  %1170 = vmatprep.subr.bf16.mxu0 0
  %1171 = vmatpush1.bf16.msra.mxu0 %v1060
  %1172 = vmatprep.subr.bf16.mxu0 0
  %1173 = vmatpush1.bf16.msra.mxu0 %v1061
  %1174 = vmatprep.mubr.bf16.mxu0 %v291
  %1175 = vmatmul.mubr.bf16.gmra.mrb[0].mxu0 %v290
  %v1176 = vpop.f32.mrb[0].mxu0
  %v1177 = vadd.f32 %v695, %v1176
  %v1178 = vpop.f32.mrb[0].mxu0
  %v1179 = vpop.f32.mrb[0].mxu0
  %v1180 = vadd.f32 %v697, %v1179
  %v1181 = vpop.f32.mrb[0].mxu0
  %1182 = vmatprep.mubr.bf16.mxu0 %v294
  %1183 = vmatmul.mubr.bf16.gmra.mrb[0].mxu0 %v293
  %v1184 = vpop.f32.mrb[0].mxu0
  %v1185 = vadd.f32 %v699, %v1184
  %v1186 = vpop.f32.mrb[0].mxu0
  %v1187 = vpop.f32.mrb[0].mxu0
  %v1188 = vadd.f32 %v701, %v1187
  %v1189 = vpop.f32.mrb[0].mxu0
  %1190 = vmatprep.mubr.bf16.mxu0 %v297
  %1191 = vmatmul.mubr.bf16.gmra.mrb[0].mxu0 %v296
  %v1192 = vpop.f32.mrb[0].mxu0
  %v1193 = vadd.f32 %v703, %v1192
  %v1194 = vpop.f32.mrb[0].mxu0
  %v1195 = vpop.f32.mrb[0].mxu0
  %v1196 = vadd.f32 %v705, %v1195
  %v1197 = vpop.f32.mrb[0].mxu0
  %1198 = vmatprep.mubr.bf16.mxu0 %v300
  %1199 = vmatmul.mubr.bf16.gmra.mrb[0].mxu0 %v299
  %v1200 = vpop.f32.mrb[0].mxu0
  %v1201 = vadd.f32 %v707, %v1200
  %v1202 = vpop.f32.mrb[0].mxu0
  %v1203 = vpop.f32.mrb[0].mxu0
  %v1204 = vadd.f32 %v709, %v1203
  %v1205 = vpop.f32.mrb[0].mxu0
  %1206 = vmatprep.mubr.bf16.mxu0 %v303
  %1207 = vmatmul.mubr.bf16.gmra.mrb[0].mxu0 %v302
  %v1208 = vpop.f32.mrb[0].mxu0
  %v1209 = vadd.f32 %v711, %v1208
  %v1210 = vpop.f32.mrb[0].mxu0
  %v1211 = vpop.f32.mrb[0].mxu0
  %v1212 = vadd.f32 %v713, %v1211
  %v1213 = vpop.f32.mrb[0].mxu0
  %1214 = vmatprep.mubr.bf16.mxu0 %v306
  %1215 = vmatmul.mubr.bf16.gmra.mrb[0].mxu0 %v305
  %v1216 = vpop.f32.mrb[0].mxu0
  %v1217 = vadd.f32 %v715, %v1216
  %v1218 = vpop.f32.mrb[0].mxu0
  %v1219 = vpop.f32.mrb[0].mxu0
  %v1220 = vadd.f32 %v717, %v1219
  %v1221 = vpop.f32.mrb[0].mxu0
  %1222 = vmatprep.mubr.bf16.mxu0 %v309
  %1223 = vmatmul.mubr.bf16.gmra.mrb[0].mxu0 %v308
  %v1224 = vpop.f32.mrb[0].mxu0
  %v1225 = vadd.f32 %v719, %v1224
  %v1226 = vpop.f32.mrb[0].mxu0
  %v1227 = vpop.f32.mrb[0].mxu0
  %v1228 = vadd.f32 %v721, %v1227
  %v1229 = vpop.f32.mrb[0].mxu0
  %1230 = vmatprep.mubr.bf16.mxu0 %v312
  %1231 = vmatmul.mubr.bf16.gmra.mrb[0].mxu0 %v311
  %v1232 = vpop.f32.mrb[0].mxu0
  %v1233 = vadd.f32 %v723, %v1232
  %v1234 = vpop.f32.mrb[0].mxu0
  %v1235 = vpop.f32.mrb[0].mxu0
  %v1236 = vadd.f32 %v741, %v1235
  %v1237 = vpop.f32.mrb[0].mxu0
  %1238 = vdwg.mxu0
  %1239 = vmatprep.subr.bf16.mxu0 0
  %1240 = vmatpush1.bf16.msra.mxu0 %v1062
  %1241 = vmatprep.subr.bf16.mxu0 0
  %1242 = vmatpush1.bf16.msra.mxu0 %v1063
  %1243 = vmatprep.subr.bf16.mxu0 0
  %1244 = vmatpush1.bf16.msra.mxu0 %v1064
  %1245 = vmatprep.subr.bf16.mxu0 0
  %1246 = vmatpush1.bf16.msra.mxu0 %v1065
  %1247 = vmatprep.subr.bf16.mxu0 0
  %1248 = vmatpush1.bf16.msra.mxu0 %v1066
  %1249 = vmatprep.subr.bf16.mxu0 0
  %1250 = vmatpush1.bf16.msra.mxu0 %v1067
  %1251 = vmatprep.subr.bf16.mxu0 0
  %1252 = vmatpush1.bf16.msra.mxu0 %v1068
  %1253 = vmatprep.subr.bf16.mxu0 0
  %1254 = vmatpush1.bf16.msra.mxu0 %v1069
  %1255 = vmatprep.subr.bf16.mxu0 0
  %1256 = vmatpush1.bf16.msra.mxu0 %v1070
  %1257 = vmatprep.subr.bf16.mxu0 0
  %1258 = vmatpush1.bf16.msra.mxu0 %v1071
  %1259 = vmatprep.subr.bf16.mxu0 0
  %1260 = vmatpush1.bf16.msra.mxu0 %v1072
  %1261 = vmatprep.subr.bf16.mxu0 0
  %1262 = vmatpush1.bf16.msra.mxu0 %v1073
  %1263 = vmatprep.subr.bf16.mxu0 0
  %1264 = vmatpush1.bf16.msra.mxu0 %v1074
  %1265 = vmatprep.subr.bf16.mxu0 0
  %1266 = vmatpush1.bf16.msra.mxu0 %v1075
  %1267 = vmatprep.subr.bf16.mxu0 0
  %1268 = vmatpush1.bf16.msra.mxu0 %v1076
  %1269 = vmatprep.subr.bf16.mxu0 0
  %1270 = vmatpush1.bf16.msra.mxu0 %v1077
  %1271 = vmatprep.mubr.bf16.mxu0 %v806
  %1272 = vmatmul.mubr.bf16.gmra.mrb[0].mxu0 %v292
  %v1273 = vpop.f32.mrb[0].mxu0
  %v1274 = vadd.f32 %v1177, %v1273
  %v1275 = vpop.f32.mrb[0].mxu0
  %v1276 = vpop.f32.mrb[0].mxu0
  %v1277 = vadd.f32 %v1180, %v1276
  %v1278 = vpop.f32.mrb[0].mxu0
  %1279 = vmatprep.mubr.bf16.mxu0 %v809
  %1280 = vmatmul.mubr.bf16.gmra.mrb[0].mxu0 %v295
  %v1281 = vpop.f32.mrb[0].mxu0
  %v1282 = vadd.f32 %v1185, %v1281
  %v1283 = vpop.f32.mrb[0].mxu0
  %v1284 = vpop.f32.mrb[0].mxu0
  %v1285 = vadd.f32 %v1188, %v1284
  %v1286 = vpop.f32.mrb[0].mxu0
  %1287 = vmatprep.mubr.bf16.mxu0 %v812
  %1288 = vmatmul.mubr.bf16.gmra.mrb[0].mxu0 %v298
  %v1289 = vpop.f32.mrb[0].mxu0
  %v1290 = vadd.f32 %v1193, %v1289
  %v1291 = vpop.f32.mrb[0].mxu0
  %v1292 = vpop.f32.mrb[0].mxu0
  %v1293 = vadd.f32 %v1196, %v1292
  %v1294 = vpop.f32.mrb[0].mxu0
  %1295 = vmatprep.mubr.bf16.mxu0 %v815
  %1296 = vmatmul.mubr.bf16.gmra.mrb[0].mxu0 %v301
  %v1297 = vpop.f32.mrb[0].mxu0
  %v1298 = vadd.f32 %v1201, %v1297
  %v1299 = vpop.f32.mrb[0].mxu0
  %v1300 = vpop.f32.mrb[0].mxu0
  %v1301 = vadd.f32 %v1204, %v1300
  %v1302 = vpop.f32.mrb[0].mxu0
  %1303 = vmatprep.mubr.bf16.mxu0 %v818
  %1304 = vmatmul.mubr.bf16.gmra.mrb[0].mxu0 %v304
  %v1305 = vpop.f32.mrb[0].mxu0
  %v1306 = vadd.f32 %v1209, %v1305
  %v1307 = vpop.f32.mrb[0].mxu0
  %v1308 = vpop.f32.mrb[0].mxu0
  %v1309 = vadd.f32 %v1212, %v1308
  %v1310 = vpop.f32.mrb[0].mxu0
  %1311 = vmatprep.mubr.bf16.mxu0 %v821
  %1312 = vmatmul.mubr.bf16.gmra.mrb[0].mxu0 %v307
  %v1313 = vpop.f32.mrb[0].mxu0
  %v1314 = vadd.f32 %v1217, %v1313
  %v1315 = vpop.f32.mrb[0].mxu0
  %v1316 = vpop.f32.mrb[0].mxu0
  %v1317 = vadd.f32 %v1220, %v1316
  %v1318 = vpop.f32.mrb[0].mxu0
  %1319 = vmatprep.mubr.bf16.mxu0 %v824
  %1320 = vmatmul.mubr.bf16.gmra.mrb[0].mxu0 %v310
  %v1321 = vpop.f32.mrb[0].mxu0
  %v1322 = vadd.f32 %v1225, %v1321
  %v1323 = vpop.f32.mrb[0].mxu0
  %v1324 = vpop.f32.mrb[0].mxu0
  %v1325 = vadd.f32 %v1228, %v1324
  %v1326 = vpop.f32.mrb[0].mxu0
  %1327 = vmatprep.mubr.bf16.mxu0 %v827
  %1328 = vmatmul.mubr.bf16.gmra.mrb[0].mxu0 %v313
  %v1329 = vpop.f32.mrb[0].mxu0
  %v1330 = vadd.f32 %v1233, %v1329
  %v1331 = vpop.f32.mrb[0].mxu0
  %v1332 = vpop.f32.mrb[0].mxu0
  %v1333 = vadd.f32 %v1236, %v1332
  %v1334 = vpop.f32.mrb[0].mxu0
  %1335 = vdwg.mxu0
  %1336 = vmatprep.subr.bf16.mxu0 0
  %1337 = vmatpush1.bf16.msra.mxu0 %v1078
  %1338 = vmatprep.subr.bf16.mxu0 0
  %1339 = vmatpush1.bf16.msra.mxu0 %v1079
  %1340 = vmatprep.subr.bf16.mxu0 0
  %1341 = vmatpush1.bf16.msra.mxu0 %v1080
  %1342 = vmatprep.subr.bf16.mxu0 0
  %1343 = vmatpush1.bf16.msra.mxu0 %v1081
  %1344 = vmatprep.subr.bf16.mxu0 0
  %1345 = vmatpush1.bf16.msra.mxu0 %v1082
  %1346 = vmatprep.subr.bf16.mxu0 0
  %1347 = vmatpush1.bf16.msra.mxu0 %v1083
  %1348 = vmatprep.subr.bf16.mxu0 0
  %1349 = vmatpush1.bf16.msra.mxu0 %v1084
  %1350 = vmatprep.subr.bf16.mxu0 0
  %1351 = vmatpush1.bf16.msra.mxu0 %v1085
  %1352 = vmatprep.subr.bf16.mxu0 0
  %1353 = vmatpush1.bf16.msra.mxu0 %v1086
  %1354 = vmatprep.subr.bf16.mxu0 0
  %1355 = vmatpush1.bf16.msra.mxu0 %v1087
  %1356 = vmatprep.subr.bf16.mxu0 0
  %1357 = vmatpush1.bf16.msra.mxu0 %v1088
  %1358 = vmatprep.subr.bf16.mxu0 0
  %1359 = vmatpush1.bf16.msra.mxu0 %v1089
  %1360 = vmatprep.subr.bf16.mxu0 0
  %1361 = vmatpush1.bf16.msra.mxu0 %v1090
  %1362 = vmatprep.subr.bf16.mxu0 0
  %1363 = vmatpush1.bf16.msra.mxu0 %v1091
  %1364 = vmatprep.subr.bf16.mxu0 0
  %1365 = vmatpush1.bf16.msra.mxu0 %v1092
  %1366 = vmatprep.subr.bf16.mxu0 0
  %1367 = vmatpush1.bf16.msra.mxu0 %v1093
  %1368 = vmatprep.mubr.bf16.mxu0 %v808
  %1369 = vmatmul.mubr.bf16.gmra.mrb[0].mxu0 %v807
  %v1370 = vpop.f32.mrb[0].mxu0
  %v1371 = vadd.f32 %v1274, %v1370
  %v1372 = vpop.f32.mrb[0].mxu0
  %v1373 = vpop.f32.mrb[0].mxu0
  %v1374 = vadd.f32 %v1277, %v1373
  %v1375 = vpop.f32.mrb[0].mxu0
  %1376 = vmatprep.mubr.bf16.mxu0 %v811
  %1377 = vmatmul.mubr.bf16.gmra.mrb[0].mxu0 %v810
  %v1378 = vpop.f32.mrb[0].mxu0
  %v1379 = vadd.f32 %v1282, %v1378
  %v1380 = vpop.f32.mrb[0].mxu0
  %v1381 = vpop.f32.mrb[0].mxu0
  %v1382 = vadd.f32 %v1285, %v1381
  %v1383 = vpop.f32.mrb[0].mxu0
  %1384 = vmatprep.mubr.bf16.mxu0 %v814
  %1385 = vmatmul.mubr.bf16.gmra.mrb[0].mxu0 %v813
  %v1386 = vpop.f32.mrb[0].mxu0
  %v1387 = vadd.f32 %v1290, %v1386
  %v1388 = vpop.f32.mrb[0].mxu0
  %v1389 = vpop.f32.mrb[0].mxu0
  %v1390 = vadd.f32 %v1293, %v1389
  %v1391 = vpop.f32.mrb[0].mxu0
  %1392 = vmatprep.mubr.bf16.mxu0 %v817
  %1393 = vmatmul.mubr.bf16.gmra.mrb[0].mxu0 %v816
  %v1394 = vpop.f32.mrb[0].mxu0
  %v1395 = vadd.f32 %v1298, %v1394
  %v1396 = vpop.f32.mrb[0].mxu0
  %v1397 = vpop.f32.mrb[0].mxu0
  %v1398 = vadd.f32 %v1301, %v1397
  %v1399 = vpop.f32.mrb[0].mxu0
  %1400 = vmatprep.mubr.bf16.mxu0 %v820
  %1401 = vmatmul.mubr.bf16.gmra.mrb[0].mxu0 %v819
  %v1402 = vpop.f32.mrb[0].mxu0
  %v1403 = vadd.f32 %v1306, %v1402
  %v1404 = vpop.f32.mrb[0].mxu0
  %v1405 = vpop.f32.mrb[0].mxu0
  %v1406 = vadd.f32 %v1309, %v1405
  %v1407 = vpop.f32.mrb[0].mxu0
  %1408 = vmatprep.mubr.bf16.mxu0 %v823
  %1409 = vmatmul.mubr.bf16.gmra.mrb[0].mxu0 %v822
  %v1410 = vpop.f32.mrb[0].mxu0
  %v1411 = vadd.f32 %v1314, %v1410
  %v1412 = vpop.f32.mrb[0].mxu0
  %v1413 = vpop.f32.mrb[0].mxu0
  %v1414 = vadd.f32 %v1317, %v1413
  %v1415 = vpop.f32.mrb[0].mxu0
  %1416 = vmatprep.mubr.bf16.mxu0 %v826
  %1417 = vmatmul.mubr.bf16.gmra.mrb[0].mxu0 %v825
  %v1418 = vpop.f32.mrb[0].mxu0
  %v1419 = vadd.f32 %v1322, %v1418
  %v1420 = vpop.f32.mrb[0].mxu0
  %v1421 = vpop.f32.mrb[0].mxu0
  %v1422 = vadd.f32 %v1325, %v1421
  %v1423 = vpop.f32.mrb[0].mxu0
  %1424 = vmatprep.mubr.bf16.mxu0 %v829
  %1425 = vmatmul.mubr.bf16.gmra.mrb[0].mxu0 %v828
  %v1426 = vpop.f32.mrb[0].mxu0
  %v1427 = vadd.f32 %v1330, %v1426
  %v1428 = vpop.f32.mrb[0].mxu0
  %v1429 = vpop.f32.mrb[0].mxu0
  %v1430 = vadd.f32 %v1333, %v1429
  %v1431 = vpop.f32.mrb[0].mxu0
  %1432 = vdwg.mxu0
  %v1433 = vld [vmem:[%s3] sm:$0xff]
  %v1434 = vlaneseq
  %v1435 = vshrl.u32 %v1434, 7
  %v1436 = vsub.s32 0, %v1435
  %v1437 = vrot.slane %v1433, %v1436
  %v1438 = vadd.f32 %v1371, %v1437
  %v1439 = vadd.f32 %v1374, %v1437
  %v1440 = vadd.f32 %v1379, %v1437
  %v1441 = vadd.f32 %v1382, %v1437
  %v1442 = vadd.f32 %v1387, %v1437
  %v1443 = vadd.f32 %v1390, %v1437
  %v1444 = vadd.f32 %v1395, %v1437
  %v1445 = vadd.f32 %v1398, %v1437
  %v1446 = vadd.f32 %v1403, %v1437
  %v1447 = vadd.f32 %v1406, %v1437
  %v1448 = vadd.f32 %v1411, %v1437
  %v1449 = vadd.f32 %v1414, %v1437
  %v1450 = vadd.f32 %v1419, %v1437
  %v1451 = vadd.f32 %v1422, %v1437
  %v1452 = vadd.f32 %v1427, %v1437
  %v1453 = vadd.f32 %v1430, %v1437
  %1454 = vadd.xlane.f32.xlu0 %v1438
  %v1455 = vpop.xlane.xlu0 %1454
  %1456 = vadd.xlane.f32.xlu0 %v1439
  %v1457 = vpop.xlane.xlu0 %1456
  %1458 = vadd.xlane.f32.xlu0 %v1440
  %v1459 = vpop.xlane.xlu0 %1458
  %1460 = vadd.xlane.f32.xlu0 %v1441
  %v1461 = vpop.xlane.xlu0 %1460
  %1462 = vadd.xlane.f32.xlu0 %v1442
  %v1463 = vpop.xlane.xlu0 %1462
  %1464 = vadd.xlane.f32.xlu0 %v1443
  %v1465 = vpop.xlane.xlu0 %1464
  %1466 = vadd.xlane.f32.xlu0 %v1444
  %v1467 = vpop.xlane.xlu0 %1466
  %1468 = vadd.xlane.f32.xlu0 %v1445
  %v1469 = vpop.xlane.xlu0 %1468
  %1470 = vadd.xlane.f32.xlu0 %v1446
  %v1471 = vpop.xlane.xlu0 %1470
  %1472 = vadd.xlane.f32.xlu0 %v1447
  %v1473 = vpop.xlane.xlu0 %1472
  %1474 = vadd.xlane.f32.xlu0 %v1448
  %v1475 = vpop.xlane.xlu0 %1474
  %1476 = vadd.xlane.f32.xlu0 %v1449
  %v1477 = vpop.xlane.xlu0 %1476
  %1478 = vadd.xlane.f32.xlu0 %v1450
  %v1479 = vpop.xlane.xlu0 %1478
  %1480 = vadd.xlane.f32.xlu0 %v1451
  %v1481 = vpop.xlane.xlu0 %1480
  %1482 = vadd.xlane.f32.xlu0 %v1452
  %v1483 = vpop.xlane.xlu0 %1482
  %1484 = vadd.xlane.f32.xlu0 %v1453
  %v1485 = vpop.xlane.xlu0 %1484
  %v1486 = vmul.f32 %v1455, 0.0625
  %v1487 = vmul.f32 %v1457, 0.0625
  %v1488 = vmul.f32 %v1459, 0.0625
  %v1489 = vmul.f32 %v1461, 0.0625
  %v1490 = vmul.f32 %v1463, 0.0625
  %v1491 = vmul.f32 %v1465, 0.0625
  %v1492 = vmul.f32 %v1467, 0.0625
  %v1493 = vmul.f32 %v1469, 0.0625
  %v1494 = vmul.f32 %v1471, 0.0625
  %v1495 = vmul.f32 %v1473, 0.0625
  %v1496 = vmul.f32 %v1475, 0.0625
  %v1497 = vmul.f32 %v1477, 0.0625
  %v1498 = vmul.f32 %v1479, 0.0625
  %v1499 = vmul.f32 %v1481, 0.0625
  %v1500 = vmul.f32 %v1483, 0.0625
  %v1501 = vmul.f32 %v1485, 0.0625
  %v1502 = vmul.f32 %v1438, %v1438
  %v1503 = vmul.f32 %v1439, %v1439
  %v1504 = vmul.f32 %v1440, %v1440
  %v1505 = vmul.f32 %v1441, %v1441
  %v1506 = vmul.f32 %v1442, %v1442
  %v1507 = vmul.f32 %v1443, %v1443
  %v1508 = vmul.f32 %v1444, %v1444
  %v1509 = vmul.f32 %v1445, %v1445
  %v1510 = vmul.f32 %v1446, %v1446
  %v1511 = vmul.f32 %v1447, %v1447
  %v1512 = vmul.f32 %v1448, %v1448
  %v1513 = vmul.f32 %v1449, %v1449
  %v1514 = vmul.f32 %v1450, %v1450
  %v1515 = vmul.f32 %v1451, %v1451
  %v1516 = vmul.f32 %v1452, %v1452
  %v1517 = vmul.f32 %v1453, %v1453
  %1518 = vadd.xlane.f32.xlu0 %v1502
  %v1519 = vpop.xlane.xlu0 %1518
  %1520 = vadd.xlane.f32.xlu0 %v1503
  %v1521 = vpop.xlane.xlu0 %1520
  %1522 = vadd.xlane.f32.xlu0 %v1504
  %v1523 = vpop.xlane.xlu0 %1522
  %1524 = vadd.xlane.f32.xlu0 %v1505
  %v1525 = vpop.xlane.xlu0 %1524
  %1526 = vadd.xlane.f32.xlu0 %v1506
  %v1527 = vpop.xlane.xlu0 %1526
  %1528 = vadd.xlane.f32.xlu0 %v1507
  %v1529 = vpop.xlane.xlu0 %1528
  %1530 = vadd.xlane.f32.xlu0 %v1508
  %v1531 = vpop.xlane.xlu0 %1530
  %1532 = vadd.xlane.f32.xlu0 %v1509
  %v1533 = vpop.xlane.xlu0 %1532
  %1534 = vadd.xlane.f32.xlu0 %v1510
  %v1535 = vpop.xlane.xlu0 %1534
  %1536 = vadd.xlane.f32.xlu0 %v1511
  %v1537 = vpop.xlane.xlu0 %1536
  %1538 = vadd.xlane.f32.xlu0 %v1512
  %v1539 = vpop.xlane.xlu0 %1538
  %1540 = vadd.xlane.f32.xlu0 %v1513
  %v1541 = vpop.xlane.xlu0 %1540
  %1542 = vadd.xlane.f32.xlu0 %v1514
  %v1543 = vpop.xlane.xlu0 %1542
  %1544 = vadd.xlane.f32.xlu0 %v1515
  %v1545 = vpop.xlane.xlu0 %1544
  %1546 = vadd.xlane.f32.xlu0 %v1516
  %v1547 = vpop.xlane.xlu0 %1546
  %1548 = vadd.xlane.f32.xlu0 %v1517
  %v1549 = vpop.xlane.xlu0 %1548
  %v1550 = vmul.f32 %v1519, 0.0625
  %v1551 = vmul.f32 %v1521, 0.0625
  %v1552 = vmul.f32 %v1523, 0.0625
  %v1553 = vmul.f32 %v1525, 0.0625
  %v1554 = vmul.f32 %v1527, 0.0625
  %v1555 = vmul.f32 %v1529, 0.0625
  %v1556 = vmul.f32 %v1531, 0.0625
  %v1557 = vmul.f32 %v1533, 0.0625
  %v1558 = vmul.f32 %v1535, 0.0625
  %v1559 = vmul.f32 %v1537, 0.0625
  %v1560 = vmul.f32 %v1539, 0.0625
  %v1561 = vmul.f32 %v1541, 0.0625
  %v1562 = vmul.f32 %v1543, 0.0625
  %v1563 = vmul.f32 %v1545, 0.0625
  %v1564 = vmul.f32 %v1547, 0.0625
  %v1565 = vmul.f32 %v1549, 0.0625
  %v1566 = vmul.f32 %v1486, %v1486
  %v1567 = vmul.f32 %v1487, %v1487
  %v1568 = vmul.f32 %v1488, %v1488
  %v1569 = vmul.f32 %v1489, %v1489
  %v1570 = vmul.f32 %v1490, %v1490
  %v1571 = vmul.f32 %v1491, %v1491
  %v1572 = vmul.f32 %v1492, %v1492
  %v1573 = vmul.f32 %v1493, %v1493
  %v1574 = vmul.f32 %v1494, %v1494
  %v1575 = vmul.f32 %v1495, %v1495
  %v1576 = vmul.f32 %v1496, %v1496
  %v1577 = vmul.f32 %v1497, %v1497
  %v1578 = vmul.f32 %v1498, %v1498
  %v1579 = vmul.f32 %v1499, %v1499
  %v1580 = vmul.f32 %v1500, %v1500
  %v1581 = vmul.f32 %v1501, %v1501
  %v1582 = vsub.f32 %v1550, %v1566
  %v1583 = vsub.f32 %v1551, %v1567
  %v1584 = vsub.f32 %v1552, %v1568
  %v1585 = vsub.f32 %v1553, %v1569
  %v1586 = vsub.f32 %v1554, %v1570
  %v1587 = vsub.f32 %v1555, %v1571
  %v1588 = vsub.f32 %v1556, %v1572
  %v1589 = vsub.f32 %v1557, %v1573
  %v1590 = vsub.f32 %v1558, %v1574
  %v1591 = vsub.f32 %v1559, %v1575
  %v1592 = vsub.f32 %v1560, %v1576
  %v1593 = vsub.f32 %v1561, %v1577
  %v1594 = vsub.f32 %v1562, %v1578
  %v1595 = vsub.f32 %v1563, %v1579
  %v1596 = vsub.f32 %v1564, %v1580
  %v1597 = vsub.f32 %v1565, %v1581
  %v1598 = vmax.f32 %v1582, 0.0
  %v1599 = vmax.f32 %v1583, 0.0
  %v1600 = vmax.f32 %v1584, 0.0
  %v1601 = vmax.f32 %v1585, 0.0
  %v1602 = vmax.f32 %v1586, 0.0
  %v1603 = vmax.f32 %v1587, 0.0
  %v1604 = vmax.f32 %v1588, 0.0
  %v1605 = vmax.f32 %v1589, 0.0
  %v1606 = vmax.f32 %v1590, 0.0
  %v1607 = vmax.f32 %v1591, 0.0
  %v1608 = vmax.f32 %v1592, 0.0
  %v1609 = vmax.f32 %v1593, 0.0
  %v1610 = vmax.f32 %v1594, 0.0
  %v1611 = vmax.f32 %v1595, 0.0
  %v1612 = vmax.f32 %v1596, 0.0
  %v1613 = vmax.f32 %v1597, 0.0
  %v1614 = vsub.f32 %v1438, %v1486
  %v1615 = vsub.f32 %v1439, %v1487
  %v1616 = vsub.f32 %v1440, %v1488
  %v1617 = vsub.f32 %v1441, %v1489
  %v1618 = vsub.f32 %v1442, %v1490
  %v1619 = vsub.f32 %v1443, %v1491
  %v1620 = vsub.f32 %v1444, %v1492
  %v1621 = vsub.f32 %v1445, %v1493
  %v1622 = vsub.f32 %v1446, %v1494
  %v1623 = vsub.f32 %v1447, %v1495
  %v1624 = vsub.f32 %v1448, %v1496
  %v1625 = vsub.f32 %v1449, %v1497
  %v1626 = vsub.f32 %v1450, %v1498
  %v1627 = vsub.f32 %v1451, %v1499
  %v1628 = vsub.f32 %v1452, %v1500
  %v1629 = vsub.f32 %v1453, %v1501
  %v1630 = vadd.f32 %v1598, 1e-06
  %v1631 = vadd.f32 %v1599, 1e-06
  %v1632 = vadd.f32 %v1600, 1e-06
  %v1633 = vadd.f32 %v1601, 1e-06
  %v1634 = vadd.f32 %v1602, 1e-06
  %v1635 = vadd.f32 %v1603, 1e-06
  %v1636 = vadd.f32 %v1604, 1e-06
  %v1637 = vadd.f32 %v1605, 1e-06
  %v1638 = vadd.f32 %v1606, 1e-06
  %v1639 = vadd.f32 %v1607, 1e-06
  %v1640 = vadd.f32 %v1608, 1e-06
  %v1641 = vadd.f32 %v1609, 1e-06
  %v1642 = vadd.f32 %v1610, 1e-06
  %v1643 = vadd.f32 %v1611, 1e-06
  %v1644 = vadd.f32 %v1612, 1e-06
  %v1645 = vadd.f32 %v1613, 1e-06
  %v1646 = vrsqrt.pop %v1630
  %v1647 = vrsqrt.pop %v1631
  %v1648 = vrsqrt.pop %v1632
  %v1649 = vrsqrt.pop %v1633
  %v1650 = vrsqrt.pop %v1634
  %v1651 = vrsqrt.pop %v1635
  %v1652 = vrsqrt.pop %v1636
  %v1653 = vrsqrt.pop %v1637
  %v1654 = vrsqrt.pop %v1638
  %v1655 = vrsqrt.pop %v1639
  %v1656 = vrsqrt.pop %v1640
  %v1657 = vrsqrt.pop %v1641
  %v1658 = vrsqrt.pop %v1642
  %v1659 = vrsqrt.pop %v1643
  %v1660 = vrsqrt.pop %v1644
  %v1661 = vrsqrt.pop %v1645
  %v1662 = vmul.f32 %v1614, %v1646
  %v1663 = vmul.f32 %v1615, %v1647
  %v1664 = vmul.f32 %v1616, %v1648
  %v1665 = vmul.f32 %v1617, %v1649
  %v1666 = vmul.f32 %v1618, %v1650
  %v1667 = vmul.f32 %v1619, %v1651
  %v1668 = vmul.f32 %v1620, %v1652
  %v1669 = vmul.f32 %v1621, %v1653
  %v1670 = vmul.f32 %v1622, %v1654
  %v1671 = vmul.f32 %v1623, %v1655
  %v1672 = vmul.f32 %v1624, %v1656
  %v1673 = vmul.f32 %v1625, %v1657
  %v1674 = vmul.f32 %v1626, %v1658
  %v1675 = vmul.f32 %v1627, %v1659
  %v1676 = vmul.f32 %v1628, %v1660
  %v1677 = vmul.f32 %v1629, %v1661
  %v1678 = vlaneseq
  %v1679 = vshrl.u32 %v1678, 7
  %v1680 = vsub.s32 1, %v1679
  %v1681 = vrot.slane %v1433, %v1680
  %v1682 = vmul.f32 %v1662, %v1681
  %v1683 = vmul.f32 %v1663, %v1681
  %v1684 = vmul.f32 %v1664, %v1681
  %v1685 = vmul.f32 %v1665, %v1681
  %v1686 = vmul.f32 %v1666, %v1681
  %v1687 = vmul.f32 %v1667, %v1681
  %v1688 = vmul.f32 %v1668, %v1681
  %v1689 = vmul.f32 %v1669, %v1681
  %v1690 = vmul.f32 %v1670, %v1681
  %v1691 = vmul.f32 %v1671, %v1681
  %v1692 = vmul.f32 %v1672, %v1681
  %v1693 = vmul.f32 %v1673, %v1681
  %v1694 = vmul.f32 %v1674, %v1681
  %v1695 = vmul.f32 %v1675, %v1681
  %v1696 = vmul.f32 %v1676, %v1681
  %v1697 = vmul.f32 %v1677, %v1681
  %v1698 = vlaneseq
  %v1699 = vshrl.u32 %v1698, 7
  %v1700 = vsub.s32 2, %v1699
  %v1701 = vrot.slane %v1433, %v1700
  %v1702 = vadd.f32 %v1682, %v1701
  %v1703 = vadd.f32 %v1683, %v1701
  %v1704 = vadd.f32 %v1684, %v1701
  %v1705 = vadd.f32 %v1685, %v1701
  %v1706 = vadd.f32 %v1686, %v1701
  %v1707 = vadd.f32 %v1687, %v1701
  %v1708 = vadd.f32 %v1688, %v1701
  %v1709 = vadd.f32 %v1689, %v1701
  %v1710 = vadd.f32 %v1690, %v1701
  %v1711 = vadd.f32 %v1691, %v1701
  %v1712 = vadd.f32 %v1692, %v1701
  %v1713 = vadd.f32 %v1693, %v1701
  %v1714 = vadd.f32 %v1694, %v1701
  %v1715 = vadd.f32 %v1695, %v1701
  %v1716 = vadd.f32 %v1696, %v1701
  %v1717 = vadd.f32 %v1697, %v1701
  %v1718 = vmul.f32 %v1702, 0.5
  %v1719 = vmul.f32 %v1703, 0.5
  %v1720 = vmul.f32 %v1704, 0.5
  %v1721 = vmul.f32 %v1705, 0.5
  %v1722 = vmul.f32 %v1706, 0.5
  %v1723 = vmul.f32 %v1707, 0.5
  %v1724 = vmul.f32 %v1708, 0.5
  %v1725 = vmul.f32 %v1709, 0.5
  %v1726 = vmul.f32 %v1710, 0.5
  %v1727 = vmul.f32 %v1711, 0.5
  %v1728 = vmul.f32 %v1712, 0.5
  %v1729 = vmul.f32 %v1713, 0.5
  %v1730 = vmul.f32 %v1714, 0.5
  %v1731 = vmul.f32 %v1715, 0.5
  %v1732 = vmul.f32 %v1716, 0.5
  %v1733 = vmul.f32 %v1717, 0.5
  %v1734 = vmul.f32 %v1702, 0.70710677
  %v1735 = vmul.f32 %v1703, 0.70710677
  %v1736 = vmul.f32 %v1704, 0.70710677
  %v1737 = vmul.f32 %v1705, 0.70710677
  %v1738 = vmul.f32 %v1706, 0.70710677
  %v1739 = vmul.f32 %v1707, 0.70710677
  %v1740 = vmul.f32 %v1708, 0.70710677
  %v1741 = vmul.f32 %v1709, 0.70710677
  %v1742 = vmul.f32 %v1710, 0.70710677
  %v1743 = vmul.f32 %v1711, 0.70710677
  %v1744 = vmul.f32 %v1712, 0.70710677
  %v1745 = vmul.f32 %v1713, 0.70710677
  %v1746 = vmul.f32 %v1714, 0.70710677
  %v1747 = vmul.f32 %v1715, 0.70710677
  %v1748 = vmul.f32 %v1716, 0.70710677
  %v1749 = vmul.f32 %v1717, 0.70710677
  %v1750 = verf.f32.pop %v1734
  %v1751 = verf.f32.pop %v1735
  %v1752 = verf.f32.pop %v1736
  %v1753 = verf.f32.pop %v1737
  %v1754 = verf.f32.pop %v1738
  %v1755 = verf.f32.pop %v1739
  %v1756 = verf.f32.pop %v1740
  %v1757 = verf.f32.pop %v1741
  %v1758 = verf.f32.pop %v1742
  %v1759 = verf.f32.pop %v1743
  %v1760 = verf.f32.pop %v1744
  %v1761 = verf.f32.pop %v1745
  %v1762 = verf.f32.pop %v1746
  %v1763 = verf.f32.pop %v1747
  %v1764 = verf.f32.pop %v1748
  %v1765 = verf.f32.pop %v1749
  %v1766 = vadd.f32 %v1750, 1.0
  %v1767 = vadd.f32 %v1751, 1.0
  %v1768 = vadd.f32 %v1752, 1.0
  %v1769 = vadd.f32 %v1753, 1.0
  %v1770 = vadd.f32 %v1754, 1.0
  %v1771 = vadd.f32 %v1755, 1.0
  %v1772 = vadd.f32 %v1756, 1.0
  %v1773 = vadd.f32 %v1757, 1.0
  %v1774 = vadd.f32 %v1758, 1.0
  %v1775 = vadd.f32 %v1759, 1.0
  %v1776 = vadd.f32 %v1760, 1.0
  %v1777 = vadd.f32 %v1761, 1.0
  %v1778 = vadd.f32 %v1762, 1.0
  %v1779 = vadd.f32 %v1763, 1.0
  %v1780 = vadd.f32 %v1764, 1.0
  %v1781 = vadd.f32 %v1765, 1.0
  %v1782 = vmul.f32 %v1718, %v1766
  %v1783 = vmul.f32 %v1719, %v1767
  %v1784 = vmul.f32 %v1720, %v1768
  %v1785 = vmul.f32 %v1721, %v1769
  %v1786 = vmul.f32 %v1722, %v1770
  %v1787 = vmul.f32 %v1723, %v1771
  %v1788 = vmul.f32 %v1724, %v1772
  %v1789 = vmul.f32 %v1725, %v1773
  %v1790 = vmul.f32 %v1726, %v1774
  %v1791 = vmul.f32 %v1727, %v1775
  %v1792 = vmul.f32 %v1728, %v1776
  %v1793 = vmul.f32 %v1729, %v1777
  %v1794 = vmul.f32 %v1730, %v1778
  %v1795 = vmul.f32 %v1731, %v1779
  %v1796 = vmul.f32 %v1732, %v1780
  %v1797 = vmul.f32 %v1733, %v1781
  %1798 = vst [vmem:[%s4] sm:$0xff] %v1782
  %1799 = vst [vmem:[%s4 + $0x8] sm:$0xff] %v1783
  %1800 = vst [vmem:[%s4 + $0x10] sm:$0xff] %v1784
  %1801 = vst [vmem:[%s4 + $0x18] sm:$0xff] %v1785
  %1802 = vst [vmem:[%s4 + $0x20] sm:$0xff] %v1786
  %1803 = vst [vmem:[%s4 + $0x28] sm:$0xff] %v1787
  %1804 = vst [vmem:[%s4 + $0x30] sm:$0xff] %v1788
  %1805 = vst [vmem:[%s4 + $0x38] sm:$0xff] %v1789
  %1806 = vst [vmem:[%s4 + $0x40] sm:$0xff] %v1790
  %1807 = vst [vmem:[%s4 + $0x48] sm:$0xff] %v1791
  %1808 = vst [vmem:[%s4 + $0x50] sm:$0xff] %v1792
  %1809 = vst [vmem:[%s4 + $0x58] sm:$0xff] %v1793
  %1810 = vst [vmem:[%s4 + $0x60] sm:$0xff] %v1794
  %1811 = vst [vmem:[%s4 + $0x68] sm:$0xff] %v1795
  %1812 = vst [vmem:[%s4 + $0x70] sm:$0xff] %v1796
  %1813 = vst [vmem:[%s4 + $0x78] sm:$0xff] %v1797
  // Predicated region
  $region18: #{conv_block1_forward.3} parent=0 // pred_check
    _
  $region19: #{conv_block1_forward.3} parent=0 // pred_check_branch
    %1815 = sbr.rel (0) target = $region21
  $region20: #{conv_block1_forward.3} parent=0 // pred_region
    _
  $region21: #{conv_block1_forward.3} parent=0 // pred_fallthru
    _
  // Predicated region
  $region22: #{conv_block1_forward.3} parent=0 // pred_check
    _
  $region23: #{conv_block1_forward.3} parent=0 // pred_check_branch
    %1817 = sbr.rel (0) target = $region25
  $region24: #{conv_block1_forward.3} parent=0 // pred_region
    _
  $region25: #{conv_block1_forward.3} parent=0 // pred_fallthru
    _

</llo_original>
